<compile_context>
chip_gen: v5e
topology: v5e:2x2
jax: 0.10.0
libtpu: 0.0.40
codegen_flags: <defaults>
</compile_context>

<pallas_src>
import functools

import jax
import jax.numpy as jnp
from jax.experimental import pallas as pl
from jax.experimental.pallas import tpu as pltpu


def _conv_block(xp_ref, w_ref, *, kh, kw, stride, dilation, oh, ow, c, o_pad):
    """Implicit-GEMM conv for one image block.

    xp_ref: (1, HP, WP, C) bf16 padded NHWC image block (VMEM).
    w_ref:  (KH*KW, C, O_pad) bf16 weights (resident in VMEM).
    Returns the f32 conv output, shape (OH*OW, O_pad).
    """
    acc = jnp.zeros((oh * ow, o_pad), dtype=jnp.float32)
    for i in range(kh):            # static unroll: KH*KW is small
        for j in range(kw):
            hi = i * dilation
            wj = j * dilation
            if stride == 1:
                win = xp_ref[0, hi:hi + oh, wj:wj + ow, :]            # (OH, OW, C)
            else:
                win = xp_ref[0, pl.ds(hi, oh, stride), pl.ds(wj, ow, stride), :]
            win2 = win.reshape(oh * ow, c)                            # bf16 -> MXU
            acc = acc + jnp.dot(win2, w_ref[i * kw + j],
                                preferred_element_type=jnp.float32)
    return acc


def _stats_kernel(xp_ref, w_ref, sum_ref, sumsq_ref, *, conv_params):
    """Pass 1: conv + per-channel sum / sum-of-squares accumulated over the grid."""
    @pl.when(pl.program_id(0) == 0)
    def _():
        sum_ref[...] = jnp.zeros_like(sum_ref)
        sumsq_ref[...] = jnp.zeros_like(sumsq_ref)

    y = _conv_block(xp_ref, w_ref, **conv_params)           # (OH*OW, O_pad) f32
    sum_ref[...] += jnp.sum(y, axis=0, keepdims=True)
    sumsq_ref[...] += jnp.sum(y * y, axis=0, keepdims=True)


def _apply_kernel(xp_ref, w_ref, scale_ref, shift_ref, out_ref, *, conv_params):
    """Pass 2: recompute conv, apply folded BN scale/shift; lane-dense store."""
    y = _conv_block(xp_ref, w_ref, **conv_params)            # (OH*OW, O_pad) f32
    out_ref[0] = (y * scale_ref[...] + shift_ref[...]).astype(out_ref.dtype)


def basic_conv2d_forward(x, weight, gamma, beta, *, stride=1, padding=0,
                         dilation=1, eps=1e-5):
    """x: (N, C, H, W) f32; weight: (O, C, KH, KW); gamma/beta: (O,). Returns NCHW."""
    n, c, h, w = x.shape
    o, c2, kh, kw = weight.shape
    assert c == c2
    eff_kh = (kh - 1) * dilation + 1
    eff_kw = (kw - 1) * dilation + 1
    oh = (h + 2 * padding - eff_kh) // stride + 1
    ow = (w + 2 * padding - eff_kw) // stride + 1
    o_pad = max(128, -(-o // 128) * 128)                     # lane-dense out channels
    hp, wp = h + 2 * padding, w + 2 * padding

    # NHWC + spatial zero-pad + bf16 cast (single cheap layout transform; halves the
    # activation DMA bytes; the activation is then read exactly once per pass).
    xp = jnp.transpose(x, (0, 2, 3, 1))
    xp = jnp.pad(xp, ((0, 0), (padding, padding), (padding, padding), (0, 0)))
    xp = xp.astype(jnp.bfloat16)

    # weight -> (KH*KW, C, O_pad) bf16 with zero-padded output channels (resident).
    w_r = jnp.transpose(weight, (2, 3, 1, 0)).reshape(kh * kw, c, o)
    w_r = jnp.pad(w_r, ((0, 0), (0, 0), (0, o_pad - o))).astype(jnp.bfloat16)

    conv_params = dict(kh=kh, kw=kw, stride=stride, dilation=dilation,
                       oh=oh, ow=ow, c=c, o_pad=o_pad)

    img_spec = pl.BlockSpec((1, hp, wp, c), lambda i: (i, 0, 0, 0))
    wgt_spec = pl.BlockSpec((kh * kw, c, o_pad), lambda i: (0, 0, 0))
    vec_spec = pl.BlockSpec((1, o_pad), lambda i: (0, 0))

    # ---- Pass 1: accumulate BatchNorm batch statistics over all N*OH*OW positions.
    ssum, ssq = pl.pallas_call(
        functools.partial(_stats_kernel, conv_params=conv_params),
        out_shape=(jax.ShapeDtypeStruct((1, o_pad), jnp.float32),
                   jax.ShapeDtypeStruct((1, o_pad), jnp.float32)),
        grid=(n,),
        in_specs=[img_spec, wgt_spec],
        out_specs=(vec_spec, vec_spec),
        compiler_params=pltpu.CompilerParams(
            dimension_semantics=("arbitrary",),              # accumulator across grid
            vmem_limit_bytes=64 << 20),
    )(xp, w_r)

    # ---- Fold BN into per-channel scale/shift (biased variance == what PyTorch
    # BatchNorm2d uses for the normalization itself in training mode).
    count = float(n * oh * ow)
    mean = ssum / count
    var = jnp.maximum(ssq / count - mean * mean, 0.0)
    gamma_p = jnp.pad(gamma.astype(jnp.float32), (0, o_pad - o)).reshape(1, o_pad)
    beta_p = jnp.pad(beta.astype(jnp.float32), (0, o_pad - o)).reshape(1, o_pad)
    scale = gamma_p * jax.lax.rsqrt(var + eps)
    shift = beta_p - mean * scale

    # ---- Pass 2: recompute conv and apply scale/shift; 128-lane-dense output.
    out_p = pl.pallas_call(
        functools.partial(_apply_kernel, conv_params=conv_params),
        out_shape=jax.ShapeDtypeStruct((n, oh * ow, o_pad), jnp.float32),
        grid=(n,),
        in_specs=[img_spec, wgt_spec, vec_spec, vec_spec],
        out_specs=pl.BlockSpec((1, oh * ow, o_pad), lambda i: (i, 0, 0)),
        compiler_params=pltpu.CompilerParams(
            dimension_semantics=("parallel",),               # megacore over images
            vmem_limit_bytes=64 << 20),
    )(xp, w_r, scale, shift)

    # (N, OH*OW, O_pad) -> slice padded channels -> NCHW (small XLA glue on the
    # unpadded tensor only).
    out = out_p[:, :, :o].reshape(n, oh, ow, o).transpose(0, 3, 1, 2)
    return out


if __name__ == "__main__":
    # BasicConv2d(in_planes=4, out_planes=8, kernel_size=3, stride=1, padding=1)
    in_planes, out_planes, ksize = 4, 8, 3
    stride, padding, dilation = 1, 1, 1

    key = jax.random.PRNGKey(0)
    kx, kwt, kg, kb = jax.random.split(key, 4)

    x = jax.random.normal(kx, (2, in_planes, 16, 16), dtype=jnp.float32)
    weight = 0.1 * jax.random.normal(kwt, (out_planes, in_planes, ksize, ksize),
                                     dtype=jnp.float32)
    gamma = 1.0 + 0.1 * jax.random.normal(kg, (out_planes,), dtype=jnp.float32)
    beta = 0.1 * jax.random.normal(kb, (out_planes,), dtype=jnp.float32)

    out = basic_conv2d_forward(x, weight, gamma, beta,
                               stride=stride, padding=padding, dilation=dilation)
    out = jax.block_until_ready(out)
    assert out.shape == (2, out_planes, 16, 16)

    # Plain-JAX f32 reference (conv + training-mode BN), checked at bf16 tolerance.
    y = jax.lax.conv_general_dilated(
        x, weight, window_strides=(stride, stride),
        padding=((padding, padding), (padding, padding)),
        rhs_dilation=(dilation, dilation),
        dimension_numbers=("NCHW", "OIHW", "NCHW"))
    m = jnp.mean(y, axis=(0, 2, 3), keepdims=True)
    v = jnp.var(y, axis=(0, 2, 3), keepdims=True)
    ref = ((y - m) * jax.lax.rsqrt(v + 1e-5)
           * gamma.reshape(1, -1, 1, 1) + beta.reshape(1, -1, 1, 1))
    assert float(jnp.max(jnp.abs(out - ref))) < 0.1
    print("KERNEL_OK")
</pallas_src>

<mosaic_0001>
module attributes {stable_mosaic.version = 11 : i64} {
  func.func @_stats_kernel(%arg0: i32, %arg1: memref<1x18x18x4xbf16, #tpu.memory_space<vmem>>, %arg2: memref<9x4x128xbf16, #tpu.memory_space<vmem>>, %arg3: memref<1x128xf32, #tpu.memory_space<vmem>>, %arg4: memref<1x128xf32, #tpu.memory_space<vmem>>) attributes {dimension_semantics = [#tpu.dimension_semantics<arbitrary>], iteration_bounds = array<i64: 2>, scalar_prefetch = 0 : i64, scratch_operands = 0 : i64, tpu.core_type = #tpu.core_type<tc>, window_params = [{transform_indices = @transform_0, window_bounds = array<i64: 1, 18, 18, 4>}, {pipeline_mode = #tpu.pipeline_mode<synchronous>, transform_indices = @transform_1, window_bounds = array<i64: 9, 4, 128>}, {pipeline_mode = #tpu.pipeline_mode<synchronous>, transform_indices = @transform_2, window_bounds = array<i64: 1, 128>}, {pipeline_mode = #tpu.pipeline_mode<synchronous>, transform_indices = @transform_3, window_bounds = array<i64: 1, 128>}]} {
    %c0_i32 = arith.constant 0 : i32
    %0 = arith.cmpi eq, %arg0, %c0_i32 : i32
    %1 = arith.extui %0 : i1 to i32
    %c0_i32_0 = arith.constant 0 : i32
    %2 = arith.cmpi ne, %1, %c0_i32_0 : i32
    scf.if %2 {
      %cst_74 = arith.constant 0.000000e+00 : f32
      %78 = vector.broadcast %cst_74 : f32 to vector<1x128xf32>
      %c0_75 = arith.constant 0 : index
      %c0_76 = arith.constant 0 : index
      %79 = vector.load %arg3[%c0_75, %c0_76] : memref<1x128xf32, #tpu.memory_space<vmem>>, vector<1x128xf32>
      tpu.vector_store %arg3[%c0_75, %c0_76], %78 {strides = array<i32>} : memref<1x128xf32, #tpu.memory_space<vmem>>, vector<1x128xf32>,
      %cst_77 = arith.constant 0.000000e+00 : f32
      %80 = vector.broadcast %cst_77 : f32 to vector<1x128xf32>
      %c0_78 = arith.constant 0 : index
      %c0_79 = arith.constant 0 : index
      %81 = vector.load %arg4[%c0_78, %c0_79] : memref<1x128xf32, #tpu.memory_space<vmem>>, vector<1x128xf32>
      tpu.vector_store %arg4[%c0_78, %c0_79], %80 {strides = array<i32>} : memref<1x128xf32, #tpu.memory_space<vmem>>, vector<1x128xf32>,
    } else {
    }
    %cst = arith.constant 0.000000e+00 : f32
    %3 = vector.broadcast %cst : f32 to vector<256x128xf32>
    %c0 = arith.constant 0 : index
    %c0_1 = arith.constant 0 : index
    %c0_2 = arith.constant 0 : index
    %c0_3 = arith.constant 0 : index
    %4 = vector.load %arg1[%c0, %c0_1, %c0_2, %c0_3] : memref<1x18x18x4xbf16, #tpu.memory_space<vmem>>, vector<1x16x16x4xbf16>
    %5 = vector.shape_cast %4 : vector<1x16x16x4xbf16> to vector<16x16x4xbf16>
    %6 = vector.shape_cast %5 : vector<16x16x4xbf16> to vector<256x4xbf16>
    %c0_4 = arith.constant 0 : index
    %c0_5 = arith.constant 0 : index
    %c0_6 = arith.constant 0 : index
    %7 = vector.load %arg2[%c0_4, %c0_5, %c0_6] : memref<9x4x128xbf16, #tpu.memory_space<vmem>>, vector<1x4x128xbf16>
    %8 = vector.shape_cast %7 : vector<1x4x128xbf16> to vector<4x128xbf16>
    %cst_7 = arith.constant dense<0.000000e+00> : vector<256x128xf32>
    %9 = tpu.matmul %6, %8, %cst_7 {dimension_numbers = #tpu.dot_dimension_numbers<[1], [0], [0], [1], [0, 0, 1, 1], [], []>} : vector<256x4xbf16>, vector<4x128xbf16>, vector<256x128xf32> -> vector<256x128xf32>
    %10 = arith.addf %3, %9 : vector<256x128xf32>
    %c0_8 = arith.constant 0 : index
    %c0_9 = arith.constant 0 : index
    %c1 = arith.constant 1 : index
    %c0_10 = arith.constant 0 : index
    %11 = vector.load %arg1[%c0_8, %c0_9, %c1, %c0_10] : memref<1x18x18x4xbf16, #tpu.memory_space<vmem>>, vector<1x16x16x4xbf16>
    %12 = vector.shape_cast %11 : vector<1x16x16x4xbf16> to vector<16x16x4xbf16>
    %13 = vector.shape_cast %12 : vector<16x16x4xbf16> to vector<256x4xbf16>
    %c1_11 = arith.constant 1 : index
    %c0_12 = arith.constant 0 : index
    %c0_13 = arith.constant 0 : index
    %14 = vector.load %arg2[%c1_11, %c0_12, %c0_13] : memref<9x4x128xbf16, #tpu.memory_space<vmem>>, vector<1x4x128xbf16>
    %15 = vector.shape_cast %14 : vector<1x4x128xbf16> to vector<4x128xbf16>
    %cst_14 = arith.constant dense<0.000000e+00> : vector<256x128xf32>
    %16 = tpu.matmul %13, %15, %cst_14 {dimension_numbers = #tpu.dot_dimension_numbers<[1], [0], [0], [1], [0, 0, 1, 1], [], []>} : vector<256x4xbf16>, vector<4x128xbf16>, vector<256x128xf32> -> vector<256x128xf32>
    %17 = arith.addf %10, %16 : vector<256x128xf32>
    %c0_15 = arith.constant 0 : index
    %c0_16 = arith.constant 0 : index
    %c2 = arith.constant 2 : index
    %c0_17 = arith.constant 0 : index
    %18 = vector.load %arg1[%c0_15, %c0_16, %c2, %c0_17] : memref<1x18x18x4xbf16, #tpu.memory_space<vmem>>, vector<1x16x16x4xbf16>
    %19 = vector.shape_cast %18 : vector<1x16x16x4xbf16> to vector<16x16x4xbf16>
    %20 = vector.shape_cast %19 : vector<16x16x4xbf16> to vector<256x4xbf16>
    %c2_18 = arith.constant 2 : index
    %c0_19 = arith.constant 0 : index
    %c0_20 = arith.constant 0 : index
    %21 = vector.load %arg2[%c2_18, %c0_19, %c0_20] : memref<9x4x128xbf16, #tpu.memory_space<vmem>>, vector<1x4x128xbf16>
    %22 = vector.shape_cast %21 : vector<1x4x128xbf16> to vector<4x128xbf16>
    %cst_21 = arith.constant dense<0.000000e+00> : vector<256x128xf32>
    %23 = tpu.matmul %20, %22, %cst_21 {dimension_numbers = #tpu.dot_dimension_numbers<[1], [0], [0], [1], [0, 0, 1, 1], [], []>} : vector<256x4xbf16>, vector<4x128xbf16>, vector<256x128xf32> -> vector<256x128xf32>
    %24 = arith.addf %17, %23 : vector<256x128xf32>
    %c0_22 = arith.constant 0 : index
    %c1_23 = arith.constant 1 : index
    %c0_24 = arith.constant 0 : index
    %c0_25 = arith.constant 0 : index
    %25 = vector.load %arg1[%c0_22, %c1_23, %c0_24, %c0_25] : memref<1x18x18x4xbf16, #tpu.memory_space<vmem>>, vector<1x16x16x4xbf16>
    %26 = vector.shape_cast %25 : vector<1x16x16x4xbf16> to vector<16x16x4xbf16>
    %27 = vector.shape_cast %26 : vector<16x16x4xbf16> to vector<256x4xbf16>
    %c3 = arith.constant 3 : index
    %c0_26 = arith.constant 0 : index
    %c0_27 = arith.constant 0 : index
    %28 = vector.load %arg2[%c3, %c0_26, %c0_27] : memref<9x4x128xbf16, #tpu.memory_space<vmem>>, vector<1x4x128xbf16>
    %29 = vector.shape_cast %28 : vector<1x4x128xbf16> to vector<4x128xbf16>
    %cst_28 = arith.constant dense<0.000000e+00> : vector<256x128xf32>
    %30 = tpu.matmul %27, %29, %cst_28 {dimension_numbers = #tpu.dot_dimension_numbers<[1], [0], [0], [1], [0, 0, 1, 1], [], []>} : vector<256x4xbf16>, vector<4x128xbf16>, vector<256x128xf32> -> vector<256x128xf32>
    %31 = arith.addf %24, %30 : vector<256x128xf32>
    %c0_29 = arith.constant 0 : index
    %c1_30 = arith.constant 1 : index
    %c1_31 = arith.constant 1 : index
    %c0_32 = arith.constant 0 : index
    %32 = vector.load %arg1[%c0_29, %c1_30, %c1_31, %c0_32] : memref<1x18x18x4xbf16, #tpu.memory_space<vmem>>, vector<1x16x16x4xbf16>
    %33 = vector.shape_cast %32 : vector<1x16x16x4xbf16> to vector<16x16x4xbf16>
    %34 = vector.shape_cast %33 : vector<16x16x4xbf16> to vector<256x4xbf16>
    %c4 = arith.constant 4 : index
    %c0_33 = arith.constant 0 : index
    %c0_34 = arith.constant 0 : index
    %35 = vector.load %arg2[%c4, %c0_33, %c0_34] : memref<9x4x128xbf16, #tpu.memory_space<vmem>>, vector<1x4x128xbf16>
    %36 = vector.shape_cast %35 : vector<1x4x128xbf16> to vector<4x128xbf16>
    %cst_35 = arith.constant dense<0.000000e+00> : vector<256x128xf32>
    %37 = tpu.matmul %34, %36, %cst_35 {dimension_numbers = #tpu.dot_dimension_numbers<[1], [0], [0], [1], [0, 0, 1, 1], [], []>} : vector<256x4xbf16>, vector<4x128xbf16>, vector<256x128xf32> -> vector<256x128xf32>
    %38 = arith.addf %31, %37 : vector<256x128xf32>
    %c0_36 = arith.constant 0 : index
    %c1_37 = arith.constant 1 : index
    %c2_38 = arith.constant 2 : index
    %c0_39 = arith.constant 0 : index
    %39 = vector.load %arg1[%c0_36, %c1_37, %c2_38, %c0_39] : memref<1x18x18x4xbf16, #tpu.memory_space<vmem>>, vector<1x16x16x4xbf16>
    %40 = vector.shape_cast %39 : vector<1x16x16x4xbf16> to vector<16x16x4xbf16>
    %41 = vector.shape_cast %40 : vector<16x16x4xbf16> to vector<256x4xbf16>
    %c5 = arith.constant 5 : index
    %c0_40 = arith.constant 0 : index
    %c0_41 = arith.constant 0 : index
    %42 = vector.load %arg2[%c5, %c0_40, %c0_41] : memref<9x4x128xbf16, #tpu.memory_space<vmem>>, vector<1x4x128xbf16>
    %43 = vector.shape_cast %42 : vector<1x4x128xbf16> to vector<4x128xbf16>
    %cst_42 = arith.constant dense<0.000000e+00> : vector<256x128xf32>
    %44 = tpu.matmul %41, %43, %cst_42 {dimension_numbers = #tpu.dot_dimension_numbers<[1], [0], [0], [1], [0, 0, 1, 1], [], []>} : vector<256x4xbf16>, vector<4x128xbf16>, vector<256x128xf32> -> vector<256x128xf32>
    %45 = arith.addf %38, %44 : vector<256x128xf32>
    %c0_43 = arith.constant 0 : index
    %c2_44 = arith.constant 2 : index
    %c0_45 = arith.constant 0 : index
    %c0_46 = arith.constant 0 : index
    %46 = vector.load %arg1[%c0_43, %c2_44, %c0_45, %c0_46] : memref<1x18x18x4xbf16, #tpu.memory_space<vmem>>, vector<1x16x16x4xbf16>
    %47 = vector.shape_cast %46 : vector<1x16x16x4xbf16> to vector<16x16x4xbf16>
    %48 = vector.shape_cast %47 : vector<16x16x4xbf16> to vector<256x4xbf16>
    %c6 = arith.constant 6 : index
    %c0_47 = arith.constant 0 : index
    %c0_48 = arith.constant 0 : index
    %49 = vector.load %arg2[%c6, %c0_47, %c0_48] : memref<9x4x128xbf16, #tpu.memory_space<vmem>>, vector<1x4x128xbf16>
    %50 = vector.shape_cast %49 : vector<1x4x128xbf16> to vector<4x128xbf16>
    %cst_49 = arith.constant dense<0.000000e+00> : vector<256x128xf32>
    %51 = tpu.matmul %48, %50, %cst_49 {dimension_numbers = #tpu.dot_dimension_numbers<[1], [0], [0], [1], [0, 0, 1, 1], [], []>} : vector<256x4xbf16>, vector<4x128xbf16>, vector<256x128xf32> -> vector<256x128xf32>
    %52 = arith.addf %45, %51 : vector<256x128xf32>
    %c0_50 = arith.constant 0 : index
    %c2_51 = arith.constant 2 : index
    %c1_52 = arith.constant 1 : index
    %c0_53 = arith.constant 0 : index
    %53 = vector.load %arg1[%c0_50, %c2_51, %c1_52, %c0_53] : memref<1x18x18x4xbf16, #tpu.memory_space<vmem>>, vector<1x16x16x4xbf16>
    %54 = vector.shape_cast %53 : vector<1x16x16x4xbf16> to vector<16x16x4xbf16>
    %55 = vector.shape_cast %54 : vector<16x16x4xbf16> to vector<256x4xbf16>
    %c7 = arith.constant 7 : index
    %c0_54 = arith.constant 0 : index
    %c0_55 = arith.constant 0 : index
    %56 = vector.load %arg2[%c7, %c0_54, %c0_55] : memref<9x4x128xbf16, #tpu.memory_space<vmem>>, vector<1x4x128xbf16>
    %57 = vector.shape_cast %56 : vector<1x4x128xbf16> to vector<4x128xbf16>
    %cst_56 = arith.constant dense<0.000000e+00> : vector<256x128xf32>
    %58 = tpu.matmul %55, %57, %cst_56 {dimension_numbers = #tpu.dot_dimension_numbers<[1], [0], [0], [1], [0, 0, 1, 1], [], []>} : vector<256x4xbf16>, vector<4x128xbf16>, vector<256x128xf32> -> vector<256x128xf32>
    %59 = arith.addf %52, %58 : vector<256x128xf32>
    %c0_57 = arith.constant 0 : index
    %c2_58 = arith.constant 2 : index
    %c2_59 = arith.constant 2 : index
    %c0_60 = arith.constant 0 : index
    %60 = vector.load %arg1[%c0_57, %c2_58, %c2_59, %c0_60] : memref<1x18x18x4xbf16, #tpu.memory_space<vmem>>, vector<1x16x16x4xbf16>
    %61 = vector.shape_cast %60 : vector<1x16x16x4xbf16> to vector<16x16x4xbf16>
    %62 = vector.shape_cast %61 : vector<16x16x4xbf16> to vector<256x4xbf16>
    %c8 = arith.constant 8 : index
    %c0_61 = arith.constant 0 : index
    %c0_62 = arith.constant 0 : index
    %63 = vector.load %arg2[%c8, %c0_61, %c0_62] : memref<9x4x128xbf16, #tpu.memory_space<vmem>>, vector<1x4x128xbf16>
    %64 = vector.shape_cast %63 : vector<1x4x128xbf16> to vector<4x128xbf16>
    %cst_63 = arith.constant dense<0.000000e+00> : vector<256x128xf32>
    %65 = tpu.matmul %62, %64, %cst_63 {dimension_numbers = #tpu.dot_dimension_numbers<[1], [0], [0], [1], [0, 0, 1, 1], [], []>} : vector<256x4xbf16>, vector<4x128xbf16>, vector<256x128xf32> -> vector<256x128xf32>
    %66 = arith.addf %59, %65 : vector<256x128xf32>
    %c0_64 = arith.constant 0 : index
    %c0_65 = arith.constant 0 : index
    %67 = vector.load %arg3[%c0_64, %c0_65] : memref<1x128xf32, #tpu.memory_space<vmem>>, vector<1x128xf32>
    %cst_66 = arith.constant dense<0.000000e+00> : vector<128xf32>
    %68 = vector.multi_reduction <add>, %66, %cst_66 [0] : vector<256x128xf32> to vector<128xf32>
    %69 = vector.shape_cast %68 : vector<128xf32> to vector<1x128xf32>
    %70 = arith.addf %67, %69 : vector<1x128xf32>
    %c0_67 = arith.constant 0 : index
    %c0_68 = arith.constant 0 : index
    %71 = vector.load %arg3[%c0_67, %c0_68] : memref<1x128xf32, #tpu.memory_space<vmem>>, vector<1x128xf32>
    tpu.vector_store %arg3[%c0_67, %c0_68], %70 {strides = array<i32>} : memref<1x128xf32, #tpu.memory_space<vmem>>, vector<1x128xf32>,
    %c0_69 = arith.constant 0 : index
    %c0_70 = arith.constant 0 : index
    %72 = vector.load %arg4[%c0_69, %c0_70] : memref<1x128xf32, #tpu.memory_space<vmem>>, vector<1x128xf32>
    %73 = arith.mulf %66, %66 : vector<256x128xf32>
    %cst_71 = arith.constant dense<0.000000e+00> : vector<128xf32>
    %74 = vector.multi_reduction <add>, %73, %cst_71 [0] : vector<256x128xf32> to vector<128xf32>
    %75 = vector.shape_cast %74 : vector<128xf32> to vector<1x128xf32>
    %76 = arith.addf %72, %75 : vector<1x128xf32>
    %c0_72 = arith.constant 0 : index
    %c0_73 = arith.constant 0 : index
    %77 = vector.load %arg4[%c0_72, %c0_73] : memref<1x128xf32, #tpu.memory_space<vmem>>, vector<1x128xf32>
    tpu.vector_store %arg4[%c0_72, %c0_73], %76 {strides = array<i32>} : memref<1x128xf32, #tpu.memory_space<vmem>>, vector<1x128xf32>,
    return
  }
  func.func @transform_0(%arg0: i32) -> (i32, i32, i32, i32) {
    %c0_i32 = arith.constant 0 : i32
    %c0_i32_0 = arith.constant 0 : i32
    %c0_i32_1 = arith.constant 0 : i32
    %c0_i32_2 = arith.constant 0 : i32
    return %arg0, %c0_i32, %c0_i32_0, %c0_i32_1 : i32, i32, i32, i32
  }
  func.func @transform_1(%arg0: i32) -> (i32, i32, i32) {
    %c0_i32 = arith.constant 0 : i32
    %c0_i32_0 = arith.constant 0 : i32
    %c0_i32_1 = arith.constant 0 : i32
    %c0_i32_2 = arith.constant 0 : i32
    return %c0_i32, %c0_i32_0, %c0_i32_1 : i32, i32, i32
  }
  func.func @transform_2(%arg0: i32) -> (i32, i32) {
    %c0_i32 = arith.constant 0 : i32
    %c0_i32_0 = arith.constant 0 : i32
    %c0_i32_1 = arith.constant 0 : i32
    return %c0_i32, %c0_i32_0 : i32, i32
  }
  func.func @transform_3(%arg0: i32) -> (i32, i32) {
    %c0_i32 = arith.constant 0 : i32
    %c0_i32_0 = arith.constant 0 : i32
    %c0_i32_1 = arith.constant 0 : i32
    return %c0_i32, %c0_i32_0 : i32, i32
  }
}

</mosaic_0001>

<llo_original>
// kernel: tpu_custom_call.1
$region0: #{tpu_custom_call.1}
  #allocation0 [shape = 'u32[]', space=smem, size = 0x4, offset = 0x4, fixed_abs, tag = 'smem constant byte address 0x4 - core index']
  #allocation1 [shape = 'u32[72,128]{1,0:T(1,128)}', space=vmem, size = 0x9000, scoped, tag = 'internal scratch']
  %s0 = inlined_call_operand.vmem [shape: bf16[2,18,18,4], index: 0, kind: input, shape index: {}]
  %s1 = inlined_call_operand.vmem [shape: bf16[9,4,128], index: 1, kind: input, shape index: {}]
  %s2 = inlined_call_operand.hbm [shape: f32[1,128], index: 2, kind: output, shape index: {0}]
  %s3 = inlined_call_operand.hbm [shape: f32[1,128], index: 3, kind: output, shape index: {1}]
  %4 = xla_tuple %s2, %s3
  %s5 = sld [smem:[#allocation0]]
  $region53: #{tpu_custom_call.1} parent=0
    _
  %s7 = ssub.s32 1, %s5
  %s8 = scalar_select 0, %s7, %s5
  $region1: #{tpu_custom_call.1} parent=0
    #allocation2 [shape = 'u8[512]{0}', space=vmem, size = 0x400, scoped, tag = 'output window, operand 0, single buffered']
    #allocation3 [shape = 's32[2]{0}', space=sflag, size = 0x8, scoped, tag = 'scoped memory for tpu_custom_call.1']
    #allocation4 [shape = 'u8[512]{0}', space=vmem, size = 0x400, scoped, tag = 'output window, operand 1, single buffered']
    #allocation5 [shape = 's32[1]{0}', space=sflag, size = 0x4, scoped, tag = 'scoped memory for tpu_custom_call.1']
    %9 = vsyncpa [#allocation3], 0
    %10 = vsyncpa [#allocation5], 0
    loop: start=0, step=1, limit=4
    $region2: #{tpu_custom_call.1} parent=1 // loop_pre_header
      _
    $region3: #{tpu_custom_call.1} parent=1 // loop_header
      %s12 = sphi 0, %s16
      %p13 = scmp.ge.s32.totalorder %s12, 4
      %s22 = sphi 0, %s24
      %s25 = sphi 0, %s22
      %s26 = sphi 0, %s25
      %s42 = sphi 0, %s26
      %s46 = sphi 0, %s46
      %s48 = sphi 0, %s46
      %s49 = sphi 0, %s48
      %s63 = sphi 0, %s49
      %s67 = sphi 0, %s67
      %s69 = sphi 0, %s67
      %s70 = sphi 0, %s69
      %s84 = sphi 0, %s70
      %s88 = sphi 0, %s88
      %s90 = sphi 0, %s88
      %s91 = sphi 0, %s90
      %s105 = sphi 0, %s91
    $region4: #{tpu_custom_call.1} parent=1 // loop_header_branch
      %15 = sbr.rel (%p13) target = $region8
    $region5: #{tpu_custom_call.1} parent=1 // loop_body
      %s17 = ssub.s32 %s12, 1
      %s18 = ssub.s32 %s12, 2
      %s19 = sadd.s32 %s12, 1
      %s20 = ssub.s32 %s12, %s19
      %p21 = scmp.eq.s32.totalorder %s20, 0
      %s23 = sadd.s32 %s22, 1
      %s24 = scalar_select %p21, %s22, %s23
      %p27 = pneg %p21
      %p28 = scmp.eq.s32.totalorder %s12, 1
      %p29 = por %p27, %p28
      %p30 = scmp.ne.s32.totalorder %s22, %s25
      %p31 = scmp.eq.s32.totalorder %s12, 0
      %p32 = por %p30, %p31
      %p33 = scmp.ne.s32.totalorder %s22, %s25
      %p34 = scmp.eq.s32.totalorder %s17, 1
      %p35 = por %p33, %p34
      %p36 = scmp.ne.s32.totalorder %s25, %s26
      %p37 = scmp.eq.s32.totalorder %s17, 0
      %p38 = por %p36, %p37
      %p39 = scmp.ne.s32.totalorder %s25, %s26
      %p40 = scmp.eq.s32.totalorder %s18, 1
      %p41 = por %p39, %p40
      %p43 = scmp.ne.s32.totalorder %s26, %s42
      %p44 = scmp.eq.s32.totalorder %s18, 0
      %p45 = por %p43, %p44
      %s47 = sadd.s32 %s46, 1
      %p50 = scmp.eq.s32.totalorder %s12, 1
      %p51 = scmp.ne.s32.totalorder %s46, %s48
      %p52 = scmp.eq.s32.totalorder %s12, 0
      %p53 = por %p51, %p52
      %p54 = scmp.ne.s32.totalorder %s46, %s48
      %p55 = scmp.eq.s32.totalorder %s17, 1
      %p56 = por %p54, %p55
      %p57 = scmp.ne.s32.totalorder %s48, %s49
      %p58 = scmp.eq.s32.totalorder %s17, 0
      %p59 = por %p57, %p58
      %p60 = scmp.ne.s32.totalorder %s48, %s49
      %p61 = scmp.eq.s32.totalorder %s18, 1
      %p62 = por %p60, %p61
      %p64 = scmp.ne.s32.totalorder %s49, %s63
      %p65 = scmp.eq.s32.totalorder %s18, 0
      %p66 = por %p64, %p65
      %s68 = sadd.s32 %s67, 1
      %p71 = scmp.eq.s32.totalorder %s12, 1
      %p72 = scmp.ne.s32.totalorder %s67, %s69
      %p73 = scmp.eq.s32.totalorder %s12, 0
      %p74 = por %p72, %p73
      %p75 = scmp.ne.s32.totalorder %s67, %s69
      %p76 = scmp.eq.s32.totalorder %s17, 1
      %p77 = por %p75, %p76
      %p78 = scmp.ne.s32.totalorder %s69, %s70
      %p79 = scmp.eq.s32.totalorder %s17, 0
      %p80 = por %p78, %p79
      %p81 = scmp.ne.s32.totalorder %s69, %s70
      %p82 = scmp.eq.s32.totalorder %s18, 1
      %p83 = por %p81, %p82
      %p85 = scmp.ne.s32.totalorder %s70, %s84
      %p86 = scmp.eq.s32.totalorder %s18, 0
      %p87 = por %p85, %p86
      %s89 = sadd.s32 %s88, 1
      %p92 = scmp.eq.s32.totalorder %s12, 1
      %p93 = scmp.ne.s32.totalorder %s88, %s90
      %p94 = scmp.eq.s32.totalorder %s12, 0
      %p95 = por %p93, %p94
      %p96 = scmp.ne.s32.totalorder %s88, %s90
      %p97 = scmp.eq.s32.totalorder %s17, 1
      %p98 = por %p96, %p97
      %p99 = scmp.ne.s32.totalorder %s90, %s91
      %p100 = scmp.eq.s32.totalorder %s17, 0
      %p101 = por %p99, %p100
      %p102 = scmp.ne.s32.totalorder %s90, %s91
      %p103 = scmp.eq.s32.totalorder %s18, 1
      %p104 = por %p102, %p103
      %p106 = scmp.ne.s32.totalorder %s91, %s105
      %p107 = scmp.eq.s32.totalorder %s18, 0
      %p108 = por %p106, %p107
      %p109 = scmp.le.s32.totalorder 1, %s12
      %p110 = scmp.lt.s32.totalorder %s12, 3
      %p111 = pnand %p109, %p110
      %p112 = pneg %p111
      // Predicated region
      $region9: #{tpu_custom_call.1} parent=5 // pred_check
        _
      $region10: #{tpu_custom_call.1} parent=5 // pred_check_branch
        %114 = sbr.rel (%p111) target = $region12
      $region11: #{tpu_custom_call.1} parent=5 // pred_region
        %s115 = ssub.s32 %s12, 1
        // Predicated region
        $region13: #{tpu_custom_call.1} parent=11 // pred_check
          %p116 = pneg %p59
        $region14: #{tpu_custom_call.1} parent=11 // pred_check_branch
          %118 = sbr.rel (%p116) target = $region16
        $region15: #{tpu_custom_call.1} parent=11 // pred_region
          _
        $region16: #{tpu_custom_call.1} parent=11 // pred_fallthru
          _
      $region12: #{tpu_custom_call.1} parent=5 // pred_fallthru
        _
      %p119 = scmp.lt.s32.totalorder %s12, 2
      // Predicated region
      $region17: #{tpu_custom_call.1} parent=5 // pred_check
        %p120 = pneg %p119
      $region18: #{tpu_custom_call.1} parent=5 // pred_check_branch
        %122 = sbr.rel (%p120) target = $region20
      $region19: #{tpu_custom_call.1} parent=5 // pred_region
        // Predicated region
        $region21: #{tpu_custom_call.1} parent=19 // pred_check
          %p123 = pneg %p32
        $region22: #{tpu_custom_call.1} parent=19 // pred_check_branch
          %125 = sbr.rel (%p123) target = $region24
        $region23: #{tpu_custom_call.1} parent=19 // pred_region
          %p126 = scmp.lt.s32.totalorder %s12, 1
          %s127 = scalar_select %p126, %s12, 1
          %s128 = smul.addr %s127, 54
          %s129 = smul.addr %s128, 4
          %s130 = scalar_lea.vmem %s0, %s129
        $region24: #{tpu_custom_call.1} parent=19 // pred_fallthru
          _
      $region20: #{tpu_custom_call.1} parent=5 // pred_fallthru
        _
      %p131 = scmp.le.s32.totalorder 1, %s12
      %p132 = scmp.lt.s32.totalorder %s12, 3
      %p133 = pnand %p131, %p132
      %p134 = pneg %p133
      // Predicated region
      $region25: #{tpu_custom_call.1} parent=5 // pred_check
        _
      $region26: #{tpu_custom_call.1} parent=5 // pred_check_branch
        %136 = sbr.rel (%p133) target = $region28
      $region27: #{tpu_custom_call.1} parent=5 // pred_region
        %s137 = ssub.s32 %s12, 1
        %p138 = scmp.lt.s32.totalorder %s17, 1
        %s139 = scalar_select %p138, %s17, 1
        %s140 = smul.addr %s139, 54
        %s141 = smul.addr %s140, 4
        %s142 = scalar_lea.vmem %s0, %s141
        %p143 = pneg %p38
        %p144 = pneg %p35
        %p145 = pneg %p59
        %p146 = pneg %p56
        %p147 = pneg %p80
        %p148 = pneg %p77
        %p149 = pneg %p101
        %p150 = pneg %p98
        %p151 = scmp.lt.s32.totalorder %s17, 1
        %s152 = scalar_select %p151, %s17, 1
        %s153 = smul.addr %s152, 54
        %s154 = smul.addr %s153, 4
        %s155 = scalar_lea.vmem %s0, %s154
        %p157 = scmp.eq.s32.totalorder %s17, 0
        // Predicated region
        $region29: #{tpu_custom_call.1} parent=27 // pred_check
          %p158 = pneg %p157
        $region30: #{tpu_custom_call.1} parent=27 // pred_check_branch
          %160 = sbr.rel (%p158) target = $region32
        $region31: #{tpu_custom_call.1} parent=27 // pred_region
          %161 = vst [vmem:[#allocation2] sm:$0x1] 0.0
          %162 = vst [vmem:[#allocation4] sm:$0x1] 0.0
        $region32: #{tpu_custom_call.1} parent=27 // pred_fallthru
          _
        %v163 = vld [vmem:[%s155] sm:$0xf]
        %v164 = vld [vmem:[%s155 + $0x4] sm:$0xf]
        %v165 = vld [vmem:[%s155 + $0xc] sm:$0xf]
        %v166 = vld [vmem:[%s155 + $0x10] sm:$0xf]
        %v167 = vld [vmem:[%s155 + $0x18] sm:$0xf]
        %v168 = vld [vmem:[%s155 + $0x1c] sm:$0xf]
        %v169 = vld [vmem:[%s155 + $0x24] sm:$0xf]
        %v170 = vld [vmem:[%s155 + $0x28] sm:$0xf]
        %v171 = vld [vmem:[%s155 + $0x30] sm:$0xf]
        %v172 = vld [vmem:[%s155 + $0x34] sm:$0xf]
        %v173 = vld [vmem:[%s155 + $0x3c] sm:$0xf]
        %v174 = vld [vmem:[%s155 + $0x40] sm:$0xf]
        %v175 = vld [vmem:[%s155 + $0x48] sm:$0xf]
        %v176 = vld [vmem:[%s155 + $0x4c] sm:$0xf]
        %v177 = vld [vmem:[%s155 + $0x54] sm:$0xf]
        %v178 = vld [vmem:[%s155 + $0x58] sm:$0xf]
        %v179 = vld [vmem:[%s155 + $0x60] sm:$0xf]
        %v180 = vld [vmem:[%s155 + $0x64] sm:$0xf]
        %v181 = vld [vmem:[%s155 + $0x6c] sm:$0xf]
        %v182 = vld [vmem:[%s155 + $0x70] sm:$0xf]
        %v183 = vld [vmem:[%s155 + $0x78] sm:$0xf]
        %v184 = vld [vmem:[%s155 + $0x7c] sm:$0xf]
        %v185 = vld [vmem:[%s155 + $0x84] sm:$0xf]
        %v186 = vld [vmem:[%s155 + $0x88] sm:$0xf]
        %v187 = vld [vmem:[%s155 + $0x90] sm:$0xf]
        %v188 = vld [vmem:[%s155 + $0x94] sm:$0xf]
        %v189 = vld [vmem:[%s155 + $0x9c] sm:$0xf]
        %v190 = vld [vmem:[%s155 + $0xa0] sm:$0xf]
        %v191 = vld [vmem:[%s155 + $0xa8] sm:$0xf]
        %v192 = vld [vmem:[%s155 + $0xac] sm:$0xf]
        %v193 = vld [vmem:[%s155 + $0xb4] sm:$0xf]
        %v194 = vld [vmem:[%s155 + $0xb8] sm:$0xf]
        %v195 = vld [vmem:[%s1] sm:$0x3]
        %v196 = vld [vmem:[%s155 + $0x8] sm:$0x1]
        %v197 = vld [vmem:[%s155 + $0x14] sm:$0x1]
        %v198 = vld [vmem:[%s155 + $0x20] sm:$0x1]
        %v199 = vld [vmem:[%s155 + $0x2c] sm:$0x1]
        %v200 = vld [vmem:[%s155 + $0x38] sm:$0x1]
        %v201 = vld [vmem:[%s155 + $0x44] sm:$0x1]
        %v202 = vld [vmem:[%s155 + $0x50] sm:$0x1]
        %v203 = vld [vmem:[%s155 + $0x5c] sm:$0x1]
        %v204 = vld [vmem:[%s155 + $0x68] sm:$0x1]
        %v205 = vld [vmem:[%s155 + $0x74] sm:$0x1]
        %v206 = vld [vmem:[%s155 + $0x80] sm:$0x1]
        %v207 = vld [vmem:[%s155 + $0x8c] sm:$0x1]
        %v208 = vld [vmem:[%s155 + $0x98] sm:$0x1]
        %v209 = vld [vmem:[%s155 + $0xa4] sm:$0x1]
        %v210 = vld [vmem:[%s155 + $0xb0] sm:$0x1]
        %v211 = vld [vmem:[%s155 + $0xbc] sm:$0x1]
        %vm212 = vsmask.f32 3328
        %vm213 = vsmask.f32 7440
        %vm214 = vmor %vm212, %vm213
        %v216 = vshrl.u32 %v163, 16
        %v218 = vrot.slane %v216, 4
        %v219 = vshll.u32 %v163, 16
        %v221 = vrot.slane %v219, 5
        %v222 = vor.u32 %v218, %v221
        %v223 = vrot.slane %v222, 4
        %v225 = vshll.u32 %v164, 16
        %v227 = vrot.slane %v225, 5
        %v228 = vsel %vm214, %v223, %v227
        %v229 = vshrl.u32 %v164, 16
        %v231 = vrot.slane %v229, 4
        %v232 = vor.u32 %v231, %v227
        %v233 = vrot.slane %v232, 4
        %v235 = vshll.u32 %v196, 16
        %v237 = vrot.slane %v235, 5
        %v238 = vsel %vm214, %v233, %v237
        %v240 = vshrl.u32 %v165, 16
        %v242 = vrot.slane %v240, 4
        %v243 = vshll.u32 %v165, 16
        %v245 = vrot.slane %v243, 5
        %v246 = vor.u32 %v242, %v245
        %v247 = vrot.slane %v246, 4
        %v249 = vshll.u32 %v166, 16
        %v251 = vrot.slane %v249, 5
        %v252 = vsel %vm214, %v247, %v251
        %v253 = vshrl.u32 %v166, 16
        %v255 = vrot.slane %v253, 4
        %v256 = vor.u32 %v255, %v251
        %v257 = vrot.slane %v256, 4
        %v259 = vshll.u32 %v197, 16
        %v261 = vrot.slane %v259, 5
        %v262 = vsel %vm214, %v257, %v261
        %v264 = vshrl.u32 %v167, 16
        %v266 = vrot.slane %v264, 4
        %v267 = vshll.u32 %v167, 16
        %v269 = vrot.slane %v267, 5
        %v270 = vor.u32 %v266, %v269
        %v271 = vrot.slane %v270, 4
        %v273 = vshll.u32 %v168, 16
        %v275 = vrot.slane %v273, 5
        %v276 = vsel %vm214, %v271, %v275
        %v277 = vshrl.u32 %v168, 16
        %v279 = vrot.slane %v277, 4
        %v280 = vor.u32 %v279, %v275
        %v281 = vrot.slane %v280, 4
        %v283 = vshll.u32 %v198, 16
        %v285 = vrot.slane %v283, 5
        %v286 = vsel %vm214, %v281, %v285
        %v288 = vshrl.u32 %v169, 16
        %v290 = vrot.slane %v288, 4
        %v291 = vshll.u32 %v169, 16
        %v293 = vrot.slane %v291, 5
        %v294 = vor.u32 %v290, %v293
        %v295 = vrot.slane %v294, 4
        %v297 = vshll.u32 %v170, 16
        %v299 = vrot.slane %v297, 5
        %v300 = vsel %vm214, %v295, %v299
        %v301 = vshrl.u32 %v170, 16
        %v303 = vrot.slane %v301, 4
        %v304 = vor.u32 %v303, %v299
        %v305 = vrot.slane %v304, 4
        %v307 = vshll.u32 %v199, 16
        %v309 = vrot.slane %v307, 5
        %v310 = vsel %vm214, %v305, %v309
        %v312 = vshrl.u32 %v171, 16
        %v314 = vrot.slane %v312, 4
        %v315 = vshll.u32 %v171, 16
        %v317 = vrot.slane %v315, 5
        %v318 = vor.u32 %v314, %v317
        %v319 = vrot.slane %v318, 4
        %v321 = vshll.u32 %v172, 16
        %v323 = vrot.slane %v321, 5
        %v324 = vsel %vm214, %v319, %v323
        %v325 = vshrl.u32 %v172, 16
        %v327 = vrot.slane %v325, 4
        %v328 = vor.u32 %v327, %v323
        %v329 = vrot.slane %v328, 4
        %v331 = vshll.u32 %v200, 16
        %v333 = vrot.slane %v331, 5
        %v334 = vsel %vm214, %v329, %v333
        %v336 = vshrl.u32 %v173, 16
        %v338 = vrot.slane %v336, 4
        %v339 = vshll.u32 %v173, 16
        %v341 = vrot.slane %v339, 5
        %v342 = vor.u32 %v338, %v341
        %v343 = vrot.slane %v342, 4
        %v345 = vshll.u32 %v174, 16
        %v347 = vrot.slane %v345, 5
        %v348 = vsel %vm214, %v343, %v347
        %v349 = vshrl.u32 %v174, 16
        %v351 = vrot.slane %v349, 4
        %v352 = vor.u32 %v351, %v347
        %v353 = vrot.slane %v352, 4
        %v355 = vshll.u32 %v201, 16
        %v357 = vrot.slane %v355, 5
        %v358 = vsel %vm214, %v353, %v357
        %v360 = vshrl.u32 %v175, 16
        %v362 = vrot.slane %v360, 4
        %v363 = vshll.u32 %v175, 16
        %v365 = vrot.slane %v363, 5
        %v366 = vor.u32 %v362, %v365
        %v367 = vrot.slane %v366, 4
        %v369 = vshll.u32 %v176, 16
        %v371 = vrot.slane %v369, 5
        %v372 = vsel %vm214, %v367, %v371
        %v373 = vshrl.u32 %v176, 16
        %v375 = vrot.slane %v373, 4
        %v376 = vor.u32 %v375, %v371
        %v377 = vrot.slane %v376, 4
        %v379 = vshll.u32 %v202, 16
        %v381 = vrot.slane %v379, 5
        %v382 = vsel %vm214, %v377, %v381
        %v384 = vshrl.u32 %v177, 16
        %v386 = vrot.slane %v384, 4
        %v387 = vshll.u32 %v177, 16
        %v389 = vrot.slane %v387, 5
        %v390 = vor.u32 %v386, %v389
        %v391 = vrot.slane %v390, 4
        %v393 = vshll.u32 %v178, 16
        %v395 = vrot.slane %v393, 5
        %v396 = vsel %vm214, %v391, %v395
        %v397 = vshrl.u32 %v178, 16
        %v399 = vrot.slane %v397, 4
        %v400 = vor.u32 %v399, %v395
        %v401 = vrot.slane %v400, 4
        %v403 = vshll.u32 %v203, 16
        %v405 = vrot.slane %v403, 5
        %v406 = vsel %vm214, %v401, %v405
        %v408 = vshrl.u32 %v179, 16
        %v410 = vrot.slane %v408, 4
        %v411 = vshll.u32 %v179, 16
        %v413 = vrot.slane %v411, 5
        %v414 = vor.u32 %v410, %v413
        %v415 = vrot.slane %v414, 4
        %v417 = vshll.u32 %v180, 16
        %v419 = vrot.slane %v417, 5
        %v420 = vsel %vm214, %v415, %v419
        %v421 = vshrl.u32 %v180, 16
        %v423 = vrot.slane %v421, 4
        %v424 = vor.u32 %v423, %v419
        %v425 = vrot.slane %v424, 4
        %v427 = vshll.u32 %v204, 16
        %v429 = vrot.slane %v427, 5
        %v430 = vsel %vm214, %v425, %v429
        %v432 = vshrl.u32 %v181, 16
        %v434 = vrot.slane %v432, 4
        %v435 = vshll.u32 %v181, 16
        %v437 = vrot.slane %v435, 5
        %v438 = vor.u32 %v434, %v437
        %v439 = vrot.slane %v438, 4
        %v441 = vshll.u32 %v182, 16
        %v443 = vrot.slane %v441, 5
        %v444 = vsel %vm214, %v439, %v443
        %v445 = vshrl.u32 %v182, 16
        %v447 = vrot.slane %v445, 4
        %v448 = vor.u32 %v447, %v443
        %v449 = vrot.slane %v448, 4
        %v451 = vshll.u32 %v205, 16
        %v453 = vrot.slane %v451, 5
        %v454 = vsel %vm214, %v449, %v453
        %v456 = vshrl.u32 %v183, 16
        %v458 = vrot.slane %v456, 4
        %v459 = vshll.u32 %v183, 16
        %v461 = vrot.slane %v459, 5
        %v462 = vor.u32 %v458, %v461
        %v463 = vrot.slane %v462, 4
        %v465 = vshll.u32 %v184, 16
        %v467 = vrot.slane %v465, 5
        %v468 = vsel %vm214, %v463, %v467
        %v469 = vshrl.u32 %v184, 16
        %v471 = vrot.slane %v469, 4
        %v472 = vor.u32 %v471, %v467
        %v473 = vrot.slane %v472, 4
        %v475 = vshll.u32 %v206, 16
        %v477 = vrot.slane %v475, 5
        %v478 = vsel %vm214, %v473, %v477
        %v480 = vshrl.u32 %v185, 16
        %v482 = vrot.slane %v480, 4
        %v483 = vshll.u32 %v185, 16
        %v485 = vrot.slane %v483, 5
        %v486 = vor.u32 %v482, %v485
        %v487 = vrot.slane %v486, 4
        %v489 = vshll.u32 %v186, 16
        %v491 = vrot.slane %v489, 5
        %v492 = vsel %vm214, %v487, %v491
        %v493 = vshrl.u32 %v186, 16
        %v495 = vrot.slane %v493, 4
        %v496 = vor.u32 %v495, %v491
        %v497 = vrot.slane %v496, 4
        %v499 = vshll.u32 %v207, 16
        %v501 = vrot.slane %v499, 5
        %v502 = vsel %vm214, %v497, %v501
        %v504 = vshrl.u32 %v187, 16
        %v506 = vrot.slane %v504, 4
        %v507 = vshll.u32 %v187, 16
        %v509 = vrot.slane %v507, 5
        %v510 = vor.u32 %v506, %v509
        %v511 = vrot.slane %v510, 4
        %v513 = vshll.u32 %v188, 16
        %v515 = vrot.slane %v513, 5
        %v516 = vsel %vm214, %v511, %v515
        %v517 = vshrl.u32 %v188, 16
        %v519 = vrot.slane %v517, 4
        %v520 = vor.u32 %v519, %v515
        %v521 = vrot.slane %v520, 4
        %v523 = vshll.u32 %v208, 16
        %v525 = vrot.slane %v523, 5
        %v526 = vsel %vm214, %v521, %v525
        %v528 = vshrl.u32 %v189, 16
        %v530 = vrot.slane %v528, 4
        %v531 = vshll.u32 %v189, 16
        %v533 = vrot.slane %v531, 5
        %v534 = vor.u32 %v530, %v533
        %v535 = vrot.slane %v534, 4
        %v537 = vshll.u32 %v190, 16
        %v539 = vrot.slane %v537, 5
        %v540 = vsel %vm214, %v535, %v539
        %v541 = vshrl.u32 %v190, 16
        %v543 = vrot.slane %v541, 4
        %v544 = vor.u32 %v543, %v539
        %v545 = vrot.slane %v544, 4
        %v547 = vshll.u32 %v209, 16
        %v549 = vrot.slane %v547, 5
        %v550 = vsel %vm214, %v545, %v549
        %v552 = vshrl.u32 %v191, 16
        %v554 = vrot.slane %v552, 4
        %v555 = vshll.u32 %v191, 16
        %v557 = vrot.slane %v555, 5
        %v558 = vor.u32 %v554, %v557
        %v559 = vrot.slane %v558, 4
        %v561 = vshll.u32 %v192, 16
        %v563 = vrot.slane %v561, 5
        %v564 = vsel %vm214, %v559, %v563
        %v565 = vshrl.u32 %v192, 16
        %v567 = vrot.slane %v565, 4
        %v568 = vor.u32 %v567, %v563
        %v569 = vrot.slane %v568, 4
        %v571 = vshll.u32 %v210, 16
        %v573 = vrot.slane %v571, 5
        %v574 = vsel %vm214, %v569, %v573
        %v576 = vshrl.u32 %v193, 16
        %v578 = vrot.slane %v576, 4
        %v579 = vshll.u32 %v193, 16
        %v581 = vrot.slane %v579, 5
        %v582 = vor.u32 %v578, %v581
        %v583 = vrot.slane %v582, 4
        %v585 = vshll.u32 %v194, 16
        %v587 = vrot.slane %v585, 5
        %v588 = vsel %vm214, %v583, %v587
        %v589 = vshrl.u32 %v194, 16
        %v591 = vrot.slane %v589, 4
        %v592 = vor.u32 %v591, %v587
        %v593 = vrot.slane %v592, 4
        %v595 = vshll.u32 %v211, 16
        %v597 = vrot.slane %v595, 5
        %v598 = vsel %vm214, %v593, %v597
        %s599 = scalar_lea.vmem %s1, 2
        %v600 = vld [vmem:[%s599] sm:$0x3]
        %v601 = vunpack.c.l.b16 %v228
        %v602 = vunpack.c.l.b16 %v238
        %v603 = vunpack.c.l.b16 %v252
        %v604 = vunpack.c.l.b16 %v262
        %v605 = vunpack.c.l.b16 %v276
        %v606 = vunpack.c.l.b16 %v286
        %v607 = vunpack.c.l.b16 %v300
        %v608 = vunpack.c.l.b16 %v310
        %v609 = vunpack.c.l.b16 %v324
        %v610 = vunpack.c.l.b16 %v334
        %v611 = vunpack.c.l.b16 %v348
        %v612 = vunpack.c.l.b16 %v358
        %v613 = vunpack.c.l.b16 %v372
        %v614 = vunpack.c.l.b16 %v382
        %v615 = vunpack.c.l.b16 %v396
        %v616 = vunpack.c.l.b16 %v406
        %v617 = vunpack.c.l.b16 %v420
        %v618 = vunpack.c.l.b16 %v430
        %v619 = vunpack.c.l.b16 %v444
        %v620 = vunpack.c.l.b16 %v454
        %v621 = vunpack.c.l.b16 %v468
        %v622 = vunpack.c.l.b16 %v478
        %v623 = vunpack.c.l.b16 %v492
        %v624 = vunpack.c.l.b16 %v502
        %v625 = vunpack.c.l.b16 %v516
        %v626 = vunpack.c.l.b16 %v526
        %v627 = vunpack.c.l.b16 %v540
        %v628 = vunpack.c.l.b16 %v550
        %v629 = vunpack.c.l.b16 %v564
        %v630 = vunpack.c.l.b16 %v574
        %v631 = vunpack.c.l.b16 %v588
        %v632 = vunpack.c.l.b16 %v598
        %v633 = vpack.c.b16 %v602, %v601
        %v634 = vpack.c.b16 %v604, %v603
        %v635 = vpack.c.b16 %v606, %v605
        %v636 = vpack.c.b16 %v608, %v607
        %v637 = vpack.c.b16 %v610, %v609
        %v638 = vpack.c.b16 %v612, %v611
        %v639 = vpack.c.b16 %v614, %v613
        %v640 = vpack.c.b16 %v616, %v615
        %v641 = vpack.c.b16 %v618, %v617
        %v642 = vpack.c.b16 %v620, %v619
        %v643 = vpack.c.b16 %v622, %v621
        %v644 = vpack.c.b16 %v624, %v623
        %v645 = vpack.c.b16 %v626, %v625
        %v646 = vpack.c.b16 %v628, %v627
        %v647 = vpack.c.b16 %v630, %v629
        %v648 = vpack.c.b16 %v632, %v631
        %vm649 = vcmask 31744
        %v651 = vsel %vm649, %v633, 0
        %v654 = vsel %vm649, %v634, 0
        %v657 = vsel %vm649, %v635, 0
        %v660 = vsel %vm649, %v636, 0
        %v663 = vsel %vm649, %v637, 0
        %v666 = vsel %vm649, %v638, 0
        %v669 = vsel %vm649, %v639, 0
        %v672 = vsel %vm649, %v640, 0
        %v675 = vsel %vm649, %v641, 0
        %v678 = vsel %vm649, %v642, 0
        %v681 = vsel %vm649, %v643, 0
        %v684 = vsel %vm649, %v644, 0
        %v687 = vsel %vm649, %v645, 0
        %v690 = vsel %vm649, %v646, 0
        %v693 = vsel %vm649, %v647, 0
        %v696 = vsel %vm649, %v648, 0
        %vm698 = vcmask 1041408
        %v700 = vsel %vm698, %v600, 0
        %702 = vmatpush.bf16.msra.mxu0 0
        %703 = vmatpush.bf16.msra.mxu0 0
        %704 = vmatpush.bf16.msra.mxu0 0
        %705 = vmatpush.bf16.msra.mxu0 0
        %706 = vmatpush.bf16.msra.mxu0 0
        %707 = vmatpush.bf16.msra.mxu0 0
        %708 = vmatpush.bf16.msra.mxu0 0
        %709 = vmatpush.bf16.msra.mxu0 %v700
        %710 = vmatmul.bf16.gmra.mxu0 %v651
        %v711 = vpop.f32.mrf.mxu0
        %v712 = vadd.f32 0.0, %v711
        %v713 = vpop.f32.mrf.mxu0
        %v714 = vadd.f32 0.0, %v713
        %715 = vmatmul.bf16.gmra.mxu0 %v654
        %v716 = vpop.f32.mrf.mxu0
        %v717 = vadd.f32 0.0, %v716
        %v718 = vpop.f32.mrf.mxu0
        %v719 = vadd.f32 0.0, %v718
        %720 = vmatmul.bf16.gmra.mxu0 %v657
        %v721 = vpop.f32.mrf.mxu0
        %v722 = vadd.f32 0.0, %v721
        %v723 = vpop.f32.mrf.mxu0
        %v724 = vadd.f32 0.0, %v723
        %725 = vmatmul.bf16.gmra.mxu0 %v660
        %v726 = vpop.f32.mrf.mxu0
        %v727 = vadd.f32 0.0, %v726
        %v728 = vpop.f32.mrf.mxu0
        %v729 = vadd.f32 0.0, %v728
        %730 = vmatmul.bf16.gmra.mxu0 %v663
        %v731 = vpop.f32.mrf.mxu0
        %v732 = vadd.f32 0.0, %v731
        %v733 = vpop.f32.mrf.mxu0
        %v734 = vadd.f32 0.0, %v733
        %735 = vmatmul.bf16.gmra.mxu0 %v666
        %v736 = vpop.f32.mrf.mxu0
        %v737 = vadd.f32 0.0, %v736
        %v738 = vpop.f32.mrf.mxu0
        %v739 = vadd.f32 0.0, %v738
        %740 = vmatmul.bf16.gmra.mxu0 %v669
        %v741 = vpop.f32.mrf.mxu0
        %v742 = vadd.f32 0.0, %v741
        %v743 = vpop.f32.mrf.mxu0
        %v744 = vadd.f32 0.0, %v743
        %745 = vmatmul.bf16.gmra.mxu0 %v672
        %v746 = vpop.f32.mrf.mxu0
        %v747 = vadd.f32 0.0, %v746
        %v748 = vpop.f32.mrf.mxu0
        %v749 = vadd.f32 0.0, %v748
        %750 = vmatmul.bf16.gmra.mxu0 %v675
        %v751 = vpop.f32.mrf.mxu0
        %v752 = vadd.f32 0.0, %v751
        %v753 = vpop.f32.mrf.mxu0
        %v754 = vadd.f32 0.0, %v753
        %755 = vmatmul.bf16.gmra.mxu0 %v678
        %v756 = vpop.f32.mrf.mxu0
        %v757 = vadd.f32 0.0, %v756
        %v758 = vpop.f32.mrf.mxu0
        %v759 = vadd.f32 0.0, %v758
        %760 = vmatmul.bf16.gmra.mxu0 %v681
        %v761 = vpop.f32.mrf.mxu0
        %v762 = vadd.f32 0.0, %v761
        %v763 = vpop.f32.mrf.mxu0
        %v764 = vadd.f32 0.0, %v763
        %765 = vmatmul.bf16.gmra.mxu0 %v684
        %v766 = vpop.f32.mrf.mxu0
        %v767 = vadd.f32 0.0, %v766
        %v768 = vpop.f32.mrf.mxu0
        %v769 = vadd.f32 0.0, %v768
        %770 = vmatmul.bf16.gmra.mxu0 %v687
        %v771 = vpop.f32.mrf.mxu0
        %v772 = vadd.f32 0.0, %v771
        %v773 = vpop.f32.mrf.mxu0
        %v774 = vadd.f32 0.0, %v773
        %775 = vmatmul.bf16.gmra.mxu0 %v690
        %v776 = vpop.f32.mrf.mxu0
        %v777 = vadd.f32 0.0, %v776
        %v778 = vpop.f32.mrf.mxu0
        %v779 = vadd.f32 0.0, %v778
        %780 = vmatmul.bf16.gmra.mxu0 %v693
        %v781 = vpop.f32.mrf.mxu0
        %v782 = vadd.f32 0.0, %v781
        %v783 = vpop.f32.mrf.mxu0
        %v784 = vadd.f32 0.0, %v783
        %785 = vmatmul.bf16.gmra.mxu0 %v696
        %v786 = vpop.f32.mrf.mxu0
        %v787 = vadd.f32 0.0, %v786
        %v788 = vpop.f32.mrf.mxu0
        %v789 = vadd.f32 0.0, %v788
        %790 = vdwg.mxu0
        %v823 = vunpack.c.l.b16 %v163
        %v824 = vunpack.c.l.b16 %v164
        %v825 = vunpack.c.l.b16 %v165
        %v826 = vunpack.c.l.b16 %v166
        %v827 = vunpack.c.l.b16 %v167
        %v828 = vunpack.c.l.b16 %v168
        %v829 = vunpack.c.l.b16 %v169
        %v830 = vunpack.c.l.b16 %v170
        %v831 = vunpack.c.l.b16 %v171
        %v832 = vunpack.c.l.b16 %v172
        %v833 = vunpack.c.l.b16 %v173
        %v834 = vunpack.c.l.b16 %v174
        %v835 = vunpack.c.l.b16 %v175
        %v836 = vunpack.c.l.b16 %v176
        %v837 = vunpack.c.l.b16 %v177
        %v838 = vunpack.c.l.b16 %v178
        %v839 = vunpack.c.l.b16 %v179
        %v840 = vunpack.c.l.b16 %v180
        %v841 = vunpack.c.l.b16 %v181
        %v842 = vunpack.c.l.b16 %v182
        %v843 = vunpack.c.l.b16 %v183
        %v844 = vunpack.c.l.b16 %v184
        %v845 = vunpack.c.l.b16 %v185
        %v846 = vunpack.c.l.b16 %v186
        %v847 = vunpack.c.l.b16 %v187
        %v848 = vunpack.c.l.b16 %v188
        %v849 = vunpack.c.l.b16 %v189
        %v850 = vunpack.c.l.b16 %v190
        %v851 = vunpack.c.l.b16 %v191
        %v852 = vunpack.c.l.b16 %v192
        %v853 = vunpack.c.l.b16 %v193
        %v854 = vunpack.c.l.b16 %v194
        %v855 = vpack.c.b16 %v824, %v823
        %v856 = vpack.c.b16 %v826, %v825
        %v857 = vpack.c.b16 %v828, %v827
        %v858 = vpack.c.b16 %v830, %v829
        %v859 = vpack.c.b16 %v832, %v831
        %v860 = vpack.c.b16 %v834, %v833
        %v861 = vpack.c.b16 %v836, %v835
        %v862 = vpack.c.b16 %v838, %v837
        %v863 = vpack.c.b16 %v840, %v839
        %v864 = vpack.c.b16 %v842, %v841
        %v865 = vpack.c.b16 %v844, %v843
        %v866 = vpack.c.b16 %v846, %v845
        %v867 = vpack.c.b16 %v848, %v847
        %v868 = vpack.c.b16 %v850, %v849
        %v869 = vpack.c.b16 %v852, %v851
        %v870 = vpack.c.b16 %v854, %v853
        %v872 = vsel %vm649, %v855, 0
        %v875 = vsel %vm649, %v856, 0
        %v878 = vsel %vm649, %v857, 0
        %v881 = vsel %vm649, %v858, 0
        %v884 = vsel %vm649, %v859, 0
        %v887 = vsel %vm649, %v860, 0
        %v890 = vsel %vm649, %v861, 0
        %v893 = vsel %vm649, %v862, 0
        %v896 = vsel %vm649, %v863, 0
        %v899 = vsel %vm649, %v864, 0
        %v902 = vsel %vm649, %v865, 0
        %v905 = vsel %vm649, %v866, 0
        %v908 = vsel %vm649, %v867, 0
        %v911 = vsel %vm649, %v868, 0
        %v914 = vsel %vm649, %v869, 0
        %v917 = vsel %vm649, %v870, 0
        %v920 = vsel %vm698, %v195, 0
        %922 = vmatpush.bf16.msra.mxu0 0
        %923 = vmatpush.bf16.msra.mxu0 0
        %924 = vmatpush.bf16.msra.mxu0 0
        %925 = vmatpush.bf16.msra.mxu0 0
        %926 = vmatpush.bf16.msra.mxu0 0
        %927 = vmatpush.bf16.msra.mxu0 0
        %928 = vmatpush.bf16.msra.mxu0 0
        %929 = vmatpush.bf16.msra.mxu0 %v920
        %930 = vmatmul.bf16.gmra.mxu0 %v872
        %v931 = vpop.f32.mrf.mxu0
        %v932 = vadd.f32 %v712, %v931
        %v933 = vpop.f32.mrf.mxu0
        %v934 = vadd.f32 %v714, %v933
        %935 = vmatmul.bf16.gmra.mxu0 %v875
        %v936 = vpop.f32.mrf.mxu0
        %v937 = vadd.f32 %v717, %v936
        %v938 = vpop.f32.mrf.mxu0
        %v939 = vadd.f32 %v719, %v938
        %940 = vmatmul.bf16.gmra.mxu0 %v878
        %v941 = vpop.f32.mrf.mxu0
        %v942 = vadd.f32 %v722, %v941
        %v943 = vpop.f32.mrf.mxu0
        %v944 = vadd.f32 %v724, %v943
        %945 = vmatmul.bf16.gmra.mxu0 %v881
        %v946 = vpop.f32.mrf.mxu0
        %v947 = vadd.f32 %v727, %v946
        %v948 = vpop.f32.mrf.mxu0
        %v949 = vadd.f32 %v729, %v948
        %950 = vmatmul.bf16.gmra.mxu0 %v884
        %v951 = vpop.f32.mrf.mxu0
        %v952 = vadd.f32 %v732, %v951
        %v953 = vpop.f32.mrf.mxu0
        %v954 = vadd.f32 %v734, %v953
        %955 = vmatmul.bf16.gmra.mxu0 %v887
        %v956 = vpop.f32.mrf.mxu0
        %v957 = vadd.f32 %v737, %v956
        %v958 = vpop.f32.mrf.mxu0
        %v959 = vadd.f32 %v739, %v958
        %960 = vmatmul.bf16.gmra.mxu0 %v890
        %v961 = vpop.f32.mrf.mxu0
        %v962 = vadd.f32 %v742, %v961
        %v963 = vpop.f32.mrf.mxu0
        %v964 = vadd.f32 %v744, %v963
        %965 = vmatmul.bf16.gmra.mxu0 %v893
        %v966 = vpop.f32.mrf.mxu0
        %v967 = vadd.f32 %v747, %v966
        %v968 = vpop.f32.mrf.mxu0
        %v969 = vadd.f32 %v749, %v968
        %970 = vmatmul.bf16.gmra.mxu0 %v896
        %v971 = vpop.f32.mrf.mxu0
        %v972 = vadd.f32 %v752, %v971
        %v973 = vpop.f32.mrf.mxu0
        %v974 = vadd.f32 %v754, %v973
        %975 = vmatmul.bf16.gmra.mxu0 %v899
        %v976 = vpop.f32.mrf.mxu0
        %v977 = vadd.f32 %v757, %v976
        %v978 = vpop.f32.mrf.mxu0
        %v979 = vadd.f32 %v759, %v978
        %980 = vmatmul.bf16.gmra.mxu0 %v902
        %v981 = vpop.f32.mrf.mxu0
        %v982 = vadd.f32 %v762, %v981
        %v983 = vpop.f32.mrf.mxu0
        %v984 = vadd.f32 %v764, %v983
        %985 = vmatmul.bf16.gmra.mxu0 %v905
        %v986 = vpop.f32.mrf.mxu0
        %v987 = vadd.f32 %v767, %v986
        %v988 = vpop.f32.mrf.mxu0
        %v989 = vadd.f32 %v769, %v988
        %990 = vmatmul.bf16.gmra.mxu0 %v908
        %v991 = vpop.f32.mrf.mxu0
        %v992 = vadd.f32 %v772, %v991
        %v993 = vpop.f32.mrf.mxu0
        %v994 = vadd.f32 %v774, %v993
        %995 = vmatmul.bf16.gmra.mxu0 %v911
        %v996 = vpop.f32.mrf.mxu0
        %v997 = vadd.f32 %v777, %v996
        %v998 = vpop.f32.mrf.mxu0
        %v999 = vadd.f32 %v779, %v998
        %1000 = vmatmul.bf16.gmra.mxu0 %v914
        %v1001 = vpop.f32.mrf.mxu0
        %v1002 = vadd.f32 %v782, %v1001
        %v1003 = vpop.f32.mrf.mxu0
        %v1004 = vadd.f32 %v784, %v1003
        %1005 = vmatmul.bf16.gmra.mxu0 %v917
        %v1006 = vpop.f32.mrf.mxu0
        %v1007 = vadd.f32 %v787, %v1006
        %v1008 = vpop.f32.mrf.mxu0
        %v1009 = vadd.f32 %v789, %v1008
        %1010 = vdwg.mxu0
        %v1011 = vld [vmem:[%s155] sm:$0xe]
        %v1012 = vld [vmem:[%s155 + $0xc] sm:$0xe]
        %v1013 = vld [vmem:[%s155 + $0x18] sm:$0xe]
        %v1014 = vld [vmem:[%s155 + $0x24] sm:$0xe]
        %v1015 = vld [vmem:[%s155 + $0x30] sm:$0xe]
        %v1016 = vld [vmem:[%s155 + $0x3c] sm:$0xe]
        %v1017 = vld [vmem:[%s155 + $0x48] sm:$0xe]
        %v1018 = vld [vmem:[%s155 + $0x54] sm:$0xe]
        %v1019 = vld [vmem:[%s155 + $0x60] sm:$0xe]
        %v1020 = vld [vmem:[%s155 + $0x6c] sm:$0xe]
        %v1021 = vld [vmem:[%s155 + $0x78] sm:$0xe]
        %v1022 = vld [vmem:[%s155 + $0x84] sm:$0xe]
        %v1023 = vld [vmem:[%s155 + $0x90] sm:$0xe]
        %v1024 = vld [vmem:[%s155 + $0x9c] sm:$0xe]
        %v1025 = vld [vmem:[%s155 + $0xa8] sm:$0xe]
        %v1026 = vld [vmem:[%s155 + $0xb4] sm:$0xe]
        %vm1059 = vcmask 1042432
        %vm1060 = vcmask 1046532
        %vm1061 = vmor %vm1059, %vm1060
        %v1062 = vrot.slane %v1011, 5
        %v1063 = vrot.slane %v1062, 4
        %v1064 = vrot.slane %v164, 5
        %v1065 = vsel %vm1061, %v1063, %v1064
        %v1066 = vrot.slane %v1064, 4
        %v1067 = vrot.slane %v196, 5
        %v1068 = vsel %vm1061, %v1066, %v1067
        %v1069 = vrot.slane %v1012, 5
        %v1070 = vrot.slane %v1069, 4
        %v1071 = vrot.slane %v166, 5
        %v1072 = vsel %vm1061, %v1070, %v1071
        %v1073 = vrot.slane %v1071, 4
        %v1074 = vrot.slane %v197, 5
        %v1075 = vsel %vm1061, %v1073, %v1074
        %v1076 = vrot.slane %v1013, 5
        %v1077 = vrot.slane %v1076, 4
        %v1078 = vrot.slane %v168, 5
        %v1079 = vsel %vm1061, %v1077, %v1078
        %v1080 = vrot.slane %v1078, 4
        %v1081 = vrot.slane %v198, 5
        %v1082 = vsel %vm1061, %v1080, %v1081
        %v1083 = vrot.slane %v1014, 5
        %v1084 = vrot.slane %v1083, 4
        %v1085 = vrot.slane %v170, 5
        %v1086 = vsel %vm1061, %v1084, %v1085
        %v1087 = vrot.slane %v1085, 4
        %v1088 = vrot.slane %v199, 5
        %v1089 = vsel %vm1061, %v1087, %v1088
        %v1090 = vrot.slane %v1015, 5
        %v1091 = vrot.slane %v1090, 4
        %v1092 = vrot.slane %v172, 5
        %v1093 = vsel %vm1061, %v1091, %v1092
        %v1094 = vrot.slane %v1092, 4
        %v1095 = vrot.slane %v200, 5
        %v1096 = vsel %vm1061, %v1094, %v1095
        %v1097 = vrot.slane %v1016, 5
        %v1098 = vrot.slane %v1097, 4
        %v1099 = vrot.slane %v174, 5
        %v1100 = vsel %vm1061, %v1098, %v1099
        %v1101 = vrot.slane %v1099, 4
        %v1102 = vrot.slane %v201, 5
        %v1103 = vsel %vm1061, %v1101, %v1102
        %v1104 = vrot.slane %v1017, 5
        %v1105 = vrot.slane %v1104, 4
        %v1106 = vrot.slane %v176, 5
        %v1107 = vsel %vm1061, %v1105, %v1106
        %v1108 = vrot.slane %v1106, 4
        %v1109 = vrot.slane %v202, 5
        %v1110 = vsel %vm1061, %v1108, %v1109
        %v1111 = vrot.slane %v1018, 5
        %v1112 = vrot.slane %v1111, 4
        %v1113 = vrot.slane %v178, 5
        %v1114 = vsel %vm1061, %v1112, %v1113
        %v1115 = vrot.slane %v1113, 4
        %v1116 = vrot.slane %v203, 5
        %v1117 = vsel %vm1061, %v1115, %v1116
        %v1118 = vrot.slane %v1019, 5
        %v1119 = vrot.slane %v1118, 4
        %v1120 = vrot.slane %v180, 5
        %v1121 = vsel %vm1061, %v1119, %v1120
        %v1122 = vrot.slane %v1120, 4
        %v1123 = vrot.slane %v204, 5
        %v1124 = vsel %vm1061, %v1122, %v1123
        %v1125 = vrot.slane %v1020, 5
        %v1126 = vrot.slane %v1125, 4
        %v1127 = vrot.slane %v182, 5
        %v1128 = vsel %vm1061, %v1126, %v1127
        %v1129 = vrot.slane %v1127, 4
        %v1130 = vrot.slane %v205, 5
        %v1131 = vsel %vm1061, %v1129, %v1130
        %v1132 = vrot.slane %v1021, 5
        %v1133 = vrot.slane %v1132, 4
        %v1134 = vrot.slane %v184, 5
        %v1135 = vsel %vm1061, %v1133, %v1134
        %v1136 = vrot.slane %v1134, 4
        %v1137 = vrot.slane %v206, 5
        %v1138 = vsel %vm1061, %v1136, %v1137
        %v1139 = vrot.slane %v1022, 5
        %v1140 = vrot.slane %v1139, 4
        %v1141 = vrot.slane %v186, 5
        %v1142 = vsel %vm1061, %v1140, %v1141
        %v1143 = vrot.slane %v1141, 4
        %v1144 = vrot.slane %v207, 5
        %v1145 = vsel %vm1061, %v1143, %v1144
        %v1146 = vrot.slane %v1023, 5
        %v1147 = vrot.slane %v1146, 4
        %v1148 = vrot.slane %v188, 5
        %v1149 = vsel %vm1061, %v1147, %v1148
        %v1150 = vrot.slane %v1148, 4
        %v1151 = vrot.slane %v208, 5
        %v1152 = vsel %vm1061, %v1150, %v1151
        %v1153 = vrot.slane %v1024, 5
        %v1154 = vrot.slane %v1153, 4
        %v1155 = vrot.slane %v190, 5
        %v1156 = vsel %vm1061, %v1154, %v1155
        %v1157 = vrot.slane %v1155, 4
        %v1158 = vrot.slane %v209, 5
        %v1159 = vsel %vm1061, %v1157, %v1158
        %v1160 = vrot.slane %v1025, 5
        %v1161 = vrot.slane %v1160, 4
        %v1162 = vrot.slane %v192, 5
        %v1163 = vsel %vm1061, %v1161, %v1162
        %v1164 = vrot.slane %v1162, 4
        %v1165 = vrot.slane %v210, 5
        %v1166 = vsel %vm1061, %v1164, %v1165
        %v1167 = vrot.slane %v1026, 5
        %v1168 = vrot.slane %v1167, 4
        %v1169 = vrot.slane %v194, 5
        %v1170 = vsel %vm1061, %v1168, %v1169
        %v1171 = vrot.slane %v1169, 4
        %v1172 = vrot.slane %v211, 5
        %v1173 = vsel %vm1061, %v1171, %v1172
        %s1174 = scalar_lea.vmem %s1, 4
        %v1175 = vld [vmem:[%s1174] sm:$0x3]
        %v1176 = vunpack.c.l.b16 %v1065
        %v1177 = vunpack.c.l.b16 %v1068
        %v1178 = vunpack.c.l.b16 %v1072
        %v1179 = vunpack.c.l.b16 %v1075
        %v1180 = vunpack.c.l.b16 %v1079
        %v1181 = vunpack.c.l.b16 %v1082
        %v1182 = vunpack.c.l.b16 %v1086
        %v1183 = vunpack.c.l.b16 %v1089
        %v1184 = vunpack.c.l.b16 %v1093
        %v1185 = vunpack.c.l.b16 %v1096
        %v1186 = vunpack.c.l.b16 %v1100
        %v1187 = vunpack.c.l.b16 %v1103
        %v1188 = vunpack.c.l.b16 %v1107
        %v1189 = vunpack.c.l.b16 %v1110
        %v1190 = vunpack.c.l.b16 %v1114
        %v1191 = vunpack.c.l.b16 %v1117
        %v1192 = vunpack.c.l.b16 %v1121
        %v1193 = vunpack.c.l.b16 %v1124
        %v1194 = vunpack.c.l.b16 %v1128
        %v1195 = vunpack.c.l.b16 %v1131
        %v1196 = vunpack.c.l.b16 %v1135
        %v1197 = vunpack.c.l.b16 %v1138
        %v1198 = vunpack.c.l.b16 %v1142
        %v1199 = vunpack.c.l.b16 %v1145
        %v1200 = vunpack.c.l.b16 %v1149
        %v1201 = vunpack.c.l.b16 %v1152
        %v1202 = vunpack.c.l.b16 %v1156
        %v1203 = vunpack.c.l.b16 %v1159
        %v1204 = vunpack.c.l.b16 %v1163
        %v1205 = vunpack.c.l.b16 %v1166
        %v1206 = vunpack.c.l.b16 %v1170
        %v1207 = vunpack.c.l.b16 %v1173
        %v1208 = vpack.c.b16 %v1177, %v1176
        %v1209 = vpack.c.b16 %v1179, %v1178
        %v1210 = vpack.c.b16 %v1181, %v1180
        %v1211 = vpack.c.b16 %v1183, %v1182
        %v1212 = vpack.c.b16 %v1185, %v1184
        %v1213 = vpack.c.b16 %v1187, %v1186
        %v1214 = vpack.c.b16 %v1189, %v1188
        %v1215 = vpack.c.b16 %v1191, %v1190
        %v1216 = vpack.c.b16 %v1193, %v1192
        %v1217 = vpack.c.b16 %v1195, %v1194
        %v1218 = vpack.c.b16 %v1197, %v1196
        %v1219 = vpack.c.b16 %v1199, %v1198
        %v1220 = vpack.c.b16 %v1201, %v1200
        %v1221 = vpack.c.b16 %v1203, %v1202
        %v1222 = vpack.c.b16 %v1205, %v1204
        %v1223 = vpack.c.b16 %v1207, %v1206
        %v1225 = vsel %vm649, %v1208, 0
        %v1228 = vsel %vm649, %v1209, 0
        %v1231 = vsel %vm649, %v1210, 0
        %v1234 = vsel %vm649, %v1211, 0
        %v1237 = vsel %vm649, %v1212, 0
        %v1240 = vsel %vm649, %v1213, 0
        %v1243 = vsel %vm649, %v1214, 0
        %v1246 = vsel %vm649, %v1215, 0
        %v1249 = vsel %vm649, %v1216, 0
        %v1252 = vsel %vm649, %v1217, 0
        %v1255 = vsel %vm649, %v1218, 0
        %v1258 = vsel %vm649, %v1219, 0
        %v1261 = vsel %vm649, %v1220, 0
        %v1264 = vsel %vm649, %v1221, 0
        %v1267 = vsel %vm649, %v1222, 0
        %v1270 = vsel %vm649, %v1223, 0
        %v1273 = vsel %vm698, %v1175, 0
        %1275 = vmatpush.bf16.msra.mxu0 0
        %1276 = vmatpush.bf16.msra.mxu0 0
        %1277 = vmatpush.bf16.msra.mxu0 0
        %1278 = vmatpush.bf16.msra.mxu0 0
        %1279 = vmatpush.bf16.msra.mxu0 0
        %1280 = vmatpush.bf16.msra.mxu0 0
        %1281 = vmatpush.bf16.msra.mxu0 0
        %1282 = vmatpush.bf16.msra.mxu0 %v1273
        %1283 = vmatmul.bf16.gmra.mxu0 %v1225
        %v1284 = vpop.f32.mrf.mxu0
        %v1285 = vadd.f32 0.0, %v1284
        %v1286 = vpop.f32.mrf.mxu0
        %v1287 = vadd.f32 0.0, %v1286
        %1288 = vmatmul.bf16.gmra.mxu0 %v1228
        %v1289 = vpop.f32.mrf.mxu0
        %v1290 = vadd.f32 0.0, %v1289
        %v1291 = vpop.f32.mrf.mxu0
        %v1292 = vadd.f32 0.0, %v1291
        %1293 = vmatmul.bf16.gmra.mxu0 %v1231
        %v1294 = vpop.f32.mrf.mxu0
        %v1295 = vadd.f32 0.0, %v1294
        %v1296 = vpop.f32.mrf.mxu0
        %v1297 = vadd.f32 0.0, %v1296
        %1298 = vmatmul.bf16.gmra.mxu0 %v1234
        %v1299 = vpop.f32.mrf.mxu0
        %v1300 = vadd.f32 0.0, %v1299
        %v1301 = vpop.f32.mrf.mxu0
        %v1302 = vadd.f32 0.0, %v1301
        %1303 = vmatmul.bf16.gmra.mxu0 %v1237
        %v1304 = vpop.f32.mrf.mxu0
        %v1305 = vadd.f32 0.0, %v1304
        %v1306 = vpop.f32.mrf.mxu0
        %v1307 = vadd.f32 0.0, %v1306
        %1308 = vmatmul.bf16.gmra.mxu0 %v1240
        %v1309 = vpop.f32.mrf.mxu0
        %v1310 = vadd.f32 0.0, %v1309
        %v1311 = vpop.f32.mrf.mxu0
        %v1312 = vadd.f32 0.0, %v1311
        %1313 = vmatmul.bf16.gmra.mxu0 %v1243
        %v1314 = vpop.f32.mrf.mxu0
        %v1315 = vadd.f32 0.0, %v1314
        %v1316 = vpop.f32.mrf.mxu0
        %v1317 = vadd.f32 0.0, %v1316
        %1318 = vmatmul.bf16.gmra.mxu0 %v1246
        %v1319 = vpop.f32.mrf.mxu0
        %v1320 = vadd.f32 0.0, %v1319
        %v1321 = vpop.f32.mrf.mxu0
        %v1322 = vadd.f32 0.0, %v1321
        %1323 = vmatmul.bf16.gmra.mxu0 %v1249
        %v1324 = vpop.f32.mrf.mxu0
        %v1325 = vadd.f32 0.0, %v1324
        %v1326 = vpop.f32.mrf.mxu0
        %v1327 = vadd.f32 0.0, %v1326
        %1328 = vmatmul.bf16.gmra.mxu0 %v1252
        %v1329 = vpop.f32.mrf.mxu0
        %v1330 = vadd.f32 0.0, %v1329
        %v1331 = vpop.f32.mrf.mxu0
        %v1332 = vadd.f32 0.0, %v1331
        %1333 = vmatmul.bf16.gmra.mxu0 %v1255
        %v1334 = vpop.f32.mrf.mxu0
        %v1335 = vadd.f32 0.0, %v1334
        %v1336 = vpop.f32.mrf.mxu0
        %v1337 = vadd.f32 0.0, %v1336
        %1338 = vmatmul.bf16.gmra.mxu0 %v1258
        %v1339 = vpop.f32.mrf.mxu0
        %v1340 = vadd.f32 0.0, %v1339
        %v1341 = vpop.f32.mrf.mxu0
        %v1342 = vadd.f32 0.0, %v1341
        %1343 = vmatmul.bf16.gmra.mxu0 %v1261
        %v1344 = vpop.f32.mrf.mxu0
        %v1345 = vadd.f32 0.0, %v1344
        %v1346 = vpop.f32.mrf.mxu0
        %v1347 = vadd.f32 0.0, %v1346
        %1348 = vmatmul.bf16.gmra.mxu0 %v1264
        %v1349 = vpop.f32.mrf.mxu0
        %v1350 = vadd.f32 0.0, %v1349
        %v1351 = vpop.f32.mrf.mxu0
        %v1352 = vadd.f32 0.0, %v1351
        %1353 = vmatmul.bf16.gmra.mxu0 %v1267
        %v1354 = vpop.f32.mrf.mxu0
        %v1355 = vadd.f32 0.0, %v1354
        %v1356 = vpop.f32.mrf.mxu0
        %v1357 = vadd.f32 0.0, %v1356
        %1358 = vmatmul.bf16.gmra.mxu0 %v1270
        %v1359 = vpop.f32.mrf.mxu0
        %v1360 = vadd.f32 0.0, %v1359
        %v1361 = vpop.f32.mrf.mxu0
        %v1362 = vadd.f32 0.0, %v1361
        %1363 = vdwg.mxu0
        %v1364 = vadd.f32 %v932, %v1285
        %v1365 = vadd.f32 %v934, %v1287
        %v1366 = vadd.f32 %v937, %v1290
        %v1367 = vadd.f32 %v939, %v1292
        %v1368 = vadd.f32 %v942, %v1295
        %v1369 = vadd.f32 %v944, %v1297
        %v1370 = vadd.f32 %v947, %v1300
        %v1371 = vadd.f32 %v949, %v1302
        %v1372 = vadd.f32 %v952, %v1305
        %v1373 = vadd.f32 %v954, %v1307
        %v1374 = vadd.f32 %v957, %v1310
        %v1375 = vadd.f32 %v959, %v1312
        %v1376 = vadd.f32 %v962, %v1315
        %v1377 = vadd.f32 %v964, %v1317
        %v1378 = vadd.f32 %v967, %v1320
        %v1379 = vadd.f32 %v969, %v1322
        %v1380 = vadd.f32 %v972, %v1325
        %v1381 = vadd.f32 %v974, %v1327
        %v1382 = vadd.f32 %v977, %v1330
        %v1383 = vadd.f32 %v979, %v1332
        %v1384 = vadd.f32 %v982, %v1335
        %v1385 = vadd.f32 %v984, %v1337
        %v1386 = vadd.f32 %v987, %v1340
        %v1387 = vadd.f32 %v989, %v1342
        %v1388 = vadd.f32 %v992, %v1345
        %v1389 = vadd.f32 %v994, %v1347
        %v1390 = vadd.f32 %v997, %v1350
        %v1391 = vadd.f32 %v999, %v1352
        %v1392 = vadd.f32 %v1002, %v1355
        %v1393 = vadd.f32 %v1004, %v1357
        %v1394 = vadd.f32 %v1007, %v1360
        %v1395 = vadd.f32 %v1009, %v1362
        %s1396 = scalar_lea.vmem %s155, 12
        %v1397 = vld [vmem:[%s1396] sm:$0xf]
        %v1398 = vld [vmem:[%s1396 + $0x4] sm:$0xf]
        %v1399 = vld [vmem:[%s1396 + $0xc] sm:$0xf]
        %v1400 = vld [vmem:[%s1396 + $0x10] sm:$0xf]
        %v1401 = vld [vmem:[%s1396 + $0x18] sm:$0xf]
        %v1402 = vld [vmem:[%s1396 + $0x1c] sm:$0xf]
        %v1403 = vld [vmem:[%s1396 + $0x24] sm:$0xf]
        %v1404 = vld [vmem:[%s1396 + $0x28] sm:$0xf]
        %v1405 = vld [vmem:[%s1396 + $0x30] sm:$0xf]
        %v1406 = vld [vmem:[%s1396 + $0x34] sm:$0xf]
        %v1407 = vld [vmem:[%s1396 + $0x3c] sm:$0xf]
        %v1408 = vld [vmem:[%s1396 + $0x40] sm:$0xf]
        %v1409 = vld [vmem:[%s1396 + $0x48] sm:$0xf]
        %v1410 = vld [vmem:[%s1396 + $0x4c] sm:$0xf]
        %v1411 = vld [vmem:[%s1396 + $0x54] sm:$0xf]
        %v1412 = vld [vmem:[%s1396 + $0x58] sm:$0xf]
        %v1413 = vld [vmem:[%s1396 + $0x60] sm:$0xf]
        %v1414 = vld [vmem:[%s1396 + $0x64] sm:$0xf]
        %v1415 = vld [vmem:[%s1396 + $0x6c] sm:$0xf]
        %v1416 = vld [vmem:[%s1396 + $0x70] sm:$0xf]
        %v1417 = vld [vmem:[%s1396 + $0x78] sm:$0xf]
        %v1418 = vld [vmem:[%s1396 + $0x7c] sm:$0xf]
        %v1419 = vld [vmem:[%s1396 + $0x84] sm:$0xf]
        %v1420 = vld [vmem:[%s1396 + $0x88] sm:$0xf]
        %v1421 = vld [vmem:[%s1396 + $0x90] sm:$0xf]
        %v1422 = vld [vmem:[%s1396 + $0x94] sm:$0xf]
        %v1423 = vld [vmem:[%s1396 + $0x9c] sm:$0xf]
        %v1424 = vld [vmem:[%s1396 + $0xa0] sm:$0xf]
        %v1425 = vld [vmem:[%s1396 + $0xa8] sm:$0xf]
        %v1426 = vld [vmem:[%s1396 + $0xac] sm:$0xf]
        %v1427 = vld [vmem:[%s1396 + $0xb4] sm:$0xf]
        %v1428 = vld [vmem:[%s1396 + $0xb8] sm:$0xf]
        %s1429 = scalar_lea.vmem %s1, 6
        %v1430 = vld [vmem:[%s1429] sm:$0x3]
        %v1463 = vunpack.c.l.b16 %v1397
        %v1464 = vunpack.c.l.b16 %v1398
        %v1465 = vunpack.c.l.b16 %v1399
        %v1466 = vunpack.c.l.b16 %v1400
        %v1467 = vunpack.c.l.b16 %v1401
        %v1468 = vunpack.c.l.b16 %v1402
        %v1469 = vunpack.c.l.b16 %v1403
        %v1470 = vunpack.c.l.b16 %v1404
        %v1471 = vunpack.c.l.b16 %v1405
        %v1472 = vunpack.c.l.b16 %v1406
        %v1473 = vunpack.c.l.b16 %v1407
        %v1474 = vunpack.c.l.b16 %v1408
        %v1475 = vunpack.c.l.b16 %v1409
        %v1476 = vunpack.c.l.b16 %v1410
        %v1477 = vunpack.c.l.b16 %v1411
        %v1478 = vunpack.c.l.b16 %v1412
        %v1479 = vunpack.c.l.b16 %v1413
        %v1480 = vunpack.c.l.b16 %v1414
        %v1481 = vunpack.c.l.b16 %v1415
        %v1482 = vunpack.c.l.b16 %v1416
        %v1483 = vunpack.c.l.b16 %v1417
        %v1484 = vunpack.c.l.b16 %v1418
        %v1485 = vunpack.c.l.b16 %v1419
        %v1486 = vunpack.c.l.b16 %v1420
        %v1487 = vunpack.c.l.b16 %v1421
        %v1488 = vunpack.c.l.b16 %v1422
        %v1489 = vunpack.c.l.b16 %v1423
        %v1490 = vunpack.c.l.b16 %v1424
        %v1491 = vunpack.c.l.b16 %v1425
        %v1492 = vunpack.c.l.b16 %v1426
        %v1493 = vunpack.c.l.b16 %v1427
        %v1494 = vunpack.c.l.b16 %v1428
        %v1495 = vpack.c.b16 %v1464, %v1463
        %v1496 = vpack.c.b16 %v1466, %v1465
        %v1497 = vpack.c.b16 %v1468, %v1467
        %v1498 = vpack.c.b16 %v1470, %v1469
        %v1499 = vpack.c.b16 %v1472, %v1471
        %v1500 = vpack.c.b16 %v1474, %v1473
        %v1501 = vpack.c.b16 %v1476, %v1475
        %v1502 = vpack.c.b16 %v1478, %v1477
        %v1503 = vpack.c.b16 %v1480, %v1479
        %v1504 = vpack.c.b16 %v1482, %v1481
        %v1505 = vpack.c.b16 %v1484, %v1483
        %v1506 = vpack.c.b16 %v1486, %v1485
        %v1507 = vpack.c.b16 %v1488, %v1487
        %v1508 = vpack.c.b16 %v1490, %v1489
        %v1509 = vpack.c.b16 %v1492, %v1491
        %v1510 = vpack.c.b16 %v1494, %v1493
        %v1512 = vsel %vm649, %v1495, 0
        %v1515 = vsel %vm649, %v1496, 0
        %v1518 = vsel %vm649, %v1497, 0
        %v1521 = vsel %vm649, %v1498, 0
        %v1524 = vsel %vm649, %v1499, 0
        %v1527 = vsel %vm649, %v1500, 0
        %v1530 = vsel %vm649, %v1501, 0
        %v1533 = vsel %vm649, %v1502, 0
        %v1536 = vsel %vm649, %v1503, 0
        %v1539 = vsel %vm649, %v1504, 0
        %v1542 = vsel %vm649, %v1505, 0
        %v1545 = vsel %vm649, %v1506, 0
        %v1548 = vsel %vm649, %v1507, 0
        %v1551 = vsel %vm649, %v1508, 0
        %v1554 = vsel %vm649, %v1509, 0
        %v1557 = vsel %vm649, %v1510, 0
        %v1560 = vsel %vm698, %v1430, 0
        %1562 = vmatpush.bf16.msra.mxu0 0
        %1563 = vmatpush.bf16.msra.mxu0 0
        %1564 = vmatpush.bf16.msra.mxu0 0
        %1565 = vmatpush.bf16.msra.mxu0 0
        %1566 = vmatpush.bf16.msra.mxu0 0
        %1567 = vmatpush.bf16.msra.mxu0 0
        %1568 = vmatpush.bf16.msra.mxu0 0
        %1569 = vmatpush.bf16.msra.mxu0 %v1560
        %1570 = vmatmul.bf16.gmra.mxu0 %v1512
        %v1571 = vpop.f32.mrf.mxu0
        %v1572 = vadd.f32 0.0, %v1571
        %v1573 = vpop.f32.mrf.mxu0
        %v1574 = vadd.f32 0.0, %v1573
        %1575 = vmatmul.bf16.gmra.mxu0 %v1515
        %v1576 = vpop.f32.mrf.mxu0
        %v1577 = vadd.f32 0.0, %v1576
        %v1578 = vpop.f32.mrf.mxu0
        %v1579 = vadd.f32 0.0, %v1578
        %1580 = vmatmul.bf16.gmra.mxu0 %v1518
        %v1581 = vpop.f32.mrf.mxu0
        %v1582 = vadd.f32 0.0, %v1581
        %v1583 = vpop.f32.mrf.mxu0
        %v1584 = vadd.f32 0.0, %v1583
        %1585 = vmatmul.bf16.gmra.mxu0 %v1521
        %v1586 = vpop.f32.mrf.mxu0
        %v1587 = vadd.f32 0.0, %v1586
        %v1588 = vpop.f32.mrf.mxu0
        %v1589 = vadd.f32 0.0, %v1588
        %1590 = vmatmul.bf16.gmra.mxu0 %v1524
        %v1591 = vpop.f32.mrf.mxu0
        %v1592 = vadd.f32 0.0, %v1591
        %v1593 = vpop.f32.mrf.mxu0
        %v1594 = vadd.f32 0.0, %v1593
        %1595 = vmatmul.bf16.gmra.mxu0 %v1527
        %v1596 = vpop.f32.mrf.mxu0
        %v1597 = vadd.f32 0.0, %v1596
        %v1598 = vpop.f32.mrf.mxu0
        %v1599 = vadd.f32 0.0, %v1598
        %1600 = vmatmul.bf16.gmra.mxu0 %v1530
        %v1601 = vpop.f32.mrf.mxu0
        %v1602 = vadd.f32 0.0, %v1601
        %v1603 = vpop.f32.mrf.mxu0
        %v1604 = vadd.f32 0.0, %v1603
        %1605 = vmatmul.bf16.gmra.mxu0 %v1533
        %v1606 = vpop.f32.mrf.mxu0
        %v1607 = vadd.f32 0.0, %v1606
        %v1608 = vpop.f32.mrf.mxu0
        %v1609 = vadd.f32 0.0, %v1608
        %1610 = vmatmul.bf16.gmra.mxu0 %v1536
        %v1611 = vpop.f32.mrf.mxu0
        %v1612 = vadd.f32 0.0, %v1611
        %v1613 = vpop.f32.mrf.mxu0
        %v1614 = vadd.f32 0.0, %v1613
        %1615 = vmatmul.bf16.gmra.mxu0 %v1539
        %v1616 = vpop.f32.mrf.mxu0
        %v1617 = vadd.f32 0.0, %v1616
        %v1618 = vpop.f32.mrf.mxu0
        %v1619 = vadd.f32 0.0, %v1618
        %1620 = vmatmul.bf16.gmra.mxu0 %v1542
        %v1621 = vpop.f32.mrf.mxu0
        %v1622 = vadd.f32 0.0, %v1621
        %v1623 = vpop.f32.mrf.mxu0
        %v1624 = vadd.f32 0.0, %v1623
        %1625 = vmatmul.bf16.gmra.mxu0 %v1545
        %v1626 = vpop.f32.mrf.mxu0
        %v1627 = vadd.f32 0.0, %v1626
        %v1628 = vpop.f32.mrf.mxu0
        %v1629 = vadd.f32 0.0, %v1628
        %1630 = vmatmul.bf16.gmra.mxu0 %v1548
        %v1631 = vpop.f32.mrf.mxu0
        %v1632 = vadd.f32 0.0, %v1631
        %v1633 = vpop.f32.mrf.mxu0
        %v1634 = vadd.f32 0.0, %v1633
        %1635 = vmatmul.bf16.gmra.mxu0 %v1551
        %v1636 = vpop.f32.mrf.mxu0
        %v1637 = vadd.f32 0.0, %v1636
        %v1638 = vpop.f32.mrf.mxu0
        %v1639 = vadd.f32 0.0, %v1638
        %1640 = vmatmul.bf16.gmra.mxu0 %v1554
        %v1641 = vpop.f32.mrf.mxu0
        %v1642 = vadd.f32 0.0, %v1641
        %v1643 = vpop.f32.mrf.mxu0
        %v1644 = vadd.f32 0.0, %v1643
        %1645 = vmatmul.bf16.gmra.mxu0 %v1557
        %v1646 = vpop.f32.mrf.mxu0
        %v1647 = vadd.f32 0.0, %v1646
        %v1648 = vpop.f32.mrf.mxu0
        %v1649 = vadd.f32 0.0, %v1648
        %1650 = vdwg.mxu0
        %v1651 = vadd.f32 %v1364, %v1572
        %v1652 = vadd.f32 %v1365, %v1574
        %v1653 = vadd.f32 %v1366, %v1577
        %v1654 = vadd.f32 %v1367, %v1579
        %v1655 = vadd.f32 %v1368, %v1582
        %v1656 = vadd.f32 %v1369, %v1584
        %v1657 = vadd.f32 %v1370, %v1587
        %v1658 = vadd.f32 %v1371, %v1589
        %v1659 = vadd.f32 %v1372, %v1592
        %v1660 = vadd.f32 %v1373, %v1594
        %v1661 = vadd.f32 %v1374, %v1597
        %v1662 = vadd.f32 %v1375, %v1599
        %v1663 = vadd.f32 %v1376, %v1602
        %v1664 = vadd.f32 %v1377, %v1604
        %v1665 = vadd.f32 %v1378, %v1607
        %v1666 = vadd.f32 %v1379, %v1609
        %v1667 = vadd.f32 %v1380, %v1612
        %v1668 = vadd.f32 %v1381, %v1614
        %v1669 = vadd.f32 %v1382, %v1617
        %v1670 = vadd.f32 %v1383, %v1619
        %v1671 = vadd.f32 %v1384, %v1622
        %v1672 = vadd.f32 %v1385, %v1624
        %v1673 = vadd.f32 %v1386, %v1627
        %v1674 = vadd.f32 %v1387, %v1629
        %v1675 = vadd.f32 %v1388, %v1632
        %v1676 = vadd.f32 %v1389, %v1634
        %v1677 = vadd.f32 %v1390, %v1637
        %v1678 = vadd.f32 %v1391, %v1639
        %v1679 = vadd.f32 %v1392, %v1642
        %v1680 = vadd.f32 %v1393, %v1644
        %v1681 = vadd.f32 %v1394, %v1647
        %v1682 = vadd.f32 %v1395, %v1649
        %v1683 = vld [vmem:[%s1396] sm:$0xf]
        %v1684 = vld [vmem:[%s1396 + $0x4] sm:$0xf]
        %v1685 = vld [vmem:[%s1396 + $0x8] sm:$0x1]
        %v1686 = vld [vmem:[%s1396 + $0xc] sm:$0xf]
        %v1687 = vld [vmem:[%s1396 + $0x10] sm:$0xf]
        %v1688 = vld [vmem:[%s1396 + $0x14] sm:$0x1]
        %v1689 = vld [vmem:[%s1396 + $0x18] sm:$0xf]
        %v1690 = vld [vmem:[%s1396 + $0x1c] sm:$0xf]
        %v1691 = vld [vmem:[%s1396 + $0x20] sm:$0x1]
        %v1692 = vld [vmem:[%s1396 + $0x24] sm:$0xf]
        %v1693 = vld [vmem:[%s1396 + $0x28] sm:$0xf]
        %v1694 = vld [vmem:[%s1396 + $0x2c] sm:$0x1]
        %v1695 = vld [vmem:[%s1396 + $0x30] sm:$0xf]
        %v1696 = vld [vmem:[%s1396 + $0x34] sm:$0xf]
        %v1697 = vld [vmem:[%s1396 + $0x38] sm:$0x1]
        %v1698 = vld [vmem:[%s1396 + $0x3c] sm:$0xf]
        %v1699 = vld [vmem:[%s1396 + $0x40] sm:$0xf]
        %v1700 = vld [vmem:[%s1396 + $0x44] sm:$0x1]
        %v1701 = vld [vmem:[%s1396 + $0x48] sm:$0xf]
        %v1702 = vld [vmem:[%s1396 + $0x4c] sm:$0xf]
        %v1703 = vld [vmem:[%s1396 + $0x50] sm:$0x1]
        %v1704 = vld [vmem:[%s1396 + $0x54] sm:$0xf]
        %v1705 = vld [vmem:[%s1396 + $0x58] sm:$0xf]
        %v1706 = vld [vmem:[%s1396 + $0x5c] sm:$0x1]
        %v1707 = vld [vmem:[%s1396 + $0x60] sm:$0xf]
        %v1708 = vld [vmem:[%s1396 + $0x64] sm:$0xf]
        %v1709 = vld [vmem:[%s1396 + $0x68] sm:$0x1]
        %v1710 = vld [vmem:[%s1396 + $0x6c] sm:$0xf]
        %v1711 = vld [vmem:[%s1396 + $0x70] sm:$0xf]
        %v1712 = vld [vmem:[%s1396 + $0x74] sm:$0x1]
        %v1713 = vld [vmem:[%s1396 + $0x78] sm:$0xf]
        %v1714 = vld [vmem:[%s1396 + $0x7c] sm:$0xf]
        %v1715 = vld [vmem:[%s1396 + $0x80] sm:$0x1]
        %v1716 = vld [vmem:[%s1396 + $0x84] sm:$0xf]
        %v1717 = vld [vmem:[%s1396 + $0x88] sm:$0xf]
        %v1718 = vld [vmem:[%s1396 + $0x8c] sm:$0x1]
        %v1719 = vld [vmem:[%s1396 + $0x90] sm:$0xf]
        %v1720 = vld [vmem:[%s1396 + $0x94] sm:$0xf]
        %v1721 = vld [vmem:[%s1396 + $0x98] sm:$0x1]
        %v1722 = vld [vmem:[%s1396 + $0x9c] sm:$0xf]
        %v1723 = vld [vmem:[%s1396 + $0xa0] sm:$0xf]
        %v1724 = vld [vmem:[%s1396 + $0xa4] sm:$0x1]
        %v1725 = vld [vmem:[%s1396 + $0xa8] sm:$0xf]
        %v1726 = vld [vmem:[%s1396 + $0xac] sm:$0xf]
        %v1727 = vld [vmem:[%s1396 + $0xb0] sm:$0x1]
        %v1728 = vld [vmem:[%s1396 + $0xb4] sm:$0xf]
        %v1729 = vld [vmem:[%s1396 + $0xb8] sm:$0xf]
        %v1730 = vld [vmem:[%s1396 + $0xbc] sm:$0x1]
        %v1732 = vshrl.u32 %v1683, 16
        %v1734 = vrot.slane %v1732, 4
        %v1735 = vshll.u32 %v1683, 16
        %v1737 = vrot.slane %v1735, 5
        %v1738 = vor.u32 %v1734, %v1737
        %v1739 = vrot.slane %v1738, 4
        %v1741 = vshll.u32 %v1684, 16
        %v1743 = vrot.slane %v1741, 5
        %v1744 = vsel %vm214, %v1739, %v1743
        %v1745 = vshrl.u32 %v1684, 16
        %v1747 = vrot.slane %v1745, 4
        %v1748 = vor.u32 %v1747, %v1743
        %v1749 = vrot.slane %v1748, 4
        %v1751 = vshll.u32 %v1685, 16
        %v1753 = vrot.slane %v1751, 5
        %v1754 = vsel %vm214, %v1749, %v1753
        %v1756 = vshrl.u32 %v1686, 16
        %v1758 = vrot.slane %v1756, 4
        %v1759 = vshll.u32 %v1686, 16
        %v1761 = vrot.slane %v1759, 5
        %v1762 = vor.u32 %v1758, %v1761
        %v1763 = vrot.slane %v1762, 4
        %v1765 = vshll.u32 %v1687, 16
        %v1767 = vrot.slane %v1765, 5
        %v1768 = vsel %vm214, %v1763, %v1767
        %v1769 = vshrl.u32 %v1687, 16
        %v1771 = vrot.slane %v1769, 4
        %v1772 = vor.u32 %v1771, %v1767
        %v1773 = vrot.slane %v1772, 4
        %v1775 = vshll.u32 %v1688, 16
        %v1777 = vrot.slane %v1775, 5
        %v1778 = vsel %vm214, %v1773, %v1777
        %v1780 = vshrl.u32 %v1689, 16
        %v1782 = vrot.slane %v1780, 4
        %v1783 = vshll.u32 %v1689, 16
        %v1785 = vrot.slane %v1783, 5
        %v1786 = vor.u32 %v1782, %v1785
        %v1787 = vrot.slane %v1786, 4
        %v1789 = vshll.u32 %v1690, 16
        %v1791 = vrot.slane %v1789, 5
        %v1792 = vsel %vm214, %v1787, %v1791
        %v1793 = vshrl.u32 %v1690, 16
        %v1795 = vrot.slane %v1793, 4
        %v1796 = vor.u32 %v1795, %v1791
        %v1797 = vrot.slane %v1796, 4
        %v1799 = vshll.u32 %v1691, 16
        %v1801 = vrot.slane %v1799, 5
        %v1802 = vsel %vm214, %v1797, %v1801
        %v1804 = vshrl.u32 %v1692, 16
        %v1806 = vrot.slane %v1804, 4
        %v1807 = vshll.u32 %v1692, 16
        %v1809 = vrot.slane %v1807, 5
        %v1810 = vor.u32 %v1806, %v1809
        %v1811 = vrot.slane %v1810, 4
        %v1813 = vshll.u32 %v1693, 16
        %v1815 = vrot.slane %v1813, 5
        %v1816 = vsel %vm214, %v1811, %v1815
        %v1817 = vshrl.u32 %v1693, 16
        %v1819 = vrot.slane %v1817, 4
        %v1820 = vor.u32 %v1819, %v1815
        %v1821 = vrot.slane %v1820, 4
        %v1823 = vshll.u32 %v1694, 16
        %v1825 = vrot.slane %v1823, 5
        %v1826 = vsel %vm214, %v1821, %v1825
        %v1828 = vshrl.u32 %v1695, 16
        %v1830 = vrot.slane %v1828, 4
        %v1831 = vshll.u32 %v1695, 16
        %v1833 = vrot.slane %v1831, 5
        %v1834 = vor.u32 %v1830, %v1833
        %v1835 = vrot.slane %v1834, 4
        %v1837 = vshll.u32 %v1696, 16
        %v1839 = vrot.slane %v1837, 5
        %v1840 = vsel %vm214, %v1835, %v1839
        %v1841 = vshrl.u32 %v1696, 16
        %v1843 = vrot.slane %v1841, 4
        %v1844 = vor.u32 %v1843, %v1839
        %v1845 = vrot.slane %v1844, 4
        %v1847 = vshll.u32 %v1697, 16
        %v1849 = vrot.slane %v1847, 5
        %v1850 = vsel %vm214, %v1845, %v1849
        %v1852 = vshrl.u32 %v1698, 16
        %v1854 = vrot.slane %v1852, 4
        %v1855 = vshll.u32 %v1698, 16
        %v1857 = vrot.slane %v1855, 5
        %v1858 = vor.u32 %v1854, %v1857
        %v1859 = vrot.slane %v1858, 4
        %v1861 = vshll.u32 %v1699, 16
        %v1863 = vrot.slane %v1861, 5
        %v1864 = vsel %vm214, %v1859, %v1863
        %v1865 = vshrl.u32 %v1699, 16
        %v1867 = vrot.slane %v1865, 4
        %v1868 = vor.u32 %v1867, %v1863
        %v1869 = vrot.slane %v1868, 4
        %v1871 = vshll.u32 %v1700, 16
        %v1873 = vrot.slane %v1871, 5
        %v1874 = vsel %vm214, %v1869, %v1873
        %v1876 = vshrl.u32 %v1701, 16
        %v1878 = vrot.slane %v1876, 4
        %v1879 = vshll.u32 %v1701, 16
        %v1881 = vrot.slane %v1879, 5
        %v1882 = vor.u32 %v1878, %v1881
        %v1883 = vrot.slane %v1882, 4
        %v1885 = vshll.u32 %v1702, 16
        %v1887 = vrot.slane %v1885, 5
        %v1888 = vsel %vm214, %v1883, %v1887
        %v1889 = vshrl.u32 %v1702, 16
        %v1891 = vrot.slane %v1889, 4
        %v1892 = vor.u32 %v1891, %v1887
        %v1893 = vrot.slane %v1892, 4
        %v1895 = vshll.u32 %v1703, 16
        %v1897 = vrot.slane %v1895, 5
        %v1898 = vsel %vm214, %v1893, %v1897
        %v1900 = vshrl.u32 %v1704, 16
        %v1902 = vrot.slane %v1900, 4
        %v1903 = vshll.u32 %v1704, 16
        %v1905 = vrot.slane %v1903, 5
        %v1906 = vor.u32 %v1902, %v1905
        %v1907 = vrot.slane %v1906, 4
        %v1909 = vshll.u32 %v1705, 16
        %v1911 = vrot.slane %v1909, 5
        %v1912 = vsel %vm214, %v1907, %v1911
        %v1913 = vshrl.u32 %v1705, 16
        %v1915 = vrot.slane %v1913, 4
        %v1916 = vor.u32 %v1915, %v1911
        %v1917 = vrot.slane %v1916, 4
        %v1919 = vshll.u32 %v1706, 16
        %v1921 = vrot.slane %v1919, 5
        %v1922 = vsel %vm214, %v1917, %v1921
        %v1924 = vshrl.u32 %v1707, 16
        %v1926 = vrot.slane %v1924, 4
        %v1927 = vshll.u32 %v1707, 16
        %v1929 = vrot.slane %v1927, 5
        %v1930 = vor.u32 %v1926, %v1929
        %v1931 = vrot.slane %v1930, 4
        %v1933 = vshll.u32 %v1708, 16
        %v1935 = vrot.slane %v1933, 5
        %v1936 = vsel %vm214, %v1931, %v1935
        %v1937 = vshrl.u32 %v1708, 16
        %v1939 = vrot.slane %v1937, 4
        %v1940 = vor.u32 %v1939, %v1935
        %v1941 = vrot.slane %v1940, 4
        %v1943 = vshll.u32 %v1709, 16
        %v1945 = vrot.slane %v1943, 5
        %v1946 = vsel %vm214, %v1941, %v1945
        %v1948 = vshrl.u32 %v1710, 16
        %v1950 = vrot.slane %v1948, 4
        %v1951 = vshll.u32 %v1710, 16
        %v1953 = vrot.slane %v1951, 5
        %v1954 = vor.u32 %v1950, %v1953
        %v1955 = vrot.slane %v1954, 4
        %v1957 = vshll.u32 %v1711, 16
        %v1959 = vrot.slane %v1957, 5
        %v1960 = vsel %vm214, %v1955, %v1959
        %v1961 = vshrl.u32 %v1711, 16
        %v1963 = vrot.slane %v1961, 4
        %v1964 = vor.u32 %v1963, %v1959
        %v1965 = vrot.slane %v1964, 4
        %v1967 = vshll.u32 %v1712, 16
        %v1969 = vrot.slane %v1967, 5
        %v1970 = vsel %vm214, %v1965, %v1969
        %v1972 = vshrl.u32 %v1713, 16
        %v1974 = vrot.slane %v1972, 4
        %v1975 = vshll.u32 %v1713, 16
        %v1977 = vrot.slane %v1975, 5
        %v1978 = vor.u32 %v1974, %v1977
        %v1979 = vrot.slane %v1978, 4
        %v1981 = vshll.u32 %v1714, 16
        %v1983 = vrot.slane %v1981, 5
        %v1984 = vsel %vm214, %v1979, %v1983
        %v1985 = vshrl.u32 %v1714, 16
        %v1987 = vrot.slane %v1985, 4
        %v1988 = vor.u32 %v1987, %v1983
        %v1989 = vrot.slane %v1988, 4
        %v1991 = vshll.u32 %v1715, 16
        %v1993 = vrot.slane %v1991, 5
        %v1994 = vsel %vm214, %v1989, %v1993
        %v1996 = vshrl.u32 %v1716, 16
        %v1998 = vrot.slane %v1996, 4
        %v1999 = vshll.u32 %v1716, 16
        %v2001 = vrot.slane %v1999, 5
        %v2002 = vor.u32 %v1998, %v2001
        %v2003 = vrot.slane %v2002, 4
        %v2005 = vshll.u32 %v1717, 16
        %v2007 = vrot.slane %v2005, 5
        %v2008 = vsel %vm214, %v2003, %v2007
        %v2009 = vshrl.u32 %v1717, 16
        %v2011 = vrot.slane %v2009, 4
        %v2012 = vor.u32 %v2011, %v2007
        %v2013 = vrot.slane %v2012, 4
        %v2015 = vshll.u32 %v1718, 16
        %v2017 = vrot.slane %v2015, 5
        %v2018 = vsel %vm214, %v2013, %v2017
        %v2020 = vshrl.u32 %v1719, 16
        %v2022 = vrot.slane %v2020, 4
        %v2023 = vshll.u32 %v1719, 16
        %v2025 = vrot.slane %v2023, 5
        %v2026 = vor.u32 %v2022, %v2025
        %v2027 = vrot.slane %v2026, 4
        %v2029 = vshll.u32 %v1720, 16
        %v2031 = vrot.slane %v2029, 5
        %v2032 = vsel %vm214, %v2027, %v2031
        %v2033 = vshrl.u32 %v1720, 16
        %v2035 = vrot.slane %v2033, 4
        %v2036 = vor.u32 %v2035, %v2031
        %v2037 = vrot.slane %v2036, 4
        %v2039 = vshll.u32 %v1721, 16
        %v2041 = vrot.slane %v2039, 5
        %v2042 = vsel %vm214, %v2037, %v2041
        %v2044 = vshrl.u32 %v1722, 16
        %v2046 = vrot.slane %v2044, 4
        %v2047 = vshll.u32 %v1722, 16
        %v2049 = vrot.slane %v2047, 5
        %v2050 = vor.u32 %v2046, %v2049
        %v2051 = vrot.slane %v2050, 4
        %v2053 = vshll.u32 %v1723, 16
        %v2055 = vrot.slane %v2053, 5
        %v2056 = vsel %vm214, %v2051, %v2055
        %v2057 = vshrl.u32 %v1723, 16
        %v2059 = vrot.slane %v2057, 4
        %v2060 = vor.u32 %v2059, %v2055
        %v2061 = vrot.slane %v2060, 4
        %v2063 = vshll.u32 %v1724, 16
        %v2065 = vrot.slane %v2063, 5
        %v2066 = vsel %vm214, %v2061, %v2065
        %v2068 = vshrl.u32 %v1725, 16
        %v2070 = vrot.slane %v2068, 4
        %v2071 = vshll.u32 %v1725, 16
        %v2073 = vrot.slane %v2071, 5
        %v2074 = vor.u32 %v2070, %v2073
        %v2075 = vrot.slane %v2074, 4
        %v2077 = vshll.u32 %v1726, 16
        %v2079 = vrot.slane %v2077, 5
        %v2080 = vsel %vm214, %v2075, %v2079
        %v2081 = vshrl.u32 %v1726, 16
        %v2083 = vrot.slane %v2081, 4
        %v2084 = vor.u32 %v2083, %v2079
        %v2085 = vrot.slane %v2084, 4
        %v2087 = vshll.u32 %v1727, 16
        %v2089 = vrot.slane %v2087, 5
        %v2090 = vsel %vm214, %v2085, %v2089
        %v2092 = vshrl.u32 %v1728, 16
        %v2094 = vrot.slane %v2092, 4
        %v2095 = vshll.u32 %v1728, 16
        %v2097 = vrot.slane %v2095, 5
        %v2098 = vor.u32 %v2094, %v2097
        %v2099 = vrot.slane %v2098, 4
        %v2101 = vshll.u32 %v1729, 16
        %v2103 = vrot.slane %v2101, 5
        %v2104 = vsel %vm214, %v2099, %v2103
        %v2105 = vshrl.u32 %v1729, 16
        %v2107 = vrot.slane %v2105, 4
        %v2108 = vor.u32 %v2107, %v2103
        %v2109 = vrot.slane %v2108, 4
        %v2111 = vshll.u32 %v1730, 16
        %v2113 = vrot.slane %v2111, 5
        %v2114 = vsel %vm214, %v2109, %v2113
        %s2115 = scalar_lea.vmem %s1, 8
        %v2116 = vld [vmem:[%s2115] sm:$0x3]
        %v2117 = vunpack.c.l.b16 %v1744
        %v2118 = vunpack.c.l.b16 %v1754
        %v2119 = vunpack.c.l.b16 %v1768
        %v2120 = vunpack.c.l.b16 %v1778
        %v2121 = vunpack.c.l.b16 %v1792
        %v2122 = vunpack.c.l.b16 %v1802
        %v2123 = vunpack.c.l.b16 %v1816
        %v2124 = vunpack.c.l.b16 %v1826
        %v2125 = vunpack.c.l.b16 %v1840
        %v2126 = vunpack.c.l.b16 %v1850
        %v2127 = vunpack.c.l.b16 %v1864
        %v2128 = vunpack.c.l.b16 %v1874
        %v2129 = vunpack.c.l.b16 %v1888
        %v2130 = vunpack.c.l.b16 %v1898
        %v2131 = vunpack.c.l.b16 %v1912
        %v2132 = vunpack.c.l.b16 %v1922
        %v2133 = vunpack.c.l.b16 %v1936
        %v2134 = vunpack.c.l.b16 %v1946
        %v2135 = vunpack.c.l.b16 %v1960
        %v2136 = vunpack.c.l.b16 %v1970
        %v2137 = vunpack.c.l.b16 %v1984
        %v2138 = vunpack.c.l.b16 %v1994
        %v2139 = vunpack.c.l.b16 %v2008
        %v2140 = vunpack.c.l.b16 %v2018
        %v2141 = vunpack.c.l.b16 %v2032
        %v2142 = vunpack.c.l.b16 %v2042
        %v2143 = vunpack.c.l.b16 %v2056
        %v2144 = vunpack.c.l.b16 %v2066
        %v2145 = vunpack.c.l.b16 %v2080
        %v2146 = vunpack.c.l.b16 %v2090
        %v2147 = vunpack.c.l.b16 %v2104
        %v2148 = vunpack.c.l.b16 %v2114
        %v2149 = vpack.c.b16 %v2118, %v2117
        %v2150 = vpack.c.b16 %v2120, %v2119
        %v2151 = vpack.c.b16 %v2122, %v2121
        %v2152 = vpack.c.b16 %v2124, %v2123
        %v2153 = vpack.c.b16 %v2126, %v2125
        %v2154 = vpack.c.b16 %v2128, %v2127
        %v2155 = vpack.c.b16 %v2130, %v2129
        %v2156 = vpack.c.b16 %v2132, %v2131
        %v2157 = vpack.c.b16 %v2134, %v2133
        %v2158 = vpack.c.b16 %v2136, %v2135
        %v2159 = vpack.c.b16 %v2138, %v2137
        %v2160 = vpack.c.b16 %v2140, %v2139
        %v2161 = vpack.c.b16 %v2142, %v2141
        %v2162 = vpack.c.b16 %v2144, %v2143
        %v2163 = vpack.c.b16 %v2146, %v2145
        %v2164 = vpack.c.b16 %v2148, %v2147
        %v2166 = vsel %vm649, %v2149, 0
        %v2169 = vsel %vm649, %v2150, 0
        %v2172 = vsel %vm649, %v2151, 0
        %v2175 = vsel %vm649, %v2152, 0
        %v2178 = vsel %vm649, %v2153, 0
        %v2181 = vsel %vm649, %v2154, 0
        %v2184 = vsel %vm649, %v2155, 0
        %v2187 = vsel %vm649, %v2156, 0
        %v2190 = vsel %vm649, %v2157, 0
        %v2193 = vsel %vm649, %v2158, 0
        %v2196 = vsel %vm649, %v2159, 0
        %v2199 = vsel %vm649, %v2160, 0
        %v2202 = vsel %vm649, %v2161, 0
        %v2205 = vsel %vm649, %v2162, 0
        %v2208 = vsel %vm649, %v2163, 0
        %v2211 = vsel %vm649, %v2164, 0
        %v2214 = vsel %vm698, %v2116, 0
        %2216 = vmatpush.bf16.msra.mxu0 0
        %2217 = vmatpush.bf16.msra.mxu0 0
        %2218 = vmatpush.bf16.msra.mxu0 0
        %2219 = vmatpush.bf16.msra.mxu0 0
        %2220 = vmatpush.bf16.msra.mxu0 0
        %2221 = vmatpush.bf16.msra.mxu0 0
        %2222 = vmatpush.bf16.msra.mxu0 0
        %2223 = vmatpush.bf16.msra.mxu0 %v2214
        %2224 = vmatmul.bf16.gmra.mxu0 %v2166
        %v2225 = vpop.f32.mrf.mxu0
        %v2226 = vadd.f32 0.0, %v2225
        %v2227 = vpop.f32.mrf.mxu0
        %v2228 = vadd.f32 0.0, %v2227
        %2229 = vmatmul.bf16.gmra.mxu0 %v2169
        %v2230 = vpop.f32.mrf.mxu0
        %v2231 = vadd.f32 0.0, %v2230
        %v2232 = vpop.f32.mrf.mxu0
        %v2233 = vadd.f32 0.0, %v2232
        %2234 = vmatmul.bf16.gmra.mxu0 %v2172
        %v2235 = vpop.f32.mrf.mxu0
        %v2236 = vadd.f32 0.0, %v2235
        %v2237 = vpop.f32.mrf.mxu0
        %v2238 = vadd.f32 0.0, %v2237
        %2239 = vmatmul.bf16.gmra.mxu0 %v2175
        %v2240 = vpop.f32.mrf.mxu0
        %v2241 = vadd.f32 0.0, %v2240
        %v2242 = vpop.f32.mrf.mxu0
        %v2243 = vadd.f32 0.0, %v2242
        %2244 = vmatmul.bf16.gmra.mxu0 %v2178
        %v2245 = vpop.f32.mrf.mxu0
        %v2246 = vadd.f32 0.0, %v2245
        %v2247 = vpop.f32.mrf.mxu0
        %v2248 = vadd.f32 0.0, %v2247
        %2249 = vmatmul.bf16.gmra.mxu0 %v2181
        %v2250 = vpop.f32.mrf.mxu0
        %v2251 = vadd.f32 0.0, %v2250
        %v2252 = vpop.f32.mrf.mxu0
        %v2253 = vadd.f32 0.0, %v2252
        %2254 = vmatmul.bf16.gmra.mxu0 %v2184
        %v2255 = vpop.f32.mrf.mxu0
        %v2256 = vadd.f32 0.0, %v2255
        %v2257 = vpop.f32.mrf.mxu0
        %v2258 = vadd.f32 0.0, %v2257
        %2259 = vmatmul.bf16.gmra.mxu0 %v2187
        %v2260 = vpop.f32.mrf.mxu0
        %v2261 = vadd.f32 0.0, %v2260
        %v2262 = vpop.f32.mrf.mxu0
        %v2263 = vadd.f32 0.0, %v2262
        %2264 = vmatmul.bf16.gmra.mxu0 %v2190
        %v2265 = vpop.f32.mrf.mxu0
        %v2266 = vadd.f32 0.0, %v2265
        %v2267 = vpop.f32.mrf.mxu0
        %v2268 = vadd.f32 0.0, %v2267
        %2269 = vmatmul.bf16.gmra.mxu0 %v2193
        %v2270 = vpop.f32.mrf.mxu0
        %v2271 = vadd.f32 0.0, %v2270
        %v2272 = vpop.f32.mrf.mxu0
        %v2273 = vadd.f32 0.0, %v2272
        %2274 = vmatmul.bf16.gmra.mxu0 %v2196
        %v2275 = vpop.f32.mrf.mxu0
        %v2276 = vadd.f32 0.0, %v2275
        %v2277 = vpop.f32.mrf.mxu0
        %v2278 = vadd.f32 0.0, %v2277
        %2279 = vmatmul.bf16.gmra.mxu0 %v2199
        %v2280 = vpop.f32.mrf.mxu0
        %v2281 = vadd.f32 0.0, %v2280
        %v2282 = vpop.f32.mrf.mxu0
        %v2283 = vadd.f32 0.0, %v2282
        %2284 = vmatmul.bf16.gmra.mxu0 %v2202
        %v2285 = vpop.f32.mrf.mxu0
        %v2286 = vadd.f32 0.0, %v2285
        %v2287 = vpop.f32.mrf.mxu0
        %v2288 = vadd.f32 0.0, %v2287
        %2289 = vmatmul.bf16.gmra.mxu0 %v2205
        %v2290 = vpop.f32.mrf.mxu0
        %v2291 = vadd.f32 0.0, %v2290
        %v2292 = vpop.f32.mrf.mxu0
        %v2293 = vadd.f32 0.0, %v2292
        %2294 = vmatmul.bf16.gmra.mxu0 %v2208
        %v2295 = vpop.f32.mrf.mxu0
        %v2296 = vadd.f32 0.0, %v2295
        %v2297 = vpop.f32.mrf.mxu0
        %v2298 = vadd.f32 0.0, %v2297
        %2299 = vmatmul.bf16.gmra.mxu0 %v2211
        %v2300 = vpop.f32.mrf.mxu0
        %v2301 = vadd.f32 0.0, %v2300
        %v2302 = vpop.f32.mrf.mxu0
        %v2303 = vadd.f32 0.0, %v2302
        %2304 = vdwg.mxu0
        %v2305 = vadd.f32 %v1651, %v2226
        %v2306 = vadd.f32 %v1652, %v2228
        %v2307 = vadd.f32 %v1653, %v2231
        %v2308 = vadd.f32 %v1654, %v2233
        %v2309 = vadd.f32 %v1655, %v2236
        %v2310 = vadd.f32 %v1656, %v2238
        %v2311 = vadd.f32 %v1657, %v2241
        %v2312 = vadd.f32 %v1658, %v2243
        %v2313 = vadd.f32 %v1659, %v2246
        %v2314 = vadd.f32 %v1660, %v2248
        %v2315 = vadd.f32 %v1661, %v2251
        %v2316 = vadd.f32 %v1662, %v2253
        %v2317 = vadd.f32 %v1663, %v2256
        %v2318 = vadd.f32 %v1664, %v2258
        %v2319 = vadd.f32 %v1665, %v2261
        %v2320 = vadd.f32 %v1666, %v2263
        %v2321 = vadd.f32 %v1667, %v2266
        %v2322 = vadd.f32 %v1668, %v2268
        %v2323 = vadd.f32 %v1669, %v2271
        %v2324 = vadd.f32 %v1670, %v2273
        %v2325 = vadd.f32 %v1671, %v2276
        %v2326 = vadd.f32 %v1672, %v2278
        %v2327 = vadd.f32 %v1673, %v2281
        %v2328 = vadd.f32 %v1674, %v2283
        %v2329 = vadd.f32 %v1675, %v2286
        %v2330 = vadd.f32 %v1676, %v2288
        %v2331 = vadd.f32 %v1677, %v2291
        %v2332 = vadd.f32 %v1678, %v2293
        %v2333 = vadd.f32 %v1679, %v2296
        %v2334 = vadd.f32 %v1680, %v2298
        %v2335 = vadd.f32 %v1681, %v2301
        %v2336 = vadd.f32 %v1682, %v2303
        %v2337 = vld [vmem:[%s1396] sm:$0xe]
        %v2338 = vld [vmem:[%s1396 + $0xc] sm:$0xe]
        %v2339 = vld [vmem:[%s1396 + $0x18] sm:$0xe]
        %v2340 = vld [vmem:[%s1396 + $0x24] sm:$0xe]
        %v2341 = vld [vmem:[%s1396 + $0x30] sm:$0xe]
        %v2342 = vld [vmem:[%s1396 + $0x3c] sm:$0xe]
        %v2343 = vld [vmem:[%s1396 + $0x48] sm:$0xe]
        %v2344 = vld [vmem:[%s1396 + $0x54] sm:$0xe]
        %v2345 = vld [vmem:[%s1396 + $0x60] sm:$0xe]
        %v2346 = vld [vmem:[%s1396 + $0x6c] sm:$0xe]
        %v2347 = vld [vmem:[%s1396 + $0x78] sm:$0xe]
        %v2348 = vld [vmem:[%s1396 + $0x84] sm:$0xe]
        %v2349 = vld [vmem:[%s1396 + $0x90] sm:$0xe]
        %v2350 = vld [vmem:[%s1396 + $0x9c] sm:$0xe]
        %v2351 = vld [vmem:[%s1396 + $0xa8] sm:$0xe]
        %v2352 = vld [vmem:[%s1396 + $0xb4] sm:$0xe]
        %v2401 = vrot.slane %v2337, 5
        %v2402 = vrot.slane %v2401, 4
        %v2403 = vrot.slane %v1684, 5
        %v2404 = vsel %vm1061, %v2402, %v2403
        %v2405 = vrot.slane %v2403, 4
        %v2406 = vrot.slane %v1685, 5
        %v2407 = vsel %vm1061, %v2405, %v2406
        %v2408 = vrot.slane %v2338, 5
        %v2409 = vrot.slane %v2408, 4
        %v2410 = vrot.slane %v1687, 5
        %v2411 = vsel %vm1061, %v2409, %v2410
        %v2412 = vrot.slane %v2410, 4
        %v2413 = vrot.slane %v1688, 5
        %v2414 = vsel %vm1061, %v2412, %v2413
        %v2415 = vrot.slane %v2339, 5
        %v2416 = vrot.slane %v2415, 4
        %v2417 = vrot.slane %v1690, 5
        %v2418 = vsel %vm1061, %v2416, %v2417
        %v2419 = vrot.slane %v2417, 4
        %v2420 = vrot.slane %v1691, 5
        %v2421 = vsel %vm1061, %v2419, %v2420
        %v2422 = vrot.slane %v2340, 5
        %v2423 = vrot.slane %v2422, 4
        %v2424 = vrot.slane %v1693, 5
        %v2425 = vsel %vm1061, %v2423, %v2424
        %v2426 = vrot.slane %v2424, 4
        %v2427 = vrot.slane %v1694, 5
        %v2428 = vsel %vm1061, %v2426, %v2427
        %v2429 = vrot.slane %v2341, 5
        %v2430 = vrot.slane %v2429, 4
        %v2431 = vrot.slane %v1696, 5
        %v2432 = vsel %vm1061, %v2430, %v2431
        %v2433 = vrot.slane %v2431, 4
        %v2434 = vrot.slane %v1697, 5
        %v2435 = vsel %vm1061, %v2433, %v2434
        %v2436 = vrot.slane %v2342, 5
        %v2437 = vrot.slane %v2436, 4
        %v2438 = vrot.slane %v1699, 5
        %v2439 = vsel %vm1061, %v2437, %v2438
        %v2440 = vrot.slane %v2438, 4
        %v2441 = vrot.slane %v1700, 5
        %v2442 = vsel %vm1061, %v2440, %v2441
        %v2443 = vrot.slane %v2343, 5
        %v2444 = vrot.slane %v2443, 4
        %v2445 = vrot.slane %v1702, 5
        %v2446 = vsel %vm1061, %v2444, %v2445
        %v2447 = vrot.slane %v2445, 4
        %v2448 = vrot.slane %v1703, 5
        %v2449 = vsel %vm1061, %v2447, %v2448
        %v2450 = vrot.slane %v2344, 5
        %v2451 = vrot.slane %v2450, 4
        %v2452 = vrot.slane %v1705, 5
        %v2453 = vsel %vm1061, %v2451, %v2452
        %v2454 = vrot.slane %v2452, 4
        %v2455 = vrot.slane %v1706, 5
        %v2456 = vsel %vm1061, %v2454, %v2455
        %v2457 = vrot.slane %v2345, 5
        %v2458 = vrot.slane %v2457, 4
        %v2459 = vrot.slane %v1708, 5
        %v2460 = vsel %vm1061, %v2458, %v2459
        %v2461 = vrot.slane %v2459, 4
        %v2462 = vrot.slane %v1709, 5
        %v2463 = vsel %vm1061, %v2461, %v2462
        %v2464 = vrot.slane %v2346, 5
        %v2465 = vrot.slane %v2464, 4
        %v2466 = vrot.slane %v1711, 5
        %v2467 = vsel %vm1061, %v2465, %v2466
        %v2468 = vrot.slane %v2466, 4
        %v2469 = vrot.slane %v1712, 5
        %v2470 = vsel %vm1061, %v2468, %v2469
        %v2471 = vrot.slane %v2347, 5
        %v2472 = vrot.slane %v2471, 4
        %v2473 = vrot.slane %v1714, 5
        %v2474 = vsel %vm1061, %v2472, %v2473
        %v2475 = vrot.slane %v2473, 4
        %v2476 = vrot.slane %v1715, 5
        %v2477 = vsel %vm1061, %v2475, %v2476
        %v2478 = vrot.slane %v2348, 5
        %v2479 = vrot.slane %v2478, 4
        %v2480 = vrot.slane %v1717, 5
        %v2481 = vsel %vm1061, %v2479, %v2480
        %v2482 = vrot.slane %v2480, 4
        %v2483 = vrot.slane %v1718, 5
        %v2484 = vsel %vm1061, %v2482, %v2483
        %v2485 = vrot.slane %v2349, 5
        %v2486 = vrot.slane %v2485, 4
        %v2487 = vrot.slane %v1720, 5
        %v2488 = vsel %vm1061, %v2486, %v2487
        %v2489 = vrot.slane %v2487, 4
        %v2490 = vrot.slane %v1721, 5
        %v2491 = vsel %vm1061, %v2489, %v2490
        %v2492 = vrot.slane %v2350, 5
        %v2493 = vrot.slane %v2492, 4
        %v2494 = vrot.slane %v1723, 5
        %v2495 = vsel %vm1061, %v2493, %v2494
        %v2496 = vrot.slane %v2494, 4
        %v2497 = vrot.slane %v1724, 5
        %v2498 = vsel %vm1061, %v2496, %v2497
        %v2499 = vrot.slane %v2351, 5
        %v2500 = vrot.slane %v2499, 4
        %v2501 = vrot.slane %v1726, 5
        %v2502 = vsel %vm1061, %v2500, %v2501
        %v2503 = vrot.slane %v2501, 4
        %v2504 = vrot.slane %v1727, 5
        %v2505 = vsel %vm1061, %v2503, %v2504
        %v2506 = vrot.slane %v2352, 5
        %v2507 = vrot.slane %v2506, 4
        %v2508 = vrot.slane %v1729, 5
        %v2509 = vsel %vm1061, %v2507, %v2508
        %v2510 = vrot.slane %v2508, 4
        %v2511 = vrot.slane %v1730, 5
        %v2512 = vsel %vm1061, %v2510, %v2511
        %s2513 = scalar_lea.vmem %s1, 10
        %v2514 = vld [vmem:[%s2513] sm:$0x3]
        %v2515 = vunpack.c.l.b16 %v2404
        %v2516 = vunpack.c.l.b16 %v2407
        %v2517 = vunpack.c.l.b16 %v2411
        %v2518 = vunpack.c.l.b16 %v2414
        %v2519 = vunpack.c.l.b16 %v2418
        %v2520 = vunpack.c.l.b16 %v2421
        %v2521 = vunpack.c.l.b16 %v2425
        %v2522 = vunpack.c.l.b16 %v2428
        %v2523 = vunpack.c.l.b16 %v2432
        %v2524 = vunpack.c.l.b16 %v2435
        %v2525 = vunpack.c.l.b16 %v2439
        %v2526 = vunpack.c.l.b16 %v2442
        %v2527 = vunpack.c.l.b16 %v2446
        %v2528 = vunpack.c.l.b16 %v2449
        %v2529 = vunpack.c.l.b16 %v2453
        %v2530 = vunpack.c.l.b16 %v2456
        %v2531 = vunpack.c.l.b16 %v2460
        %v2532 = vunpack.c.l.b16 %v2463
        %v2533 = vunpack.c.l.b16 %v2467
        %v2534 = vunpack.c.l.b16 %v2470
        %v2535 = vunpack.c.l.b16 %v2474
        %v2536 = vunpack.c.l.b16 %v2477
        %v2537 = vunpack.c.l.b16 %v2481
        %v2538 = vunpack.c.l.b16 %v2484
        %v2539 = vunpack.c.l.b16 %v2488
        %v2540 = vunpack.c.l.b16 %v2491
        %v2541 = vunpack.c.l.b16 %v2495
        %v2542 = vunpack.c.l.b16 %v2498
        %v2543 = vunpack.c.l.b16 %v2502
        %v2544 = vunpack.c.l.b16 %v2505
        %v2545 = vunpack.c.l.b16 %v2509
        %v2546 = vunpack.c.l.b16 %v2512
        %v2547 = vpack.c.b16 %v2516, %v2515
        %v2548 = vpack.c.b16 %v2518, %v2517
        %v2549 = vpack.c.b16 %v2520, %v2519
        %v2550 = vpack.c.b16 %v2522, %v2521
        %v2551 = vpack.c.b16 %v2524, %v2523
        %v2552 = vpack.c.b16 %v2526, %v2525
        %v2553 = vpack.c.b16 %v2528, %v2527
        %v2554 = vpack.c.b16 %v2530, %v2529
        %v2555 = vpack.c.b16 %v2532, %v2531
        %v2556 = vpack.c.b16 %v2534, %v2533
        %v2557 = vpack.c.b16 %v2536, %v2535
        %v2558 = vpack.c.b16 %v2538, %v2537
        %v2559 = vpack.c.b16 %v2540, %v2539
        %v2560 = vpack.c.b16 %v2542, %v2541
        %v2561 = vpack.c.b16 %v2544, %v2543
        %v2562 = vpack.c.b16 %v2546, %v2545
        %v2564 = vsel %vm649, %v2547, 0
        %v2567 = vsel %vm649, %v2548, 0
        %v2570 = vsel %vm649, %v2549, 0
        %v2573 = vsel %vm649, %v2550, 0
        %v2576 = vsel %vm649, %v2551, 0
        %v2579 = vsel %vm649, %v2552, 0
        %v2582 = vsel %vm649, %v2553, 0
        %v2585 = vsel %vm649, %v2554, 0
        %v2588 = vsel %vm649, %v2555, 0
        %v2591 = vsel %vm649, %v2556, 0
        %v2594 = vsel %vm649, %v2557, 0
        %v2597 = vsel %vm649, %v2558, 0
        %v2600 = vsel %vm649, %v2559, 0
        %v2603 = vsel %vm649, %v2560, 0
        %v2606 = vsel %vm649, %v2561, 0
        %v2609 = vsel %vm649, %v2562, 0
        %v2612 = vsel %vm698, %v2514, 0
        %2614 = vmatpush.bf16.msra.mxu0 0
        %2615 = vmatpush.bf16.msra.mxu0 0
        %2616 = vmatpush.bf16.msra.mxu0 0
        %2617 = vmatpush.bf16.msra.mxu0 0
        %2618 = vmatpush.bf16.msra.mxu0 0
        %2619 = vmatpush.bf16.msra.mxu0 0
        %2620 = vmatpush.bf16.msra.mxu0 0
        %2621 = vmatpush.bf16.msra.mxu0 %v2612
        %2622 = vmatmul.bf16.gmra.mxu0 %v2564
        %v2623 = vpop.f32.mrf.mxu0
        %v2624 = vadd.f32 0.0, %v2623
        %v2625 = vpop.f32.mrf.mxu0
        %v2626 = vadd.f32 0.0, %v2625
        %2627 = vmatmul.bf16.gmra.mxu0 %v2567
        %v2628 = vpop.f32.mrf.mxu0
        %v2629 = vadd.f32 0.0, %v2628
        %v2630 = vpop.f32.mrf.mxu0
        %v2631 = vadd.f32 0.0, %v2630
        %2632 = vmatmul.bf16.gmra.mxu0 %v2570
        %v2633 = vpop.f32.mrf.mxu0
        %v2634 = vadd.f32 0.0, %v2633
        %v2635 = vpop.f32.mrf.mxu0
        %v2636 = vadd.f32 0.0, %v2635
        %2637 = vmatmul.bf16.gmra.mxu0 %v2573
        %v2638 = vpop.f32.mrf.mxu0
        %v2639 = vadd.f32 0.0, %v2638
        %v2640 = vpop.f32.mrf.mxu0
        %v2641 = vadd.f32 0.0, %v2640
        %2642 = vmatmul.bf16.gmra.mxu0 %v2576
        %v2643 = vpop.f32.mrf.mxu0
        %v2644 = vadd.f32 0.0, %v2643
        %v2645 = vpop.f32.mrf.mxu0
        %v2646 = vadd.f32 0.0, %v2645
        %2647 = vmatmul.bf16.gmra.mxu0 %v2579
        %v2648 = vpop.f32.mrf.mxu0
        %v2649 = vadd.f32 0.0, %v2648
        %v2650 = vpop.f32.mrf.mxu0
        %v2651 = vadd.f32 0.0, %v2650
        %2652 = vmatmul.bf16.gmra.mxu0 %v2582
        %v2653 = vpop.f32.mrf.mxu0
        %v2654 = vadd.f32 0.0, %v2653
        %v2655 = vpop.f32.mrf.mxu0
        %v2656 = vadd.f32 0.0, %v2655
        %2657 = vmatmul.bf16.gmra.mxu0 %v2585
        %v2658 = vpop.f32.mrf.mxu0
        %v2659 = vadd.f32 0.0, %v2658
        %v2660 = vpop.f32.mrf.mxu0
        %v2661 = vadd.f32 0.0, %v2660
        %2662 = vmatmul.bf16.gmra.mxu0 %v2588
        %v2663 = vpop.f32.mrf.mxu0
        %v2664 = vadd.f32 0.0, %v2663
        %v2665 = vpop.f32.mrf.mxu0
        %v2666 = vadd.f32 0.0, %v2665
        %2667 = vmatmul.bf16.gmra.mxu0 %v2591
        %v2668 = vpop.f32.mrf.mxu0
        %v2669 = vadd.f32 0.0, %v2668
        %v2670 = vpop.f32.mrf.mxu0
        %v2671 = vadd.f32 0.0, %v2670
        %2672 = vmatmul.bf16.gmra.mxu0 %v2594
        %v2673 = vpop.f32.mrf.mxu0
        %v2674 = vadd.f32 0.0, %v2673
        %v2675 = vpop.f32.mrf.mxu0
        %v2676 = vadd.f32 0.0, %v2675
        %2677 = vmatmul.bf16.gmra.mxu0 %v2597
        %v2678 = vpop.f32.mrf.mxu0
        %v2679 = vadd.f32 0.0, %v2678
        %v2680 = vpop.f32.mrf.mxu0
        %v2681 = vadd.f32 0.0, %v2680
        %2682 = vmatmul.bf16.gmra.mxu0 %v2600
        %v2683 = vpop.f32.mrf.mxu0
        %v2684 = vadd.f32 0.0, %v2683
        %v2685 = vpop.f32.mrf.mxu0
        %v2686 = vadd.f32 0.0, %v2685
        %2687 = vmatmul.bf16.gmra.mxu0 %v2603
        %v2688 = vpop.f32.mrf.mxu0
        %v2689 = vadd.f32 0.0, %v2688
        %v2690 = vpop.f32.mrf.mxu0
        %v2691 = vadd.f32 0.0, %v2690
        %2692 = vmatmul.bf16.gmra.mxu0 %v2606
        %v2693 = vpop.f32.mrf.mxu0
        %v2694 = vadd.f32 0.0, %v2693
        %v2695 = vpop.f32.mrf.mxu0
        %v2696 = vadd.f32 0.0, %v2695
        %2697 = vmatmul.bf16.gmra.mxu0 %v2609
        %v2698 = vpop.f32.mrf.mxu0
        %v2699 = vadd.f32 0.0, %v2698
        %v2700 = vpop.f32.mrf.mxu0
        %v2701 = vadd.f32 0.0, %v2700
        %2702 = vdwg.mxu0
        %v2703 = vadd.f32 %v2305, %v2624
        %v2704 = vadd.f32 %v2306, %v2626
        %v2705 = vadd.f32 %v2307, %v2629
        %v2706 = vadd.f32 %v2308, %v2631
        %v2707 = vadd.f32 %v2309, %v2634
        %v2708 = vadd.f32 %v2310, %v2636
        %v2709 = vadd.f32 %v2311, %v2639
        %v2710 = vadd.f32 %v2312, %v2641
        %v2711 = vadd.f32 %v2313, %v2644
        %v2712 = vadd.f32 %v2314, %v2646
        %v2713 = vadd.f32 %v2315, %v2649
        %v2714 = vadd.f32 %v2316, %v2651
        %v2715 = vadd.f32 %v2317, %v2654
        %v2716 = vadd.f32 %v2318, %v2656
        %v2717 = vadd.f32 %v2319, %v2659
        %v2718 = vadd.f32 %v2320, %v2661
        %v2719 = vadd.f32 %v2321, %v2664
        %v2720 = vadd.f32 %v2322, %v2666
        %v2721 = vadd.f32 %v2323, %v2669
        %v2722 = vadd.f32 %v2324, %v2671
        %v2723 = vadd.f32 %v2325, %v2674
        %v2724 = vadd.f32 %v2326, %v2676
        %v2725 = vadd.f32 %v2327, %v2679
        %v2726 = vadd.f32 %v2328, %v2681
        %v2727 = vadd.f32 %v2329, %v2684
        %v2728 = vadd.f32 %v2330, %v2686
        %v2729 = vadd.f32 %v2331, %v2689
        %v2730 = vadd.f32 %v2332, %v2691
        %v2731 = vadd.f32 %v2333, %v2694
        %v2732 = vadd.f32 %v2334, %v2696
        %v2733 = vadd.f32 %v2335, %v2699
        %v2734 = vadd.f32 %v2336, %v2701
        %s2735 = scalar_lea.vmem %s155, 24
        %v2736 = vld [vmem:[%s2735] sm:$0xf]
        %v2737 = vld [vmem:[%s2735 + $0x4] sm:$0xf]
        %v2738 = vld [vmem:[%s2735 + $0xc] sm:$0xf]
        %v2739 = vld [vmem:[%s2735 + $0x10] sm:$0xf]
        %v2740 = vld [vmem:[%s2735 + $0x18] sm:$0xf]
        %v2741 = vld [vmem:[%s2735 + $0x1c] sm:$0xf]
        %v2742 = vld [vmem:[%s2735 + $0x24] sm:$0xf]
        %v2743 = vld [vmem:[%s2735 + $0x28] sm:$0xf]
        %v2744 = vld [vmem:[%s2735 + $0x30] sm:$0xf]
        %v2745 = vld [vmem:[%s2735 + $0x34] sm:$0xf]
        %v2746 = vld [vmem:[%s2735 + $0x3c] sm:$0xf]
        %v2747 = vld [vmem:[%s2735 + $0x40] sm:$0xf]
        %v2748 = vld [vmem:[%s2735 + $0x48] sm:$0xf]
        %v2749 = vld [vmem:[%s2735 + $0x4c] sm:$0xf]
        %v2750 = vld [vmem:[%s2735 + $0x54] sm:$0xf]
        %v2751 = vld [vmem:[%s2735 + $0x58] sm:$0xf]
        %v2752 = vld [vmem:[%s2735 + $0x60] sm:$0xf]
        %v2753 = vld [vmem:[%s2735 + $0x64] sm:$0xf]
        %v2754 = vld [vmem:[%s2735 + $0x6c] sm:$0xf]
        %v2755 = vld [vmem:[%s2735 + $0x70] sm:$0xf]
        %v2756 = vld [vmem:[%s2735 + $0x78] sm:$0xf]
        %v2757 = vld [vmem:[%s2735 + $0x7c] sm:$0xf]
        %v2758 = vld [vmem:[%s2735 + $0x84] sm:$0xf]
        %v2759 = vld [vmem:[%s2735 + $0x88] sm:$0xf]
        %v2760 = vld [vmem:[%s2735 + $0x90] sm:$0xf]
        %v2761 = vld [vmem:[%s2735 + $0x94] sm:$0xf]
        %v2762 = vld [vmem:[%s2735 + $0x9c] sm:$0xf]
        %v2763 = vld [vmem:[%s2735 + $0xa0] sm:$0xf]
        %v2764 = vld [vmem:[%s2735 + $0xa8] sm:$0xf]
        %v2765 = vld [vmem:[%s2735 + $0xac] sm:$0xf]
        %v2766 = vld [vmem:[%s2735 + $0xb4] sm:$0xf]
        %v2767 = vld [vmem:[%s2735 + $0xb8] sm:$0xf]
        %s2768 = scalar_lea.vmem %s1, 12
        %v2769 = vld [vmem:[%s2768] sm:$0x3]
        %v2802 = vunpack.c.l.b16 %v2736
        %v2803 = vunpack.c.l.b16 %v2737
        %v2804 = vunpack.c.l.b16 %v2738
        %v2805 = vunpack.c.l.b16 %v2739
        %v2806 = vunpack.c.l.b16 %v2740
        %v2807 = vunpack.c.l.b16 %v2741
        %v2808 = vunpack.c.l.b16 %v2742
        %v2809 = vunpack.c.l.b16 %v2743
        %v2810 = vunpack.c.l.b16 %v2744
        %v2811 = vunpack.c.l.b16 %v2745
        %v2812 = vunpack.c.l.b16 %v2746
        %v2813 = vunpack.c.l.b16 %v2747
        %v2814 = vunpack.c.l.b16 %v2748
        %v2815 = vunpack.c.l.b16 %v2749
        %v2816 = vunpack.c.l.b16 %v2750
        %v2817 = vunpack.c.l.b16 %v2751
        %v2818 = vunpack.c.l.b16 %v2752
        %v2819 = vunpack.c.l.b16 %v2753
        %v2820 = vunpack.c.l.b16 %v2754
        %v2821 = vunpack.c.l.b16 %v2755
        %v2822 = vunpack.c.l.b16 %v2756
        %v2823 = vunpack.c.l.b16 %v2757
        %v2824 = vunpack.c.l.b16 %v2758
        %v2825 = vunpack.c.l.b16 %v2759
        %v2826 = vunpack.c.l.b16 %v2760
        %v2827 = vunpack.c.l.b16 %v2761
        %v2828 = vunpack.c.l.b16 %v2762
        %v2829 = vunpack.c.l.b16 %v2763
        %v2830 = vunpack.c.l.b16 %v2764
        %v2831 = vunpack.c.l.b16 %v2765
        %v2832 = vunpack.c.l.b16 %v2766
        %v2833 = vunpack.c.l.b16 %v2767
        %v2834 = vpack.c.b16 %v2803, %v2802
        %v2835 = vpack.c.b16 %v2805, %v2804
        %v2836 = vpack.c.b16 %v2807, %v2806
        %v2837 = vpack.c.b16 %v2809, %v2808
        %v2838 = vpack.c.b16 %v2811, %v2810
        %v2839 = vpack.c.b16 %v2813, %v2812
        %v2840 = vpack.c.b16 %v2815, %v2814
        %v2841 = vpack.c.b16 %v2817, %v2816
        %v2842 = vpack.c.b16 %v2819, %v2818
        %v2843 = vpack.c.b16 %v2821, %v2820
        %v2844 = vpack.c.b16 %v2823, %v2822
        %v2845 = vpack.c.b16 %v2825, %v2824
        %v2846 = vpack.c.b16 %v2827, %v2826
        %v2847 = vpack.c.b16 %v2829, %v2828
        %v2848 = vpack.c.b16 %v2831, %v2830
        %v2849 = vpack.c.b16 %v2833, %v2832
        %v2851 = vsel %vm649, %v2834, 0
        %v2854 = vsel %vm649, %v2835, 0
        %v2857 = vsel %vm649, %v2836, 0
        %v2860 = vsel %vm649, %v2837, 0
        %v2863 = vsel %vm649, %v2838, 0
        %v2866 = vsel %vm649, %v2839, 0
        %v2869 = vsel %vm649, %v2840, 0
        %v2872 = vsel %vm649, %v2841, 0
        %v2875 = vsel %vm649, %v2842, 0
        %v2878 = vsel %vm649, %v2843, 0
        %v2881 = vsel %vm649, %v2844, 0
        %v2884 = vsel %vm649, %v2845, 0
        %v2887 = vsel %vm649, %v2846, 0
        %v2890 = vsel %vm649, %v2847, 0
        %v2893 = vsel %vm649, %v2848, 0
        %v2896 = vsel %vm649, %v2849, 0
        %v2899 = vsel %vm698, %v2769, 0
        %2901 = vmatpush.bf16.msra.mxu0 0
        %2902 = vmatpush.bf16.msra.mxu0 0
        %2903 = vmatpush.bf16.msra.mxu0 0
        %2904 = vmatpush.bf16.msra.mxu0 0
        %2905 = vmatpush.bf16.msra.mxu0 0
        %2906 = vmatpush.bf16.msra.mxu0 0
        %2907 = vmatpush.bf16.msra.mxu0 0
        %2908 = vmatpush.bf16.msra.mxu0 %v2899
        %2909 = vmatmul.bf16.gmra.mxu0 %v2851
        %v2910 = vpop.f32.mrf.mxu0
        %v2911 = vadd.f32 0.0, %v2910
        %v2912 = vpop.f32.mrf.mxu0
        %v2913 = vadd.f32 0.0, %v2912
        %2914 = vmatmul.bf16.gmra.mxu0 %v2854
        %v2915 = vpop.f32.mrf.mxu0
        %v2916 = vadd.f32 0.0, %v2915
        %v2917 = vpop.f32.mrf.mxu0
        %v2918 = vadd.f32 0.0, %v2917
        %2919 = vmatmul.bf16.gmra.mxu0 %v2857
        %v2920 = vpop.f32.mrf.mxu0
        %v2921 = vadd.f32 0.0, %v2920
        %v2922 = vpop.f32.mrf.mxu0
        %v2923 = vadd.f32 0.0, %v2922
        %2924 = vmatmul.bf16.gmra.mxu0 %v2860
        %v2925 = vpop.f32.mrf.mxu0
        %v2926 = vadd.f32 0.0, %v2925
        %v2927 = vpop.f32.mrf.mxu0
        %v2928 = vadd.f32 0.0, %v2927
        %2929 = vmatmul.bf16.gmra.mxu0 %v2863
        %v2930 = vpop.f32.mrf.mxu0
        %v2931 = vadd.f32 0.0, %v2930
        %v2932 = vpop.f32.mrf.mxu0
        %v2933 = vadd.f32 0.0, %v2932
        %2934 = vmatmul.bf16.gmra.mxu0 %v2866
        %v2935 = vpop.f32.mrf.mxu0
        %v2936 = vadd.f32 0.0, %v2935
        %v2937 = vpop.f32.mrf.mxu0
        %v2938 = vadd.f32 0.0, %v2937
        %2939 = vmatmul.bf16.gmra.mxu0 %v2869
        %v2940 = vpop.f32.mrf.mxu0
        %v2941 = vadd.f32 0.0, %v2940
        %v2942 = vpop.f32.mrf.mxu0
        %v2943 = vadd.f32 0.0, %v2942
        %2944 = vmatmul.bf16.gmra.mxu0 %v2872
        %v2945 = vpop.f32.mrf.mxu0
        %v2946 = vadd.f32 0.0, %v2945
        %v2947 = vpop.f32.mrf.mxu0
        %v2948 = vadd.f32 0.0, %v2947
        %2949 = vmatmul.bf16.gmra.mxu0 %v2875
        %v2950 = vpop.f32.mrf.mxu0
        %v2951 = vadd.f32 0.0, %v2950
        %v2952 = vpop.f32.mrf.mxu0
        %v2953 = vadd.f32 0.0, %v2952
        %2954 = vmatmul.bf16.gmra.mxu0 %v2878
        %v2955 = vpop.f32.mrf.mxu0
        %v2956 = vadd.f32 0.0, %v2955
        %v2957 = vpop.f32.mrf.mxu0
        %v2958 = vadd.f32 0.0, %v2957
        %2959 = vmatmul.bf16.gmra.mxu0 %v2881
        %v2960 = vpop.f32.mrf.mxu0
        %v2961 = vadd.f32 0.0, %v2960
        %v2962 = vpop.f32.mrf.mxu0
        %v2963 = vadd.f32 0.0, %v2962
        %2964 = vmatmul.bf16.gmra.mxu0 %v2884
        %v2965 = vpop.f32.mrf.mxu0
        %v2966 = vadd.f32 0.0, %v2965
        %v2967 = vpop.f32.mrf.mxu0
        %v2968 = vadd.f32 0.0, %v2967
        %2969 = vmatmul.bf16.gmra.mxu0 %v2887
        %v2970 = vpop.f32.mrf.mxu0
        %v2971 = vadd.f32 0.0, %v2970
        %v2972 = vpop.f32.mrf.mxu0
        %v2973 = vadd.f32 0.0, %v2972
        %2974 = vmatmul.bf16.gmra.mxu0 %v2890
        %v2975 = vpop.f32.mrf.mxu0
        %v2976 = vadd.f32 0.0, %v2975
        %v2977 = vpop.f32.mrf.mxu0
        %v2978 = vadd.f32 0.0, %v2977
        %2979 = vmatmul.bf16.gmra.mxu0 %v2893
        %v2980 = vpop.f32.mrf.mxu0
        %v2981 = vadd.f32 0.0, %v2980
        %v2982 = vpop.f32.mrf.mxu0
        %v2983 = vadd.f32 0.0, %v2982
        %2984 = vmatmul.bf16.gmra.mxu0 %v2896
        %v2985 = vpop.f32.mrf.mxu0
        %v2986 = vadd.f32 0.0, %v2985
        %v2987 = vpop.f32.mrf.mxu0
        %v2988 = vadd.f32 0.0, %v2987
        %2989 = vdwg.mxu0
        %v2990 = vadd.f32 %v2703, %v2911
        %v2991 = vadd.f32 %v2704, %v2913
        %v2992 = vadd.f32 %v2705, %v2916
        %v2993 = vadd.f32 %v2706, %v2918
        %v2994 = vadd.f32 %v2707, %v2921
        %v2995 = vadd.f32 %v2708, %v2923
        %v2996 = vadd.f32 %v2709, %v2926
        %v2997 = vadd.f32 %v2710, %v2928
        %v2998 = vadd.f32 %v2711, %v2931
        %v2999 = vadd.f32 %v2712, %v2933
        %v3000 = vadd.f32 %v2713, %v2936
        %v3001 = vadd.f32 %v2714, %v2938
        %v3002 = vadd.f32 %v2715, %v2941
        %v3003 = vadd.f32 %v2716, %v2943
        %v3004 = vadd.f32 %v2717, %v2946
        %v3005 = vadd.f32 %v2718, %v2948
        %v3006 = vadd.f32 %v2719, %v2951
        %v3007 = vadd.f32 %v2720, %v2953
        %v3008 = vadd.f32 %v2721, %v2956
        %v3009 = vadd.f32 %v2722, %v2958
        %v3010 = vadd.f32 %v2723, %v2961
        %v3011 = vadd.f32 %v2724, %v2963
        %v3012 = vadd.f32 %v2725, %v2966
        %v3013 = vadd.f32 %v2726, %v2968
        %v3014 = vadd.f32 %v2727, %v2971
        %v3015 = vadd.f32 %v2728, %v2973
        %v3016 = vadd.f32 %v2729, %v2976
        %v3017 = vadd.f32 %v2730, %v2978
        %v3018 = vadd.f32 %v2731, %v2981
        %v3019 = vadd.f32 %v2732, %v2983
        %v3020 = vadd.f32 %v2733, %v2986
        %v3021 = vadd.f32 %v2734, %v2988
        %v3022 = vld [vmem:[%s2735] sm:$0xf]
        %v3023 = vld [vmem:[%s2735 + $0x4] sm:$0xf]
        %v3024 = vld [vmem:[%s2735 + $0x8] sm:$0x1]
        %v3025 = vld [vmem:[%s2735 + $0xc] sm:$0xf]
        %v3026 = vld [vmem:[%s2735 + $0x10] sm:$0xf]
        %v3027 = vld [vmem:[%s2735 + $0x14] sm:$0x1]
        %v3028 = vld [vmem:[%s2735 + $0x18] sm:$0xf]
        %v3029 = vld [vmem:[%s2735 + $0x1c] sm:$0xf]
        %v3030 = vld [vmem:[%s2735 + $0x20] sm:$0x1]
        %v3031 = vld [vmem:[%s2735 + $0x24] sm:$0xf]
        %v3032 = vld [vmem:[%s2735 + $0x28] sm:$0xf]
        %v3033 = vld [vmem:[%s2735 + $0x2c] sm:$0x1]
        %v3034 = vld [vmem:[%s2735 + $0x30] sm:$0xf]
        %v3035 = vld [vmem:[%s2735 + $0x34] sm:$0xf]
        %v3036 = vld [vmem:[%s2735 + $0x38] sm:$0x1]
        %v3037 = vld [vmem:[%s2735 + $0x3c] sm:$0xf]
        %v3038 = vld [vmem:[%s2735 + $0x40] sm:$0xf]
        %v3039 = vld [vmem:[%s2735 + $0x44] sm:$0x1]
        %v3040 = vld [vmem:[%s2735 + $0x48] sm:$0xf]
        %v3041 = vld [vmem:[%s2735 + $0x4c] sm:$0xf]
        %v3042 = vld [vmem:[%s2735 + $0x50] sm:$0x1]
        %v3043 = vld [vmem:[%s2735 + $0x54] sm:$0xf]
        %v3044 = vld [vmem:[%s2735 + $0x58] sm:$0xf]
        %v3045 = vld [vmem:[%s2735 + $0x5c] sm:$0x1]
        %v3046 = vld [vmem:[%s2735 + $0x60] sm:$0xf]
        %v3047 = vld [vmem:[%s2735 + $0x64] sm:$0xf]
        %v3048 = vld [vmem:[%s2735 + $0x68] sm:$0x1]
        %v3049 = vld [vmem:[%s2735 + $0x6c] sm:$0xf]
        %v3050 = vld [vmem:[%s2735 + $0x70] sm:$0xf]
        %v3051 = vld [vmem:[%s2735 + $0x74] sm:$0x1]
        %v3052 = vld [vmem:[%s2735 + $0x78] sm:$0xf]
        %v3053 = vld [vmem:[%s2735 + $0x7c] sm:$0xf]
        %v3054 = vld [vmem:[%s2735 + $0x80] sm:$0x1]
        %v3055 = vld [vmem:[%s2735 + $0x84] sm:$0xf]
        %v3056 = vld [vmem:[%s2735 + $0x88] sm:$0xf]
        %v3057 = vld [vmem:[%s2735 + $0x8c] sm:$0x1]
        %v3058 = vld [vmem:[%s2735 + $0x90] sm:$0xf]
        %v3059 = vld [vmem:[%s2735 + $0x94] sm:$0xf]
        %v3060 = vld [vmem:[%s2735 + $0x98] sm:$0x1]
        %v3061 = vld [vmem:[%s2735 + $0x9c] sm:$0xf]
        %v3062 = vld [vmem:[%s2735 + $0xa0] sm:$0xf]
        %v3063 = vld [vmem:[%s2735 + $0xa4] sm:$0x1]
        %v3064 = vld [vmem:[%s2735 + $0xa8] sm:$0xf]
        %v3065 = vld [vmem:[%s2735 + $0xac] sm:$0xf]
        %v3066 = vld [vmem:[%s2735 + $0xb0] sm:$0x1]
        %v3067 = vld [vmem:[%s2735 + $0xb4] sm:$0xf]
        %v3068 = vld [vmem:[%s2735 + $0xb8] sm:$0xf]
        %v3069 = vld [vmem:[%s2735 + $0xbc] sm:$0x1]
        %v3071 = vshrl.u32 %v3022, 16
        %v3073 = vrot.slane %v3071, 4
        %v3074 = vshll.u32 %v3022, 16
        %v3076 = vrot.slane %v3074, 5
        %v3077 = vor.u32 %v3073, %v3076
        %v3078 = vrot.slane %v3077, 4
        %v3080 = vshll.u32 %v3023, 16
        %v3082 = vrot.slane %v3080, 5
        %v3083 = vsel %vm214, %v3078, %v3082
        %v3084 = vshrl.u32 %v3023, 16
        %v3086 = vrot.slane %v3084, 4
        %v3087 = vor.u32 %v3086, %v3082
        %v3088 = vrot.slane %v3087, 4
        %v3090 = vshll.u32 %v3024, 16
        %v3092 = vrot.slane %v3090, 5
        %v3093 = vsel %vm214, %v3088, %v3092
        %v3095 = vshrl.u32 %v3025, 16
        %v3097 = vrot.slane %v3095, 4
        %v3098 = vshll.u32 %v3025, 16
        %v3100 = vrot.slane %v3098, 5
        %v3101 = vor.u32 %v3097, %v3100
        %v3102 = vrot.slane %v3101, 4
        %v3104 = vshll.u32 %v3026, 16
        %v3106 = vrot.slane %v3104, 5
        %v3107 = vsel %vm214, %v3102, %v3106
        %v3108 = vshrl.u32 %v3026, 16
        %v3110 = vrot.slane %v3108, 4
        %v3111 = vor.u32 %v3110, %v3106
        %v3112 = vrot.slane %v3111, 4
        %v3114 = vshll.u32 %v3027, 16
        %v3116 = vrot.slane %v3114, 5
        %v3117 = vsel %vm214, %v3112, %v3116
        %v3119 = vshrl.u32 %v3028, 16
        %v3121 = vrot.slane %v3119, 4
        %v3122 = vshll.u32 %v3028, 16
        %v3124 = vrot.slane %v3122, 5
        %v3125 = vor.u32 %v3121, %v3124
        %v3126 = vrot.slane %v3125, 4
        %v3128 = vshll.u32 %v3029, 16
        %v3130 = vrot.slane %v3128, 5
        %v3131 = vsel %vm214, %v3126, %v3130
        %v3132 = vshrl.u32 %v3029, 16
        %v3134 = vrot.slane %v3132, 4
        %v3135 = vor.u32 %v3134, %v3130
        %v3136 = vrot.slane %v3135, 4
        %v3138 = vshll.u32 %v3030, 16
        %v3140 = vrot.slane %v3138, 5
        %v3141 = vsel %vm214, %v3136, %v3140
        %v3143 = vshrl.u32 %v3031, 16
        %v3145 = vrot.slane %v3143, 4
        %v3146 = vshll.u32 %v3031, 16
        %v3148 = vrot.slane %v3146, 5
        %v3149 = vor.u32 %v3145, %v3148
        %v3150 = vrot.slane %v3149, 4
        %v3152 = vshll.u32 %v3032, 16
        %v3154 = vrot.slane %v3152, 5
        %v3155 = vsel %vm214, %v3150, %v3154
        %v3156 = vshrl.u32 %v3032, 16
        %v3158 = vrot.slane %v3156, 4
        %v3159 = vor.u32 %v3158, %v3154
        %v3160 = vrot.slane %v3159, 4
        %v3162 = vshll.u32 %v3033, 16
        %v3164 = vrot.slane %v3162, 5
        %v3165 = vsel %vm214, %v3160, %v3164
        %v3167 = vshrl.u32 %v3034, 16
        %v3169 = vrot.slane %v3167, 4
        %v3170 = vshll.u32 %v3034, 16
        %v3172 = vrot.slane %v3170, 5
        %v3173 = vor.u32 %v3169, %v3172
        %v3174 = vrot.slane %v3173, 4
        %v3176 = vshll.u32 %v3035, 16
        %v3178 = vrot.slane %v3176, 5
        %v3179 = vsel %vm214, %v3174, %v3178
        %v3180 = vshrl.u32 %v3035, 16
        %v3182 = vrot.slane %v3180, 4
        %v3183 = vor.u32 %v3182, %v3178
        %v3184 = vrot.slane %v3183, 4
        %v3186 = vshll.u32 %v3036, 16
        %v3188 = vrot.slane %v3186, 5
        %v3189 = vsel %vm214, %v3184, %v3188
        %v3191 = vshrl.u32 %v3037, 16
        %v3193 = vrot.slane %v3191, 4
        %v3194 = vshll.u32 %v3037, 16
        %v3196 = vrot.slane %v3194, 5
        %v3197 = vor.u32 %v3193, %v3196
        %v3198 = vrot.slane %v3197, 4
        %v3200 = vshll.u32 %v3038, 16
        %v3202 = vrot.slane %v3200, 5
        %v3203 = vsel %vm214, %v3198, %v3202
        %v3204 = vshrl.u32 %v3038, 16
        %v3206 = vrot.slane %v3204, 4
        %v3207 = vor.u32 %v3206, %v3202
        %v3208 = vrot.slane %v3207, 4
        %v3210 = vshll.u32 %v3039, 16
        %v3212 = vrot.slane %v3210, 5
        %v3213 = vsel %vm214, %v3208, %v3212
        %v3215 = vshrl.u32 %v3040, 16
        %v3217 = vrot.slane %v3215, 4
        %v3218 = vshll.u32 %v3040, 16
        %v3220 = vrot.slane %v3218, 5
        %v3221 = vor.u32 %v3217, %v3220
        %v3222 = vrot.slane %v3221, 4
        %v3224 = vshll.u32 %v3041, 16
        %v3226 = vrot.slane %v3224, 5
        %v3227 = vsel %vm214, %v3222, %v3226
        %v3228 = vshrl.u32 %v3041, 16
        %v3230 = vrot.slane %v3228, 4
        %v3231 = vor.u32 %v3230, %v3226
        %v3232 = vrot.slane %v3231, 4
        %v3234 = vshll.u32 %v3042, 16
        %v3236 = vrot.slane %v3234, 5
        %v3237 = vsel %vm214, %v3232, %v3236
        %v3239 = vshrl.u32 %v3043, 16
        %v3241 = vrot.slane %v3239, 4
        %v3242 = vshll.u32 %v3043, 16
        %v3244 = vrot.slane %v3242, 5
        %v3245 = vor.u32 %v3241, %v3244
        %v3246 = vrot.slane %v3245, 4
        %v3248 = vshll.u32 %v3044, 16
        %v3250 = vrot.slane %v3248, 5
        %v3251 = vsel %vm214, %v3246, %v3250
        %v3252 = vshrl.u32 %v3044, 16
        %v3254 = vrot.slane %v3252, 4
        %v3255 = vor.u32 %v3254, %v3250
        %v3256 = vrot.slane %v3255, 4
        %v3258 = vshll.u32 %v3045, 16
        %v3260 = vrot.slane %v3258, 5
        %v3261 = vsel %vm214, %v3256, %v3260
        %v3263 = vshrl.u32 %v3046, 16
        %v3265 = vrot.slane %v3263, 4
        %v3266 = vshll.u32 %v3046, 16
        %v3268 = vrot.slane %v3266, 5
        %v3269 = vor.u32 %v3265, %v3268
        %v3270 = vrot.slane %v3269, 4
        %v3272 = vshll.u32 %v3047, 16
        %v3274 = vrot.slane %v3272, 5
        %v3275 = vsel %vm214, %v3270, %v3274
        %v3276 = vshrl.u32 %v3047, 16
        %v3278 = vrot.slane %v3276, 4
        %v3279 = vor.u32 %v3278, %v3274
        %v3280 = vrot.slane %v3279, 4
        %v3282 = vshll.u32 %v3048, 16
        %v3284 = vrot.slane %v3282, 5
        %v3285 = vsel %vm214, %v3280, %v3284
        %v3287 = vshrl.u32 %v3049, 16
        %v3289 = vrot.slane %v3287, 4
        %v3290 = vshll.u32 %v3049, 16
        %v3292 = vrot.slane %v3290, 5
        %v3293 = vor.u32 %v3289, %v3292
        %v3294 = vrot.slane %v3293, 4
        %v3296 = vshll.u32 %v3050, 16
        %v3298 = vrot.slane %v3296, 5
        %v3299 = vsel %vm214, %v3294, %v3298
        %v3300 = vshrl.u32 %v3050, 16
        %v3302 = vrot.slane %v3300, 4
        %v3303 = vor.u32 %v3302, %v3298
        %v3304 = vrot.slane %v3303, 4
        %v3306 = vshll.u32 %v3051, 16
        %v3308 = vrot.slane %v3306, 5
        %v3309 = vsel %vm214, %v3304, %v3308
        %v3311 = vshrl.u32 %v3052, 16
        %v3313 = vrot.slane %v3311, 4
        %v3314 = vshll.u32 %v3052, 16
        %v3316 = vrot.slane %v3314, 5
        %v3317 = vor.u32 %v3313, %v3316
        %v3318 = vrot.slane %v3317, 4
        %v3320 = vshll.u32 %v3053, 16
        %v3322 = vrot.slane %v3320, 5
        %v3323 = vsel %vm214, %v3318, %v3322
        %v3324 = vshrl.u32 %v3053, 16
        %v3326 = vrot.slane %v3324, 4
        %v3327 = vor.u32 %v3326, %v3322
        %v3328 = vrot.slane %v3327, 4
        %v3330 = vshll.u32 %v3054, 16
        %v3332 = vrot.slane %v3330, 5
        %v3333 = vsel %vm214, %v3328, %v3332
        %v3335 = vshrl.u32 %v3055, 16
        %v3337 = vrot.slane %v3335, 4
        %v3338 = vshll.u32 %v3055, 16
        %v3340 = vrot.slane %v3338, 5
        %v3341 = vor.u32 %v3337, %v3340
        %v3342 = vrot.slane %v3341, 4
        %v3344 = vshll.u32 %v3056, 16
        %v3346 = vrot.slane %v3344, 5
        %v3347 = vsel %vm214, %v3342, %v3346
        %v3348 = vshrl.u32 %v3056, 16
        %v3350 = vrot.slane %v3348, 4
        %v3351 = vor.u32 %v3350, %v3346
        %v3352 = vrot.slane %v3351, 4
        %v3354 = vshll.u32 %v3057, 16
        %v3356 = vrot.slane %v3354, 5
        %v3357 = vsel %vm214, %v3352, %v3356
        %v3359 = vshrl.u32 %v3058, 16
        %v3361 = vrot.slane %v3359, 4
        %v3362 = vshll.u32 %v3058, 16
        %v3364 = vrot.slane %v3362, 5
        %v3365 = vor.u32 %v3361, %v3364
        %v3366 = vrot.slane %v3365, 4
        %v3368 = vshll.u32 %v3059, 16
        %v3370 = vrot.slane %v3368, 5
        %v3371 = vsel %vm214, %v3366, %v3370
        %v3372 = vshrl.u32 %v3059, 16
        %v3374 = vrot.slane %v3372, 4
        %v3375 = vor.u32 %v3374, %v3370
        %v3376 = vrot.slane %v3375, 4
        %v3378 = vshll.u32 %v3060, 16
        %v3380 = vrot.slane %v3378, 5
        %v3381 = vsel %vm214, %v3376, %v3380
        %v3383 = vshrl.u32 %v3061, 16
        %v3385 = vrot.slane %v3383, 4
        %v3386 = vshll.u32 %v3061, 16
        %v3388 = vrot.slane %v3386, 5
        %v3389 = vor.u32 %v3385, %v3388
        %v3390 = vrot.slane %v3389, 4
        %v3392 = vshll.u32 %v3062, 16
        %v3394 = vrot.slane %v3392, 5
        %v3395 = vsel %vm214, %v3390, %v3394
        %v3396 = vshrl.u32 %v3062, 16
        %v3398 = vrot.slane %v3396, 4
        %v3399 = vor.u32 %v3398, %v3394
        %v3400 = vrot.slane %v3399, 4
        %v3402 = vshll.u32 %v3063, 16
        %v3404 = vrot.slane %v3402, 5
        %v3405 = vsel %vm214, %v3400, %v3404
        %v3407 = vshrl.u32 %v3064, 16
        %v3409 = vrot.slane %v3407, 4
        %v3410 = vshll.u32 %v3064, 16
        %v3412 = vrot.slane %v3410, 5
        %v3413 = vor.u32 %v3409, %v3412
        %v3414 = vrot.slane %v3413, 4
        %v3416 = vshll.u32 %v3065, 16
        %v3418 = vrot.slane %v3416, 5
        %v3419 = vsel %vm214, %v3414, %v3418
        %v3420 = vshrl.u32 %v3065, 16
        %v3422 = vrot.slane %v3420, 4
        %v3423 = vor.u32 %v3422, %v3418
        %v3424 = vrot.slane %v3423, 4
        %v3426 = vshll.u32 %v3066, 16
        %v3428 = vrot.slane %v3426, 5
        %v3429 = vsel %vm214, %v3424, %v3428
        %v3431 = vshrl.u32 %v3067, 16
        %v3433 = vrot.slane %v3431, 4
        %v3434 = vshll.u32 %v3067, 16
        %v3436 = vrot.slane %v3434, 5
        %v3437 = vor.u32 %v3433, %v3436
        %v3438 = vrot.slane %v3437, 4
        %v3440 = vshll.u32 %v3068, 16
        %v3442 = vrot.slane %v3440, 5
        %v3443 = vsel %vm214, %v3438, %v3442
        %v3444 = vshrl.u32 %v3068, 16
        %v3446 = vrot.slane %v3444, 4
        %v3447 = vor.u32 %v3446, %v3442
        %v3448 = vrot.slane %v3447, 4
        %v3450 = vshll.u32 %v3069, 16
        %v3452 = vrot.slane %v3450, 5
        %v3453 = vsel %vm214, %v3448, %v3452
        %s3454 = scalar_lea.vmem %s1, 14
        %v3455 = vld [vmem:[%s3454] sm:$0x3]
        %v3456 = vunpack.c.l.b16 %v3083
        %v3457 = vunpack.c.l.b16 %v3093
        %v3458 = vunpack.c.l.b16 %v3107
        %v3459 = vunpack.c.l.b16 %v3117
        %v3460 = vunpack.c.l.b16 %v3131
        %v3461 = vunpack.c.l.b16 %v3141
        %v3462 = vunpack.c.l.b16 %v3155
        %v3463 = vunpack.c.l.b16 %v3165
        %v3464 = vunpack.c.l.b16 %v3179
        %v3465 = vunpack.c.l.b16 %v3189
        %v3466 = vunpack.c.l.b16 %v3203
        %v3467 = vunpack.c.l.b16 %v3213
        %v3468 = vunpack.c.l.b16 %v3227
        %v3469 = vunpack.c.l.b16 %v3237
        %v3470 = vunpack.c.l.b16 %v3251
        %v3471 = vunpack.c.l.b16 %v3261
        %v3472 = vunpack.c.l.b16 %v3275
        %v3473 = vunpack.c.l.b16 %v3285
        %v3474 = vunpack.c.l.b16 %v3299
        %v3475 = vunpack.c.l.b16 %v3309
        %v3476 = vunpack.c.l.b16 %v3323
        %v3477 = vunpack.c.l.b16 %v3333
        %v3478 = vunpack.c.l.b16 %v3347
        %v3479 = vunpack.c.l.b16 %v3357
        %v3480 = vunpack.c.l.b16 %v3371
        %v3481 = vunpack.c.l.b16 %v3381
        %v3482 = vunpack.c.l.b16 %v3395
        %v3483 = vunpack.c.l.b16 %v3405
        %v3484 = vunpack.c.l.b16 %v3419
        %v3485 = vunpack.c.l.b16 %v3429
        %v3486 = vunpack.c.l.b16 %v3443
        %v3487 = vunpack.c.l.b16 %v3453
        %v3488 = vpack.c.b16 %v3457, %v3456
        %v3489 = vpack.c.b16 %v3459, %v3458
        %v3490 = vpack.c.b16 %v3461, %v3460
        %v3491 = vpack.c.b16 %v3463, %v3462
        %v3492 = vpack.c.b16 %v3465, %v3464
        %v3493 = vpack.c.b16 %v3467, %v3466
        %v3494 = vpack.c.b16 %v3469, %v3468
        %v3495 = vpack.c.b16 %v3471, %v3470
        %v3496 = vpack.c.b16 %v3473, %v3472
        %v3497 = vpack.c.b16 %v3475, %v3474
        %v3498 = vpack.c.b16 %v3477, %v3476
        %v3499 = vpack.c.b16 %v3479, %v3478
        %v3500 = vpack.c.b16 %v3481, %v3480
        %v3501 = vpack.c.b16 %v3483, %v3482
        %v3502 = vpack.c.b16 %v3485, %v3484
        %v3503 = vpack.c.b16 %v3487, %v3486
        %v3505 = vsel %vm649, %v3488, 0
        %v3508 = vsel %vm649, %v3489, 0
        %v3511 = vsel %vm649, %v3490, 0
        %v3514 = vsel %vm649, %v3491, 0
        %v3517 = vsel %vm649, %v3492, 0
        %v3520 = vsel %vm649, %v3493, 0
        %v3523 = vsel %vm649, %v3494, 0
        %v3526 = vsel %vm649, %v3495, 0
        %v3529 = vsel %vm649, %v3496, 0
        %v3532 = vsel %vm649, %v3497, 0
        %v3535 = vsel %vm649, %v3498, 0
        %v3538 = vsel %vm649, %v3499, 0
        %v3541 = vsel %vm649, %v3500, 0
        %v3544 = vsel %vm649, %v3501, 0
        %v3547 = vsel %vm649, %v3502, 0
        %v3550 = vsel %vm649, %v3503, 0
        %v3553 = vsel %vm698, %v3455, 0
        %3555 = vmatpush.bf16.msra.mxu0 0
        %3556 = vmatpush.bf16.msra.mxu0 0
        %3557 = vmatpush.bf16.msra.mxu0 0
        %3558 = vmatpush.bf16.msra.mxu0 0
        %3559 = vmatpush.bf16.msra.mxu0 0
        %3560 = vmatpush.bf16.msra.mxu0 0
        %3561 = vmatpush.bf16.msra.mxu0 0
        %3562 = vmatpush.bf16.msra.mxu0 %v3553
        %3563 = vmatmul.bf16.gmra.mxu0 %v3505
        %v3564 = vpop.f32.mrf.mxu0
        %v3565 = vadd.f32 0.0, %v3564
        %v3566 = vpop.f32.mrf.mxu0
        %v3567 = vadd.f32 0.0, %v3566
        %3568 = vmatmul.bf16.gmra.mxu0 %v3508
        %v3569 = vpop.f32.mrf.mxu0
        %v3570 = vadd.f32 0.0, %v3569
        %v3571 = vpop.f32.mrf.mxu0
        %v3572 = vadd.f32 0.0, %v3571
        %3573 = vmatmul.bf16.gmra.mxu0 %v3511
        %v3574 = vpop.f32.mrf.mxu0
        %v3575 = vadd.f32 0.0, %v3574
        %v3576 = vpop.f32.mrf.mxu0
        %v3577 = vadd.f32 0.0, %v3576
        %3578 = vmatmul.bf16.gmra.mxu0 %v3514
        %v3579 = vpop.f32.mrf.mxu0
        %v3580 = vadd.f32 0.0, %v3579
        %v3581 = vpop.f32.mrf.mxu0
        %v3582 = vadd.f32 0.0, %v3581
        %3583 = vmatmul.bf16.gmra.mxu0 %v3517
        %v3584 = vpop.f32.mrf.mxu0
        %v3585 = vadd.f32 0.0, %v3584
        %v3586 = vpop.f32.mrf.mxu0
        %v3587 = vadd.f32 0.0, %v3586
        %3588 = vmatmul.bf16.gmra.mxu0 %v3520
        %v3589 = vpop.f32.mrf.mxu0
        %v3590 = vadd.f32 0.0, %v3589
        %v3591 = vpop.f32.mrf.mxu0
        %v3592 = vadd.f32 0.0, %v3591
        %3593 = vmatmul.bf16.gmra.mxu0 %v3523
        %v3594 = vpop.f32.mrf.mxu0
        %v3595 = vadd.f32 0.0, %v3594
        %v3596 = vpop.f32.mrf.mxu0
        %v3597 = vadd.f32 0.0, %v3596
        %3598 = vmatmul.bf16.gmra.mxu0 %v3526
        %v3599 = vpop.f32.mrf.mxu0
        %v3600 = vadd.f32 0.0, %v3599
        %v3601 = vpop.f32.mrf.mxu0
        %v3602 = vadd.f32 0.0, %v3601
        %3603 = vmatmul.bf16.gmra.mxu0 %v3529
        %v3604 = vpop.f32.mrf.mxu0
        %v3605 = vadd.f32 0.0, %v3604
        %v3606 = vpop.f32.mrf.mxu0
        %v3607 = vadd.f32 0.0, %v3606
        %3608 = vmatmul.bf16.gmra.mxu0 %v3532
        %v3609 = vpop.f32.mrf.mxu0
        %v3610 = vadd.f32 0.0, %v3609
        %v3611 = vpop.f32.mrf.mxu0
        %v3612 = vadd.f32 0.0, %v3611
        %3613 = vmatmul.bf16.gmra.mxu0 %v3535
        %v3614 = vpop.f32.mrf.mxu0
        %v3615 = vadd.f32 0.0, %v3614
        %v3616 = vpop.f32.mrf.mxu0
        %v3617 = vadd.f32 0.0, %v3616
        %3618 = vmatmul.bf16.gmra.mxu0 %v3538
        %v3619 = vpop.f32.mrf.mxu0
        %v3620 = vadd.f32 0.0, %v3619
        %v3621 = vpop.f32.mrf.mxu0
        %v3622 = vadd.f32 0.0, %v3621
        %3623 = vmatmul.bf16.gmra.mxu0 %v3541
        %v3624 = vpop.f32.mrf.mxu0
        %v3625 = vadd.f32 0.0, %v3624
        %v3626 = vpop.f32.mrf.mxu0
        %v3627 = vadd.f32 0.0, %v3626
        %3628 = vmatmul.bf16.gmra.mxu0 %v3544
        %v3629 = vpop.f32.mrf.mxu0
        %v3630 = vadd.f32 0.0, %v3629
        %v3631 = vpop.f32.mrf.mxu0
        %v3632 = vadd.f32 0.0, %v3631
        %3633 = vmatmul.bf16.gmra.mxu0 %v3547
        %v3634 = vpop.f32.mrf.mxu0
        %v3635 = vadd.f32 0.0, %v3634
        %v3636 = vpop.f32.mrf.mxu0
        %v3637 = vadd.f32 0.0, %v3636
        %3638 = vmatmul.bf16.gmra.mxu0 %v3550
        %v3639 = vpop.f32.mrf.mxu0
        %v3640 = vadd.f32 0.0, %v3639
        %v3641 = vpop.f32.mrf.mxu0
        %v3642 = vadd.f32 0.0, %v3641
        %3643 = vdwg.mxu0
        %v3644 = vadd.f32 %v2990, %v3565
        %v3645 = vadd.f32 %v2991, %v3567
        %v3646 = vadd.f32 %v2992, %v3570
        %v3647 = vadd.f32 %v2993, %v3572
        %v3648 = vadd.f32 %v2994, %v3575
        %v3649 = vadd.f32 %v2995, %v3577
        %v3650 = vadd.f32 %v2996, %v3580
        %v3651 = vadd.f32 %v2997, %v3582
        %v3652 = vadd.f32 %v2998, %v3585
        %v3653 = vadd.f32 %v2999, %v3587
        %v3654 = vadd.f32 %v3000, %v3590
        %v3655 = vadd.f32 %v3001, %v3592
        %v3656 = vadd.f32 %v3002, %v3595
        %v3657 = vadd.f32 %v3003, %v3597
        %v3658 = vadd.f32 %v3004, %v3600
        %v3659 = vadd.f32 %v3005, %v3602
        %v3660 = vadd.f32 %v3006, %v3605
        %v3661 = vadd.f32 %v3007, %v3607
        %v3662 = vadd.f32 %v3008, %v3610
        %v3663 = vadd.f32 %v3009, %v3612
        %v3664 = vadd.f32 %v3010, %v3615
        %v3665 = vadd.f32 %v3011, %v3617
        %v3666 = vadd.f32 %v3012, %v3620
        %v3667 = vadd.f32 %v3013, %v3622
        %v3668 = vadd.f32 %v3014, %v3625
        %v3669 = vadd.f32 %v3015, %v3627
        %v3670 = vadd.f32 %v3016, %v3630
        %v3671 = vadd.f32 %v3017, %v3632
        %v3672 = vadd.f32 %v3018, %v3635
        %v3673 = vadd.f32 %v3019, %v3637
        %v3674 = vadd.f32 %v3020, %v3640
        %v3675 = vadd.f32 %v3021, %v3642
        %v3676 = vld [vmem:[%s2735] sm:$0xe]
        %v3677 = vld [vmem:[%s2735 + $0xc] sm:$0xe]
        %v3678 = vld [vmem:[%s2735 + $0x18] sm:$0xe]
        %v3679 = vld [vmem:[%s2735 + $0x24] sm:$0xe]
        %v3680 = vld [vmem:[%s2735 + $0x30] sm:$0xe]
        %v3681 = vld [vmem:[%s2735 + $0x3c] sm:$0xe]
        %v3682 = vld [vmem:[%s2735 + $0x48] sm:$0xe]
        %v3683 = vld [vmem:[%s2735 + $0x54] sm:$0xe]
        %v3684 = vld [vmem:[%s2735 + $0x60] sm:$0xe]
        %v3685 = vld [vmem:[%s2735 + $0x6c] sm:$0xe]
        %v3686 = vld [vmem:[%s2735 + $0x78] sm:$0xe]
        %v3687 = vld [vmem:[%s2735 + $0x84] sm:$0xe]
        %v3688 = vld [vmem:[%s2735 + $0x90] sm:$0xe]
        %v3689 = vld [vmem:[%s2735 + $0x9c] sm:$0xe]
        %v3690 = vld [vmem:[%s2735 + $0xa8] sm:$0xe]
        %v3691 = vld [vmem:[%s2735 + $0xb4] sm:$0xe]
        %v3740 = vrot.slane %v3676, 5
        %v3741 = vrot.slane %v3740, 4
        %v3742 = vrot.slane %v3023, 5
        %v3743 = vsel %vm1061, %v3741, %v3742
        %v3744 = vrot.slane %v3742, 4
        %v3745 = vrot.slane %v3024, 5
        %v3746 = vsel %vm1061, %v3744, %v3745
        %v3747 = vrot.slane %v3677, 5
        %v3748 = vrot.slane %v3747, 4
        %v3749 = vrot.slane %v3026, 5
        %v3750 = vsel %vm1061, %v3748, %v3749
        %v3751 = vrot.slane %v3749, 4
        %v3752 = vrot.slane %v3027, 5
        %v3753 = vsel %vm1061, %v3751, %v3752
        %v3754 = vrot.slane %v3678, 5
        %v3755 = vrot.slane %v3754, 4
        %v3756 = vrot.slane %v3029, 5
        %v3757 = vsel %vm1061, %v3755, %v3756
        %v3758 = vrot.slane %v3756, 4
        %v3759 = vrot.slane %v3030, 5
        %v3760 = vsel %vm1061, %v3758, %v3759
        %v3761 = vrot.slane %v3679, 5
        %v3762 = vrot.slane %v3761, 4
        %v3763 = vrot.slane %v3032, 5
        %v3764 = vsel %vm1061, %v3762, %v3763
        %v3765 = vrot.slane %v3763, 4
        %v3766 = vrot.slane %v3033, 5
        %v3767 = vsel %vm1061, %v3765, %v3766
        %v3768 = vrot.slane %v3680, 5
        %v3769 = vrot.slane %v3768, 4
        %v3770 = vrot.slane %v3035, 5
        %v3771 = vsel %vm1061, %v3769, %v3770
        %v3772 = vrot.slane %v3770, 4
        %v3773 = vrot.slane %v3036, 5
        %v3774 = vsel %vm1061, %v3772, %v3773
        %v3775 = vrot.slane %v3681, 5
        %v3776 = vrot.slane %v3775, 4
        %v3777 = vrot.slane %v3038, 5
        %v3778 = vsel %vm1061, %v3776, %v3777
        %v3779 = vrot.slane %v3777, 4
        %v3780 = vrot.slane %v3039, 5
        %v3781 = vsel %vm1061, %v3779, %v3780
        %v3782 = vrot.slane %v3682, 5
        %v3783 = vrot.slane %v3782, 4
        %v3784 = vrot.slane %v3041, 5
        %v3785 = vsel %vm1061, %v3783, %v3784
        %v3786 = vrot.slane %v3784, 4
        %v3787 = vrot.slane %v3042, 5
        %v3788 = vsel %vm1061, %v3786, %v3787
        %v3789 = vrot.slane %v3683, 5
        %v3790 = vrot.slane %v3789, 4
        %v3791 = vrot.slane %v3044, 5
        %v3792 = vsel %vm1061, %v3790, %v3791
        %v3793 = vrot.slane %v3791, 4
        %v3794 = vrot.slane %v3045, 5
        %v3795 = vsel %vm1061, %v3793, %v3794
        %v3796 = vrot.slane %v3684, 5
        %v3797 = vrot.slane %v3796, 4
        %v3798 = vrot.slane %v3047, 5
        %v3799 = vsel %vm1061, %v3797, %v3798
        %v3800 = vrot.slane %v3798, 4
        %v3801 = vrot.slane %v3048, 5
        %v3802 = vsel %vm1061, %v3800, %v3801
        %v3803 = vrot.slane %v3685, 5
        %v3804 = vrot.slane %v3803, 4
        %v3805 = vrot.slane %v3050, 5
        %v3806 = vsel %vm1061, %v3804, %v3805
        %v3807 = vrot.slane %v3805, 4
        %v3808 = vrot.slane %v3051, 5
        %v3809 = vsel %vm1061, %v3807, %v3808
        %v3810 = vrot.slane %v3686, 5
        %v3811 = vrot.slane %v3810, 4
        %v3812 = vrot.slane %v3053, 5
        %v3813 = vsel %vm1061, %v3811, %v3812
        %v3814 = vrot.slane %v3812, 4
        %v3815 = vrot.slane %v3054, 5
        %v3816 = vsel %vm1061, %v3814, %v3815
        %v3817 = vrot.slane %v3687, 5
        %v3818 = vrot.slane %v3817, 4
        %v3819 = vrot.slane %v3056, 5
        %v3820 = vsel %vm1061, %v3818, %v3819
        %v3821 = vrot.slane %v3819, 4
        %v3822 = vrot.slane %v3057, 5
        %v3823 = vsel %vm1061, %v3821, %v3822
        %v3824 = vrot.slane %v3688, 5
        %v3825 = vrot.slane %v3824, 4
        %v3826 = vrot.slane %v3059, 5
        %v3827 = vsel %vm1061, %v3825, %v3826
        %v3828 = vrot.slane %v3826, 4
        %v3829 = vrot.slane %v3060, 5
        %v3830 = vsel %vm1061, %v3828, %v3829
        %v3831 = vrot.slane %v3689, 5
        %v3832 = vrot.slane %v3831, 4
        %v3833 = vrot.slane %v3062, 5
        %v3834 = vsel %vm1061, %v3832, %v3833
        %v3835 = vrot.slane %v3833, 4
        %v3836 = vrot.slane %v3063, 5
        %v3837 = vsel %vm1061, %v3835, %v3836
        %v3838 = vrot.slane %v3690, 5
        %v3839 = vrot.slane %v3838, 4
        %v3840 = vrot.slane %v3065, 5
        %v3841 = vsel %vm1061, %v3839, %v3840
        %v3842 = vrot.slane %v3840, 4
        %v3843 = vrot.slane %v3066, 5
        %v3844 = vsel %vm1061, %v3842, %v3843
        %v3845 = vrot.slane %v3691, 5
        %v3846 = vrot.slane %v3845, 4
        %v3847 = vrot.slane %v3068, 5
        %v3848 = vsel %vm1061, %v3846, %v3847
        %v3849 = vrot.slane %v3847, 4
        %v3850 = vrot.slane %v3069, 5
        %v3851 = vsel %vm1061, %v3849, %v3850
        %s3852 = scalar_lea.vmem %s1, 16
        %v3853 = vld [vmem:[%s3852] sm:$0x3]
        %v3854 = vunpack.c.l.b16 %v3743
        %v3855 = vunpack.c.l.b16 %v3746
        %v3856 = vunpack.c.l.b16 %v3750
        %v3857 = vunpack.c.l.b16 %v3753
        %v3858 = vunpack.c.l.b16 %v3757
        %v3859 = vunpack.c.l.b16 %v3760
        %v3860 = vunpack.c.l.b16 %v3764
        %v3861 = vunpack.c.l.b16 %v3767
        %v3862 = vunpack.c.l.b16 %v3771
        %v3863 = vunpack.c.l.b16 %v3774
        %v3864 = vunpack.c.l.b16 %v3778
        %v3865 = vunpack.c.l.b16 %v3781
        %v3866 = vunpack.c.l.b16 %v3785
        %v3867 = vunpack.c.l.b16 %v3788
        %v3868 = vunpack.c.l.b16 %v3792
        %v3869 = vunpack.c.l.b16 %v3795
        %v3870 = vunpack.c.l.b16 %v3799
        %v3871 = vunpack.c.l.b16 %v3802
        %v3872 = vunpack.c.l.b16 %v3806
        %v3873 = vunpack.c.l.b16 %v3809
        %v3874 = vunpack.c.l.b16 %v3813
        %v3875 = vunpack.c.l.b16 %v3816
        %v3876 = vunpack.c.l.b16 %v3820
        %v3877 = vunpack.c.l.b16 %v3823
        %v3878 = vunpack.c.l.b16 %v3827
        %v3879 = vunpack.c.l.b16 %v3830
        %v3880 = vunpack.c.l.b16 %v3834
        %v3881 = vunpack.c.l.b16 %v3837
        %v3882 = vunpack.c.l.b16 %v3841
        %v3883 = vunpack.c.l.b16 %v3844
        %v3884 = vunpack.c.l.b16 %v3848
        %v3885 = vunpack.c.l.b16 %v3851
        %v3886 = vpack.c.b16 %v3855, %v3854
        %v3887 = vpack.c.b16 %v3857, %v3856
        %v3888 = vpack.c.b16 %v3859, %v3858
        %v3889 = vpack.c.b16 %v3861, %v3860
        %v3890 = vpack.c.b16 %v3863, %v3862
        %v3891 = vpack.c.b16 %v3865, %v3864
        %v3892 = vpack.c.b16 %v3867, %v3866
        %v3893 = vpack.c.b16 %v3869, %v3868
        %v3894 = vpack.c.b16 %v3871, %v3870
        %v3895 = vpack.c.b16 %v3873, %v3872
        %v3896 = vpack.c.b16 %v3875, %v3874
        %v3897 = vpack.c.b16 %v3877, %v3876
        %v3898 = vpack.c.b16 %v3879, %v3878
        %v3899 = vpack.c.b16 %v3881, %v3880
        %v3900 = vpack.c.b16 %v3883, %v3882
        %v3901 = vpack.c.b16 %v3885, %v3884
        %v3903 = vsel %vm649, %v3886, 0
        %v3906 = vsel %vm649, %v3887, 0
        %v3909 = vsel %vm649, %v3888, 0
        %v3912 = vsel %vm649, %v3889, 0
        %v3915 = vsel %vm649, %v3890, 0
        %v3918 = vsel %vm649, %v3891, 0
        %v3921 = vsel %vm649, %v3892, 0
        %v3924 = vsel %vm649, %v3893, 0
        %v3927 = vsel %vm649, %v3894, 0
        %v3930 = vsel %vm649, %v3895, 0
        %v3933 = vsel %vm649, %v3896, 0
        %v3936 = vsel %vm649, %v3897, 0
        %v3939 = vsel %vm649, %v3898, 0
        %v3942 = vsel %vm649, %v3899, 0
        %v3945 = vsel %vm649, %v3900, 0
        %v3948 = vsel %vm649, %v3901, 0
        %v3951 = vsel %vm698, %v3853, 0
        %3953 = vmatpush.bf16.msra.mxu0 0
        %3954 = vmatpush.bf16.msra.mxu0 0
        %3955 = vmatpush.bf16.msra.mxu0 0
        %3956 = vmatpush.bf16.msra.mxu0 0
        %3957 = vmatpush.bf16.msra.mxu0 0
        %3958 = vmatpush.bf16.msra.mxu0 0
        %3959 = vmatpush.bf16.msra.mxu0 0
        %3960 = vmatpush.bf16.msra.mxu0 %v3951
        %3961 = vmatmul.bf16.gmra.mxu0 %v3903
        %v3962 = vpop.f32.mrf.mxu0
        %v3963 = vadd.f32 0.0, %v3962
        %v3964 = vpop.f32.mrf.mxu0
        %v3965 = vadd.f32 0.0, %v3964
        %3966 = vmatmul.bf16.gmra.mxu0 %v3906
        %v3967 = vpop.f32.mrf.mxu0
        %v3968 = vadd.f32 0.0, %v3967
        %v3969 = vpop.f32.mrf.mxu0
        %v3970 = vadd.f32 0.0, %v3969
        %3971 = vmatmul.bf16.gmra.mxu0 %v3909
        %v3972 = vpop.f32.mrf.mxu0
        %v3973 = vadd.f32 0.0, %v3972
        %v3974 = vpop.f32.mrf.mxu0
        %v3975 = vadd.f32 0.0, %v3974
        %3976 = vmatmul.bf16.gmra.mxu0 %v3912
        %v3977 = vpop.f32.mrf.mxu0
        %v3978 = vadd.f32 0.0, %v3977
        %v3979 = vpop.f32.mrf.mxu0
        %v3980 = vadd.f32 0.0, %v3979
        %3981 = vmatmul.bf16.gmra.mxu0 %v3915
        %v3982 = vpop.f32.mrf.mxu0
        %v3983 = vadd.f32 0.0, %v3982
        %v3984 = vpop.f32.mrf.mxu0
        %v3985 = vadd.f32 0.0, %v3984
        %3986 = vmatmul.bf16.gmra.mxu0 %v3918
        %v3987 = vpop.f32.mrf.mxu0
        %v3988 = vadd.f32 0.0, %v3987
        %v3989 = vpop.f32.mrf.mxu0
        %v3990 = vadd.f32 0.0, %v3989
        %3991 = vmatmul.bf16.gmra.mxu0 %v3921
        %v3992 = vpop.f32.mrf.mxu0
        %v3993 = vadd.f32 0.0, %v3992
        %v3994 = vpop.f32.mrf.mxu0
        %v3995 = vadd.f32 0.0, %v3994
        %3996 = vmatmul.bf16.gmra.mxu0 %v3924
        %v3997 = vpop.f32.mrf.mxu0
        %v3998 = vadd.f32 0.0, %v3997
        %v3999 = vpop.f32.mrf.mxu0
        %v4000 = vadd.f32 0.0, %v3999
        %4001 = vmatmul.bf16.gmra.mxu0 %v3927
        %v4002 = vpop.f32.mrf.mxu0
        %v4003 = vadd.f32 0.0, %v4002
        %v4004 = vpop.f32.mrf.mxu0
        %v4005 = vadd.f32 0.0, %v4004
        %4006 = vmatmul.bf16.gmra.mxu0 %v3930
        %v4007 = vpop.f32.mrf.mxu0
        %v4008 = vadd.f32 0.0, %v4007
        %v4009 = vpop.f32.mrf.mxu0
        %v4010 = vadd.f32 0.0, %v4009
        %4011 = vmatmul.bf16.gmra.mxu0 %v3933
        %v4012 = vpop.f32.mrf.mxu0
        %v4013 = vadd.f32 0.0, %v4012
        %v4014 = vpop.f32.mrf.mxu0
        %v4015 = vadd.f32 0.0, %v4014
        %4016 = vmatmul.bf16.gmra.mxu0 %v3936
        %v4017 = vpop.f32.mrf.mxu0
        %v4018 = vadd.f32 0.0, %v4017
        %v4019 = vpop.f32.mrf.mxu0
        %v4020 = vadd.f32 0.0, %v4019
        %4021 = vmatmul.bf16.gmra.mxu0 %v3939
        %v4022 = vpop.f32.mrf.mxu0
        %v4023 = vadd.f32 0.0, %v4022
        %v4024 = vpop.f32.mrf.mxu0
        %v4025 = vadd.f32 0.0, %v4024
        %4026 = vmatmul.bf16.gmra.mxu0 %v3942
        %v4027 = vpop.f32.mrf.mxu0
        %v4028 = vadd.f32 0.0, %v4027
        %v4029 = vpop.f32.mrf.mxu0
        %v4030 = vadd.f32 0.0, %v4029
        %4031 = vmatmul.bf16.gmra.mxu0 %v3945
        %v4032 = vpop.f32.mrf.mxu0
        %v4033 = vadd.f32 0.0, %v4032
        %v4034 = vpop.f32.mrf.mxu0
        %v4035 = vadd.f32 0.0, %v4034
        %4036 = vmatmul.bf16.gmra.mxu0 %v3948
        %v4037 = vpop.f32.mrf.mxu0
        %v4038 = vadd.f32 0.0, %v4037
        %v4039 = vpop.f32.mrf.mxu0
        %v4040 = vadd.f32 0.0, %v4039
        %4041 = vdwg.mxu0
        %v4042 = vadd.f32 %v3644, %v3963
        %v4043 = vadd.f32 %v3645, %v3965
        %v4044 = vadd.f32 %v3646, %v3968
        %v4045 = vadd.f32 %v3647, %v3970
        %v4046 = vadd.f32 %v3648, %v3973
        %v4047 = vadd.f32 %v3649, %v3975
        %v4048 = vadd.f32 %v3650, %v3978
        %v4049 = vadd.f32 %v3651, %v3980
        %v4050 = vadd.f32 %v3652, %v3983
        %v4051 = vadd.f32 %v3653, %v3985
        %v4052 = vadd.f32 %v3654, %v3988
        %v4053 = vadd.f32 %v3655, %v3990
        %v4054 = vadd.f32 %v3656, %v3993
        %v4055 = vadd.f32 %v3657, %v3995
        %v4056 = vadd.f32 %v3658, %v3998
        %v4057 = vadd.f32 %v3659, %v4000
        %v4058 = vadd.f32 %v3660, %v4003
        %v4059 = vadd.f32 %v3661, %v4005
        %v4060 = vadd.f32 %v3662, %v4008
        %v4061 = vadd.f32 %v3663, %v4010
        %v4062 = vadd.f32 %v3664, %v4013
        %v4063 = vadd.f32 %v3665, %v4015
        %v4064 = vadd.f32 %v3666, %v4018
        %v4065 = vadd.f32 %v3667, %v4020
        %v4066 = vadd.f32 %v3668, %v4023
        %v4067 = vadd.f32 %v3669, %v4025
        %v4068 = vadd.f32 %v3670, %v4028
        %v4069 = vadd.f32 %v3671, %v4030
        %v4070 = vadd.f32 %v3672, %v4033
        %v4071 = vadd.f32 %v3673, %v4035
        %v4072 = vadd.f32 %v3674, %v4038
        %v4073 = vadd.f32 %v3675, %v4040
        %v4074 = vld [vmem:[#allocation2] sm:$0x1]
        %v4075 = vadd.f32 %v4042, %v4043
        %v4076 = vadd.f32 %v4075, %v4044
        %v4077 = vadd.f32 %v4076, %v4045
        %v4078 = vadd.f32 %v4077, %v4046
        %v4079 = vadd.f32 %v4078, %v4047
        %v4080 = vadd.f32 %v4079, %v4048
        %v4081 = vadd.f32 %v4080, %v4049
        %v4082 = vadd.f32 %v4081, %v4050
        %v4083 = vadd.f32 %v4082, %v4051
        %v4084 = vadd.f32 %v4083, %v4052
        %v4085 = vadd.f32 %v4084, %v4053
        %v4086 = vadd.f32 %v4085, %v4054
        %v4087 = vadd.f32 %v4086, %v4055
        %v4088 = vadd.f32 %v4087, %v4056
        %v4089 = vadd.f32 %v4088, %v4057
        %v4090 = vadd.f32 %v4089, %v4058
        %v4091 = vadd.f32 %v4090, %v4059
        %v4092 = vadd.f32 %v4091, %v4060
        %v4093 = vadd.f32 %v4092, %v4061
        %v4094 = vadd.f32 %v4093, %v4062
        %v4095 = vadd.f32 %v4094, %v4063
        %v4096 = vadd.f32 %v4095, %v4064
        %v4097 = vadd.f32 %v4096, %v4065
        %v4098 = vadd.f32 %v4097, %v4066
        %v4099 = vadd.f32 %v4098, %v4067
        %v4100 = vadd.f32 %v4099, %v4068
        %v4101 = vadd.f32 %v4100, %v4069
        %v4102 = vadd.f32 %v4101, %v4070
        %v4103 = vadd.f32 %v4102, %v4071
        %v4104 = vadd.f32 %v4103, %v4072
        %v4105 = vadd.f32 %v4104, %v4073
        %v4106 = vrot.slane %v4105, 4
        %v4107 = vadd.f32 %v4105, %v4106
        %v4108 = vrot.slane %v4107, 2
        %v4109 = vadd.f32 %v4107, %v4108
        %v4110 = vrot.slane %v4109, 1
        %v4111 = vadd.f32 %v4109, %v4110
        %v4112 = vadd.f32 %v4074, %v4111
        %4113 = vst [vmem:[#allocation2] sm:$0x1] %v4112
        %v4114 = vld [vmem:[#allocation4] sm:$0x1]
        %v4115 = vmul.f32 %v4042, %v4042
        %v4116 = vmul.f32 %v4043, %v4043
        %v4117 = vmul.f32 %v4044, %v4044
        %v4118 = vmul.f32 %v4045, %v4045
        %v4119 = vmul.f32 %v4046, %v4046
        %v4120 = vmul.f32 %v4047, %v4047
        %v4121 = vmul.f32 %v4048, %v4048
        %v4122 = vmul.f32 %v4049, %v4049
        %v4123 = vmul.f32 %v4050, %v4050
        %v4124 = vmul.f32 %v4051, %v4051
        %v4125 = vmul.f32 %v4052, %v4052
        %v4126 = vmul.f32 %v4053, %v4053
        %v4127 = vmul.f32 %v4054, %v4054
        %v4128 = vmul.f32 %v4055, %v4055
        %v4129 = vmul.f32 %v4056, %v4056
        %v4130 = vmul.f32 %v4057, %v4057
        %v4131 = vmul.f32 %v4058, %v4058
        %v4132 = vmul.f32 %v4059, %v4059
        %v4133 = vmul.f32 %v4060, %v4060
        %v4134 = vmul.f32 %v4061, %v4061
        %v4135 = vmul.f32 %v4062, %v4062
        %v4136 = vmul.f32 %v4063, %v4063
        %v4137 = vmul.f32 %v4064, %v4064
        %v4138 = vmul.f32 %v4065, %v4065
        %v4139 = vmul.f32 %v4066, %v4066
        %v4140 = vmul.f32 %v4067, %v4067
        %v4141 = vmul.f32 %v4068, %v4068
        %v4142 = vmul.f32 %v4069, %v4069
        %v4143 = vmul.f32 %v4070, %v4070
        %v4144 = vmul.f32 %v4071, %v4071
        %v4145 = vmul.f32 %v4072, %v4072
        %v4146 = vmul.f32 %v4073, %v4073
        %v4147 = vadd.f32 %v4115, %v4116
        %v4148 = vadd.f32 %v4147, %v4117
        %v4149 = vadd.f32 %v4148, %v4118
        %v4150 = vadd.f32 %v4149, %v4119
        %v4151 = vadd.f32 %v4150, %v4120
        %v4152 = vadd.f32 %v4151, %v4121
        %v4153 = vadd.f32 %v4152, %v4122
        %v4154 = vadd.f32 %v4153, %v4123
        %v4155 = vadd.f32 %v4154, %v4124
        %v4156 = vadd.f32 %v4155, %v4125
        %v4157 = vadd.f32 %v4156, %v4126
        %v4158 = vadd.f32 %v4157, %v4127
        %v4159 = vadd.f32 %v4158, %v4128
        %v4160 = vadd.f32 %v4159, %v4129
        %v4161 = vadd.f32 %v4160, %v4130
        %v4162 = vadd.f32 %v4161, %v4131
        %v4163 = vadd.f32 %v4162, %v4132
        %v4164 = vadd.f32 %v4163, %v4133
        %v4165 = vadd.f32 %v4164, %v4134
        %v4166 = vadd.f32 %v4165, %v4135
        %v4167 = vadd.f32 %v4166, %v4136
        %v4168 = vadd.f32 %v4167, %v4137
        %v4169 = vadd.f32 %v4168, %v4138
        %v4170 = vadd.f32 %v4169, %v4139
        %v4171 = vadd.f32 %v4170, %v4140
        %v4172 = vadd.f32 %v4171, %v4141
        %v4173 = vadd.f32 %v4172, %v4142
        %v4174 = vadd.f32 %v4173, %v4143
        %v4175 = vadd.f32 %v4174, %v4144
        %v4176 = vadd.f32 %v4175, %v4145
        %v4177 = vadd.f32 %v4176, %v4146
        %v4178 = vrot.slane %v4177, 4
        %v4179 = vadd.f32 %v4177, %v4178
        %v4180 = vrot.slane %v4179, 2
        %v4181 = vadd.f32 %v4179, %v4180
        %v4182 = vrot.slane %v4181, 1
        %v4183 = vadd.f32 %v4181, %v4182
        %v4184 = vadd.f32 %v4114, %v4183
        %4185 = vst [vmem:[#allocation4] sm:$0x1] %v4184
        // Predicated region
        $region33: #{tpu_custom_call.1} parent=27 // pred_check
          %p4186 = pneg %p77
        $region34: #{tpu_custom_call.1} parent=27 // pred_check_branch
          %4188 = sbr.rel (%p4186) target = $region36
        $region35: #{tpu_custom_call.1} parent=27 // pred_region
          %4190 = vsyncadd [#allocation3], 0
          %s4192 = sshll.u32 [#allocation2], 4
          %s4193 = int_to_ptr.vmem [resolvable:$true] %s4192
          %s4194 = sshll.u32 %s2, 4
          %s4195 = int_to_ptr.hbm [resolvable:$true] %s4194
          %4197 = dma.vmem_to_hbm [thread:$0]  %s4193, 16, %s4195, [#allocation3]
        $region36: #{tpu_custom_call.1} parent=27 // pred_fallthru
          _
        // Predicated region
        $region37: #{tpu_custom_call.1} parent=27 // pred_check
          %p4198 = pneg %p98
        $region38: #{tpu_custom_call.1} parent=27 // pred_check_branch
          %4200 = sbr.rel (%p4198) target = $region40
        $region39: #{tpu_custom_call.1} parent=27 // pred_region
          %4202 = vsyncadd [#allocation5], 0
          %s4204 = sshll.u32 [#allocation4], 4
          %s4205 = int_to_ptr.vmem [resolvable:$true] %s4204
          %s4206 = sshll.u32 %s3, 4
          %s4207 = int_to_ptr.hbm [resolvable:$true] %s4206
          %4209 = dma.vmem_to_hbm [thread:$0]  %s4205, 16, %s4207, [#allocation5]
        $region40: #{tpu_custom_call.1} parent=27 // pred_fallthru
          _
        // Predicated region
        $region41: #{tpu_custom_call.1} parent=27 // pred_check
          %p4210 = pneg %p77
        $region42: #{tpu_custom_call.1} parent=27 // pred_check_branch
          %4212 = sbr.rel (%p4210) target = $region44
        $region43: #{tpu_custom_call.1} parent=27 // pred_region
          %4214 = dma.done [#allocation3], 16
        $region44: #{tpu_custom_call.1} parent=27 // pred_fallthru
          _
        // Predicated region
        $region45: #{tpu_custom_call.1} parent=27 // pred_check
          %p4215 = pneg %p98
        $region46: #{tpu_custom_call.1} parent=27 // pred_check_branch
          %4217 = sbr.rel (%p4215) target = $region48
        $region47: #{tpu_custom_call.1} parent=27 // pred_region
          %4219 = dma.done [#allocation5], 16
        $region48: #{tpu_custom_call.1} parent=27 // pred_fallthru
          _
      $region28: #{tpu_custom_call.1} parent=5 // pred_fallthru
        _
      %p4220 = scmp.le.s32.totalorder 2, %s12
      // Predicated region
      $region49: #{tpu_custom_call.1} parent=5 // pred_check
        %p4221 = pneg %p4220
      $region50: #{tpu_custom_call.1} parent=5 // pred_check_branch
        %4223 = sbr.rel (%p4221) target = $region52
      $region51: #{tpu_custom_call.1} parent=5 // pred_region
        %s4224 = ssub.s32 %s12, 2
      $region52: #{tpu_custom_call.1} parent=5 // pred_fallthru
        _
    $region6: #{tpu_custom_call.1} parent=1 // loop_footer
      %s16 = sadd.s32 1, %s12
    $region7: #{tpu_custom_call.1} parent=1 // loop_footer_branch
      %11 = sbr.rel target = $region3
    $region8: #{tpu_custom_call.1} parent=1 // loop_exit
      _
    %4225 = vsyncpa [#allocation3], 1
    %s4226 = scalar_lea.sflag [#allocation3], 1
    %4227 = vsyncpa %s4226, 1
    %4228 = vsyncpa [#allocation5], 1

</llo_original>
